<compile_context>
chip_gen: v7x
topology: tpu7x:2x2x1
jax: 0.10.0
libtpu: 0.0.40
codegen_flags: <defaults>
</compile_context>

<pallas_src>
import jax
import jax.numpy as jnp
from jax.experimental import pallas as pl
from jax.experimental.pallas import tpu as pltpu


# ------------------------------ JAX wrapper -------------------------------- #

def gat_forward(x, adj, params1, params2, heads1, heads2):
    """Fused 2-layer GATv2 forward. Returns (h, log_softmax(h))."""
    w1l, w1r, v1 = params1
    w2l, w2r, v2 = params2
    n, f_in = x.shape
    c1 = w1l.shape[1] // heads1
    c2 = w2l.shape[1] // heads2
    d_out = heads2 * c2

    def kernel(x_ref, adj_ref, w1l_ref, w1r_ref, v1_ref,
               w2l_ref, w2r_ref, v2_ref, h_ref, logp_ref):
        feat0 = x_ref[...]                                   # [N, F_in]
        adj_m = adj_ref[...]                                 # [N, N]
        neg_mask = jnp.where(adj_m > 0, 0.0, -1e30)          # additive mask

        def gatv2_layer(feat, wl, wr, vec, heads, c):
            # vec rows: 0 = b_l, 1 = b_r, 2 = att, 3 = bias   (each [heads*c])
            xl_all = jnp.dot(feat, wl, preferred_element_type=jnp.float32) + vec[0:1, :]
            xr_all = jnp.dot(feat, wr, preferred_element_type=jnp.float32) + vec[1:2, :]
            xl_t_all = xl_all.T                              # [heads*c, N]
            outs = []
            for h in range(heads):                           # heads is small & static
                sl = slice(h * c, (h + 1) * c)
                xl = xl_all[:, sl]                           # [N, C]
                xr = xr_all[:, sl]                           # [N, C]
                xl_t = xl_t_all[sl, :]                       # [C, N]
                att = vec[2:3, sl]                           # [1, C]
                # GATv2: e[i, j] = att . leaky_relu(xr[i] + xl[j]), slope 0.2.
                # Neighbor axis j kept on lanes -> lane-dense softmax.
                s = xr[:, :, None] + xl_t[None, :, :]        # [N_i, C, N_j]
                s = jnp.where(s >= 0, s, 0.2 * s)            # leaky_relu(0.2)
                e = jnp.sum(s * att[:, :, None], axis=1)     # [N, N]
                e = e + neg_mask
                # masked softmax over neighbors j
                e = e - jnp.max(e, axis=1, keepdims=True)
                p = jnp.exp(e) * adj_m
                inv_d = pl.reciprocal(jnp.sum(p, axis=1, keepdims=True), approx=True)
                alpha = p * inv_d
                out_h = jnp.dot(alpha, xl, preferred_element_type=jnp.float32)
                outs.append(out_h + vec[3:4, sl])
            return outs[0] if heads == 1 else jnp.concatenate(outs, axis=1)

        # dropout(p=0.6) -> identity (eval mode)
        h1 = gatv2_layer(feat0, w1l_ref[...], w1r_ref[...], v1_ref[...], heads1, c1)
        h1 = jnp.where(h1 > 0, h1, jnp.exp(h1) - 1.0)        # F.elu
        # dropout(p=0.6) -> identity (eval mode)
        h2 = gatv2_layer(h1, w2l_ref[...], w2r_ref[...], v2_ref[...], heads2, c2)

        h_ref[...] = h2
        m = jnp.max(h2, axis=1, keepdims=True)
        lse = jnp.log(jnp.sum(jnp.exp(h2 - m), axis=1, keepdims=True)) + m
        logp_ref[...] = h2 - lse                             # log_softmax(dim=1)

    return pl.pallas_call(
        kernel,
        out_shape=(jax.ShapeDtypeStruct((n, d_out), jnp.float32),
                   jax.ShapeDtypeStruct((n, d_out), jnp.float32)),
        in_specs=[
            pl.BlockSpec((n, f_in), lambda: (0, 0)),         # x
            pl.BlockSpec((n, n), lambda: (0, 0)),            # adjacency mask
            pl.BlockSpec(w1l.shape, lambda: (0, 0)),         # layer-1 W_l slab
            pl.BlockSpec(w1r.shape, lambda: (0, 0)),         # layer-1 W_r slab
            pl.BlockSpec(v1.shape, lambda: (0, 0)),          # layer-1 (b_l,b_r,att,bias)
            pl.BlockSpec(w2l.shape, lambda: (0, 0)),         # layer-2 W_l slab
            pl.BlockSpec(w2r.shape, lambda: (0, 0)),         # layer-2 W_r slab
            pl.BlockSpec(v2.shape, lambda: (0, 0)),          # layer-2 (b_l,b_r,att,bias)
        ],
        out_specs=(pl.BlockSpec((n, d_out), lambda: (0, 0)),
                   pl.BlockSpec((n, d_out), lambda: (0, 0))),
    )(x, adj, w1l, w1r, v1, w2l, w2r, v2)


def init_gatv2_params(key, f_in, c, heads):
    """Packed GATv2Conv params: W_l [F,H*C], W_r [F,H*C], vec [4,H*C]."""
    ks = jax.random.split(key, 6)
    scale = 1.0 / jnp.sqrt(jnp.float32(f_in))
    wl = jax.random.normal(ks[0], (f_in, heads * c), jnp.float32) * scale
    wr = jax.random.normal(ks[1], (f_in, heads * c), jnp.float32) * scale
    bl = jax.random.normal(ks[2], (1, heads * c), jnp.float32) * 0.1
    br = jax.random.normal(ks[3], (1, heads * c), jnp.float32) * 0.1
    att = jax.random.normal(ks[4], (1, heads * c), jnp.float32)
    bias = jax.random.normal(ks[5], (1, heads * c), jnp.float32) * 0.1
    vec = jnp.concatenate([bl, br, att, bias], axis=0)       # [4, heads*c]
    return (wl, wr, vec)


# ---------------------------------- main ------------------------------------ #

if __name__ == "__main__":
    N, DIM_IN, DIM_H, DIM_OUT, HEADS, E = 16, 16, 8, 4, 8, 40

    key = jax.random.PRNGKey(0)
    k_x, k_src, k_tgt, k_p1, k_p2 = jax.random.split(key, 5)

    x = jax.random.normal(k_x, (N, DIM_IN), jnp.float32)
    src = jax.random.randint(k_src, (E,), 0, N, dtype=jnp.int32)
    tgt = jax.random.randint(k_tgt, (E,), 0, N, dtype=jnp.int32)
    edge_index = jnp.stack([src, tgt])                       # [2, E]

    # Dense adjacency mask: adj[target, source] = 1, plus self loops
    # (matches GATv2Conv(add_self_loops=True)).
    adj = jnp.zeros((N, N), jnp.float32).at[edge_index[1], edge_index[0]].set(1.0)
    adj = adj.at[jnp.arange(N), jnp.arange(N)].set(1.0)

    # gat1: GATv2Conv(DIM_IN, DIM_H, heads=HEADS); gat2: GATv2Conv(DIM_H*HEADS, DIM_OUT, heads=1)
    params1 = init_gatv2_params(k_p1, DIM_IN, DIM_H, HEADS)
    params2 = init_gatv2_params(k_p2, DIM_H * HEADS, DIM_OUT, 1)

    @jax.jit
    def fwd(x_, adj_, p1, p2):
        return gat_forward(x_, adj_, p1, p2, HEADS, 1)

    h, logp = fwd(x, adj, params1, params2)
    jax.block_until_ready((h, logp))

    assert h.shape == (N, DIM_OUT) and logp.shape == (N, DIM_OUT)
    assert bool(jnp.all(jnp.isfinite(h))) and bool(jnp.all(jnp.isfinite(logp)))
    print("KERNEL_OK")
</pallas_src>

<mosaic_0001>
module attributes {stable_mosaic.version = 11 : i64} {
  func.func @kernel(%arg0: memref<16x16xf32, #tpu.memory_space<vmem>>, %arg1: memref<16x16xf32, #tpu.memory_space<vmem>>, %arg2: memref<16x64xf32, #tpu.memory_space<vmem>>, %arg3: memref<16x64xf32, #tpu.memory_space<vmem>>, %arg4: memref<4x64xf32, #tpu.memory_space<vmem>>, %arg5: memref<64x4xf32, #tpu.memory_space<vmem>>, %arg6: memref<64x4xf32, #tpu.memory_space<vmem>>, %arg7: memref<4x4xf32, #tpu.memory_space<vmem>>, %arg8: memref<16x4xf32, #tpu.memory_space<vmem>>, %arg9: memref<16x4xf32, #tpu.memory_space<vmem>>) attributes {dimension_semantics = [], scalar_prefetch = 0 : i64, scratch_operands = 0 : i64, tpu.core_type = #tpu.core_type<tc>} {
    %c0 = arith.constant 0 : index
    %c0_0 = arith.constant 0 : index
    %0 = vector.load %arg0[%c0, %c0_0] : memref<16x16xf32, #tpu.memory_space<vmem>>, vector<16x16xf32>
    %c0_1 = arith.constant 0 : index
    %c0_2 = arith.constant 0 : index
    %1 = vector.load %arg1[%c0_1, %c0_2] : memref<16x16xf32, #tpu.memory_space<vmem>>, vector<16x16xf32>
    %cst = arith.constant 0.000000e+00 : f32
    %2 = vector.broadcast %cst : f32 to vector<16x16xf32>
    %3 = arith.cmpf ogt, %1, %2 : vector<16x16xf32>
    %cst_3 = arith.constant 0.000000e+00 : f32
    %cst_4 = arith.constant -1.000000e+30 : f32
    %4 = vector.broadcast %cst_3 : f32 to vector<16x16xf32>
    %5 = vector.broadcast %cst_4 : f32 to vector<16x16xf32>
    %6 = arith.select %3, %4, %5 : vector<16x16xi1>, vector<16x16xf32>
    %c0_5 = arith.constant 0 : index
    %c0_6 = arith.constant 0 : index
    %7 = vector.load %arg2[%c0_5, %c0_6] : memref<16x64xf32, #tpu.memory_space<vmem>>, vector<16x64xf32>
    %c0_7 = arith.constant 0 : index
    %c0_8 = arith.constant 0 : index
    %8 = vector.load %arg3[%c0_7, %c0_8] : memref<16x64xf32, #tpu.memory_space<vmem>>, vector<16x64xf32>
    %c0_9 = arith.constant 0 : index
    %c0_10 = arith.constant 0 : index
    %9 = vector.load %arg4[%c0_9, %c0_10] : memref<4x64xf32, #tpu.memory_space<vmem>>, vector<4x64xf32>
    %cst_11 = arith.constant dense<0.000000e+00> : vector<16x64xf32>
    %10 = tpu.matmul %0, %7, %cst_11 {dimension_numbers = #tpu.dot_dimension_numbers<[1], [0], [0], [1], [0, 0, 1, 1], [], []>} : vector<16x16xf32>, vector<16x64xf32>, vector<16x64xf32> -> vector<16x64xf32>
    %11 = vector.extract_strided_slice %9 {offsets = [0, 0], sizes = [1, 64], strides = [1, 1]} : vector<4x64xf32> to vector<1x64xf32>
    %12 = vector.broadcast %11 : vector<1x64xf32> to vector<16x64xf32>
    %13 = arith.addf %10, %12 : vector<16x64xf32>
    %cst_12 = arith.constant dense<0.000000e+00> : vector<16x64xf32>
    %14 = tpu.matmul %0, %8, %cst_12 {dimension_numbers = #tpu.dot_dimension_numbers<[1], [0], [0], [1], [0, 0, 1, 1], [], []>} : vector<16x16xf32>, vector<16x64xf32>, vector<16x64xf32> -> vector<16x64xf32>
    %15 = vector.extract_strided_slice %9 {offsets = [1, 0], sizes = [1, 64], strides = [1, 1]} : vector<4x64xf32> to vector<1x64xf32>
    %16 = vector.broadcast %15 : vector<1x64xf32> to vector<16x64xf32>
    %17 = arith.addf %14, %16 : vector<16x64xf32>
    %18 = tpu.transpose %13, [1, 0] : vector<16x64xf32> -> vector<64x16xf32>
    %19 = vector.extract_strided_slice %13 {offsets = [0, 0], sizes = [16, 8], strides = [1, 1]} : vector<16x64xf32> to vector<16x8xf32>
    %20 = vector.extract_strided_slice %17 {offsets = [0, 0], sizes = [16, 8], strides = [1, 1]} : vector<16x64xf32> to vector<16x8xf32>
    %21 = vector.extract_strided_slice %18 {offsets = [0, 0], sizes = [8, 16], strides = [1, 1]} : vector<64x16xf32> to vector<8x16xf32>
    %22 = vector.extract_strided_slice %9 {offsets = [2, 0], sizes = [1, 8], strides = [1, 1]} : vector<4x64xf32> to vector<1x8xf32>
    %23 = vector.shape_cast %20 : vector<16x8xf32> to vector<16x8x1xf32>
    %24 = vector.shape_cast %21 : vector<8x16xf32> to vector<1x8x16xf32>
    %25 = vector.broadcast %23 : vector<16x8x1xf32> to vector<16x8x16xf32>
    %26 = vector.broadcast %24 : vector<1x8x16xf32> to vector<16x8x16xf32>
    %27 = arith.addf %25, %26 : vector<16x8x16xf32>
    %cst_13 = arith.constant 0.000000e+00 : f32
    %28 = vector.broadcast %cst_13 : f32 to vector<16x8x16xf32>
    %29 = arith.cmpf oge, %27, %28 : vector<16x8x16xf32>
    %cst_14 = arith.constant 2.000000e-01 : f32
    %30 = vector.broadcast %cst_14 : f32 to vector<16x8x16xf32>
    %31 = arith.mulf %30, %27 : vector<16x8x16xf32>
    %32 = arith.select %29, %27, %31 : vector<16x8x16xi1>, vector<16x8x16xf32>
    %33 = vector.shape_cast %22 : vector<1x8xf32> to vector<1x8x1xf32>
    %34 = vector.broadcast %33 : vector<1x8x1xf32> to vector<16x8x16xf32>
    %35 = arith.mulf %32, %34 : vector<16x8x16xf32>
    %cst_15 = arith.constant dense<0.000000e+00> : vector<16x16xf32>
    %36 = vector.multi_reduction <add>, %35, %cst_15 [1] : vector<16x8x16xf32> to vector<16x16xf32>
    %37 = arith.addf %36, %6 : vector<16x16xf32>
    %cst_16 = arith.constant dense<0xFF800000> : vector<16xf32>
    %38 = vector.multi_reduction <maximumf>, %37, %cst_16 [1] : vector<16x16xf32> to vector<16xf32>
    %39 = vector.shape_cast %38 : vector<16xf32> to vector<16x1xf32>
    %40 = vector.broadcast %39 : vector<16x1xf32> to vector<16x16xf32>
    %41 = arith.subf %37, %40 : vector<16x16xf32>
    %42 = math.exp %41 : vector<16x16xf32>
    %43 = arith.mulf %42, %1 : vector<16x16xf32>
    %cst_17 = arith.constant dense<0.000000e+00> : vector<16xf32>
    %44 = vector.multi_reduction <add>, %43, %cst_17 [1] : vector<16x16xf32> to vector<16xf32>
    %45 = vector.shape_cast %44 : vector<16xf32> to vector<16x1xf32>
    %46 = tpu.reciprocal %45 {approx = true} : vector<16x1xf32> -> vector<16x1xf32>
    %47 = vector.broadcast %46 : vector<16x1xf32> to vector<16x16xf32>
    %48 = arith.mulf %43, %47 : vector<16x16xf32>
    %cst_18 = arith.constant dense<0.000000e+00> : vector<16x8xf32>
    %49 = tpu.matmul %48, %19, %cst_18 {dimension_numbers = #tpu.dot_dimension_numbers<[1], [0], [0], [1], [0, 0, 1, 1], [], []>} : vector<16x16xf32>, vector<16x8xf32>, vector<16x8xf32> -> vector<16x8xf32>
    %50 = vector.extract_strided_slice %9 {offsets = [3, 0], sizes = [1, 8], strides = [1, 1]} : vector<4x64xf32> to vector<1x8xf32>
    %51 = vector.broadcast %50 : vector<1x8xf32> to vector<16x8xf32>
    %52 = arith.addf %49, %51 : vector<16x8xf32>
    %53 = vector.extract_strided_slice %13 {offsets = [0, 8], sizes = [16, 8], strides = [1, 1]} : vector<16x64xf32> to vector<16x8xf32>
    %54 = vector.extract_strided_slice %17 {offsets = [0, 8], sizes = [16, 8], strides = [1, 1]} : vector<16x64xf32> to vector<16x8xf32>
    %55 = vector.extract_strided_slice %18 {offsets = [8, 0], sizes = [8, 16], strides = [1, 1]} : vector<64x16xf32> to vector<8x16xf32>
    %56 = vector.extract_strided_slice %9 {offsets = [2, 8], sizes = [1, 8], strides = [1, 1]} : vector<4x64xf32> to vector<1x8xf32>
    %57 = vector.shape_cast %54 : vector<16x8xf32> to vector<16x8x1xf32>
    %58 = vector.shape_cast %55 : vector<8x16xf32> to vector<1x8x16xf32>
    %59 = vector.broadcast %57 : vector<16x8x1xf32> to vector<16x8x16xf32>
    %60 = vector.broadcast %58 : vector<1x8x16xf32> to vector<16x8x16xf32>
    %61 = arith.addf %59, %60 : vector<16x8x16xf32>
    %cst_19 = arith.constant 0.000000e+00 : f32
    %62 = vector.broadcast %cst_19 : f32 to vector<16x8x16xf32>
    %63 = arith.cmpf oge, %61, %62 : vector<16x8x16xf32>
    %cst_20 = arith.constant 2.000000e-01 : f32
    %64 = vector.broadcast %cst_20 : f32 to vector<16x8x16xf32>
    %65 = arith.mulf %64, %61 : vector<16x8x16xf32>
    %66 = arith.select %63, %61, %65 : vector<16x8x16xi1>, vector<16x8x16xf32>
    %67 = vector.shape_cast %56 : vector<1x8xf32> to vector<1x8x1xf32>
    %68 = vector.broadcast %67 : vector<1x8x1xf32> to vector<16x8x16xf32>
    %69 = arith.mulf %66, %68 : vector<16x8x16xf32>
    %cst_21 = arith.constant dense<0.000000e+00> : vector<16x16xf32>
    %70 = vector.multi_reduction <add>, %69, %cst_21 [1] : vector<16x8x16xf32> to vector<16x16xf32>
    %71 = arith.addf %70, %6 : vector<16x16xf32>
    %cst_22 = arith.constant dense<0xFF800000> : vector<16xf32>
    %72 = vector.multi_reduction <maximumf>, %71, %cst_22 [1] : vector<16x16xf32> to vector<16xf32>
    %73 = vector.shape_cast %72 : vector<16xf32> to vector<16x1xf32>
    %74 = vector.broadcast %73 : vector<16x1xf32> to vector<16x16xf32>
    %75 = arith.subf %71, %74 : vector<16x16xf32>
    %76 = math.exp %75 : vector<16x16xf32>
    %77 = arith.mulf %76, %1 : vector<16x16xf32>
    %cst_23 = arith.constant dense<0.000000e+00> : vector<16xf32>
    %78 = vector.multi_reduction <add>, %77, %cst_23 [1] : vector<16x16xf32> to vector<16xf32>
    %79 = vector.shape_cast %78 : vector<16xf32> to vector<16x1xf32>
    %80 = tpu.reciprocal %79 {approx = true} : vector<16x1xf32> -> vector<16x1xf32>
    %81 = vector.broadcast %80 : vector<16x1xf32> to vector<16x16xf32>
    %82 = arith.mulf %77, %81 : vector<16x16xf32>
    %cst_24 = arith.constant dense<0.000000e+00> : vector<16x8xf32>
    %83 = tpu.matmul %82, %53, %cst_24 {dimension_numbers = #tpu.dot_dimension_numbers<[1], [0], [0], [1], [0, 0, 1, 1], [], []>} : vector<16x16xf32>, vector<16x8xf32>, vector<16x8xf32> -> vector<16x8xf32>
    %84 = vector.extract_strided_slice %9 {offsets = [3, 8], sizes = [1, 8], strides = [1, 1]} : vector<4x64xf32> to vector<1x8xf32>
    %85 = vector.broadcast %84 : vector<1x8xf32> to vector<16x8xf32>
    %86 = arith.addf %83, %85 : vector<16x8xf32>
    %87 = vector.extract_strided_slice %13 {offsets = [0, 16], sizes = [16, 8], strides = [1, 1]} : vector<16x64xf32> to vector<16x8xf32>
    %88 = vector.extract_strided_slice %17 {offsets = [0, 16], sizes = [16, 8], strides = [1, 1]} : vector<16x64xf32> to vector<16x8xf32>
    %89 = vector.extract_strided_slice %18 {offsets = [16, 0], sizes = [8, 16], strides = [1, 1]} : vector<64x16xf32> to vector<8x16xf32>
    %90 = vector.extract_strided_slice %9 {offsets = [2, 16], sizes = [1, 8], strides = [1, 1]} : vector<4x64xf32> to vector<1x8xf32>
    %91 = vector.shape_cast %88 : vector<16x8xf32> to vector<16x8x1xf32>
    %92 = vector.shape_cast %89 : vector<8x16xf32> to vector<1x8x16xf32>
    %93 = vector.broadcast %91 : vector<16x8x1xf32> to vector<16x8x16xf32>
    %94 = vector.broadcast %92 : vector<1x8x16xf32> to vector<16x8x16xf32>
    %95 = arith.addf %93, %94 : vector<16x8x16xf32>
    %cst_25 = arith.constant 0.000000e+00 : f32
    %96 = vector.broadcast %cst_25 : f32 to vector<16x8x16xf32>
    %97 = arith.cmpf oge, %95, %96 : vector<16x8x16xf32>
    %cst_26 = arith.constant 2.000000e-01 : f32
    %98 = vector.broadcast %cst_26 : f32 to vector<16x8x16xf32>
    %99 = arith.mulf %98, %95 : vector<16x8x16xf32>
    %100 = arith.select %97, %95, %99 : vector<16x8x16xi1>, vector<16x8x16xf32>
    %101 = vector.shape_cast %90 : vector<1x8xf32> to vector<1x8x1xf32>
    %102 = vector.broadcast %101 : vector<1x8x1xf32> to vector<16x8x16xf32>
    %103 = arith.mulf %100, %102 : vector<16x8x16xf32>
    %cst_27 = arith.constant dense<0.000000e+00> : vector<16x16xf32>
    %104 = vector.multi_reduction <add>, %103, %cst_27 [1] : vector<16x8x16xf32> to vector<16x16xf32>
    %105 = arith.addf %104, %6 : vector<16x16xf32>
    %cst_28 = arith.constant dense<0xFF800000> : vector<16xf32>
    %106 = vector.multi_reduction <maximumf>, %105, %cst_28 [1] : vector<16x16xf32> to vector<16xf32>
    %107 = vector.shape_cast %106 : vector<16xf32> to vector<16x1xf32>
    %108 = vector.broadcast %107 : vector<16x1xf32> to vector<16x16xf32>
    %109 = arith.subf %105, %108 : vector<16x16xf32>
    %110 = math.exp %109 : vector<16x16xf32>
    %111 = arith.mulf %110, %1 : vector<16x16xf32>
    %cst_29 = arith.constant dense<0.000000e+00> : vector<16xf32>
    %112 = vector.multi_reduction <add>, %111, %cst_29 [1] : vector<16x16xf32> to vector<16xf32>
    %113 = vector.shape_cast %112 : vector<16xf32> to vector<16x1xf32>
    %114 = tpu.reciprocal %113 {approx = true} : vector<16x1xf32> -> vector<16x1xf32>
    %115 = vector.broadcast %114 : vector<16x1xf32> to vector<16x16xf32>
    %116 = arith.mulf %111, %115 : vector<16x16xf32>
    %cst_30 = arith.constant dense<0.000000e+00> : vector<16x8xf32>
    %117 = tpu.matmul %116, %87, %cst_30 {dimension_numbers = #tpu.dot_dimension_numbers<[1], [0], [0], [1], [0, 0, 1, 1], [], []>} : vector<16x16xf32>, vector<16x8xf32>, vector<16x8xf32> -> vector<16x8xf32>
    %118 = vector.extract_strided_slice %9 {offsets = [3, 16], sizes = [1, 8], strides = [1, 1]} : vector<4x64xf32> to vector<1x8xf32>
    %119 = vector.broadcast %118 : vector<1x8xf32> to vector<16x8xf32>
    %120 = arith.addf %117, %119 : vector<16x8xf32>
    %121 = vector.extract_strided_slice %13 {offsets = [0, 24], sizes = [16, 8], strides = [1, 1]} : vector<16x64xf32> to vector<16x8xf32>
    %122 = vector.extract_strided_slice %17 {offsets = [0, 24], sizes = [16, 8], strides = [1, 1]} : vector<16x64xf32> to vector<16x8xf32>
    %123 = vector.extract_strided_slice %18 {offsets = [24, 0], sizes = [8, 16], strides = [1, 1]} : vector<64x16xf32> to vector<8x16xf32>
    %124 = vector.extract_strided_slice %9 {offsets = [2, 24], sizes = [1, 8], strides = [1, 1]} : vector<4x64xf32> to vector<1x8xf32>
    %125 = vector.shape_cast %122 : vector<16x8xf32> to vector<16x8x1xf32>
    %126 = vector.shape_cast %123 : vector<8x16xf32> to vector<1x8x16xf32>
    %127 = vector.broadcast %125 : vector<16x8x1xf32> to vector<16x8x16xf32>
    %128 = vector.broadcast %126 : vector<1x8x16xf32> to vector<16x8x16xf32>
    %129 = arith.addf %127, %128 : vector<16x8x16xf32>
    %cst_31 = arith.constant 0.000000e+00 : f32
    %130 = vector.broadcast %cst_31 : f32 to vector<16x8x16xf32>
    %131 = arith.cmpf oge, %129, %130 : vector<16x8x16xf32>
    %cst_32 = arith.constant 2.000000e-01 : f32
    %132 = vector.broadcast %cst_32 : f32 to vector<16x8x16xf32>
    %133 = arith.mulf %132, %129 : vector<16x8x16xf32>
    %134 = arith.select %131, %129, %133 : vector<16x8x16xi1>, vector<16x8x16xf32>
    %135 = vector.shape_cast %124 : vector<1x8xf32> to vector<1x8x1xf32>
    %136 = vector.broadcast %135 : vector<1x8x1xf32> to vector<16x8x16xf32>
    %137 = arith.mulf %134, %136 : vector<16x8x16xf32>
    %cst_33 = arith.constant dense<0.000000e+00> : vector<16x16xf32>
    %138 = vector.multi_reduction <add>, %137, %cst_33 [1] : vector<16x8x16xf32> to vector<16x16xf32>
    %139 = arith.addf %138, %6 : vector<16x16xf32>
    %cst_34 = arith.constant dense<0xFF800000> : vector<16xf32>
    %140 = vector.multi_reduction <maximumf>, %139, %cst_34 [1] : vector<16x16xf32> to vector<16xf32>
    %141 = vector.shape_cast %140 : vector<16xf32> to vector<16x1xf32>
    %142 = vector.broadcast %141 : vector<16x1xf32> to vector<16x16xf32>
    %143 = arith.subf %139, %142 : vector<16x16xf32>
    %144 = math.exp %143 : vector<16x16xf32>
    %145 = arith.mulf %144, %1 : vector<16x16xf32>
    %cst_35 = arith.constant dense<0.000000e+00> : vector<16xf32>
    %146 = vector.multi_reduction <add>, %145, %cst_35 [1] : vector<16x16xf32> to vector<16xf32>
    %147 = vector.shape_cast %146 : vector<16xf32> to vector<16x1xf32>
    %148 = tpu.reciprocal %147 {approx = true} : vector<16x1xf32> -> vector<16x1xf32>
    %149 = vector.broadcast %148 : vector<16x1xf32> to vector<16x16xf32>
    %150 = arith.mulf %145, %149 : vector<16x16xf32>
    %cst_36 = arith.constant dense<0.000000e+00> : vector<16x8xf32>
    %151 = tpu.matmul %150, %121, %cst_36 {dimension_numbers = #tpu.dot_dimension_numbers<[1], [0], [0], [1], [0, 0, 1, 1], [], []>} : vector<16x16xf32>, vector<16x8xf32>, vector<16x8xf32> -> vector<16x8xf32>
    %152 = vector.extract_strided_slice %9 {offsets = [3, 24], sizes = [1, 8], strides = [1, 1]} : vector<4x64xf32> to vector<1x8xf32>
    %153 = vector.broadcast %152 : vector<1x8xf32> to vector<16x8xf32>
    %154 = arith.addf %151, %153 : vector<16x8xf32>
    %155 = vector.extract_strided_slice %13 {offsets = [0, 32], sizes = [16, 8], strides = [1, 1]} : vector<16x64xf32> to vector<16x8xf32>
    %156 = vector.extract_strided_slice %17 {offsets = [0, 32], sizes = [16, 8], strides = [1, 1]} : vector<16x64xf32> to vector<16x8xf32>
    %157 = vector.extract_strided_slice %18 {offsets = [32, 0], sizes = [8, 16], strides = [1, 1]} : vector<64x16xf32> to vector<8x16xf32>
    %158 = vector.extract_strided_slice %9 {offsets = [2, 32], sizes = [1, 8], strides = [1, 1]} : vector<4x64xf32> to vector<1x8xf32>
    %159 = vector.shape_cast %156 : vector<16x8xf32> to vector<16x8x1xf32>
    %160 = vector.shape_cast %157 : vector<8x16xf32> to vector<1x8x16xf32>
    %161 = vector.broadcast %159 : vector<16x8x1xf32> to vector<16x8x16xf32>
    %162 = vector.broadcast %160 : vector<1x8x16xf32> to vector<16x8x16xf32>
    %163 = arith.addf %161, %162 : vector<16x8x16xf32>
    %cst_37 = arith.constant 0.000000e+00 : f32
    %164 = vector.broadcast %cst_37 : f32 to vector<16x8x16xf32>
    %165 = arith.cmpf oge, %163, %164 : vector<16x8x16xf32>
    %cst_38 = arith.constant 2.000000e-01 : f32
    %166 = vector.broadcast %cst_38 : f32 to vector<16x8x16xf32>
    %167 = arith.mulf %166, %163 : vector<16x8x16xf32>
    %168 = arith.select %165, %163, %167 : vector<16x8x16xi1>, vector<16x8x16xf32>
    %169 = vector.shape_cast %158 : vector<1x8xf32> to vector<1x8x1xf32>
    %170 = vector.broadcast %169 : vector<1x8x1xf32> to vector<16x8x16xf32>
    %171 = arith.mulf %168, %170 : vector<16x8x16xf32>
    %cst_39 = arith.constant dense<0.000000e+00> : vector<16x16xf32>
    %172 = vector.multi_reduction <add>, %171, %cst_39 [1] : vector<16x8x16xf32> to vector<16x16xf32>
    %173 = arith.addf %172, %6 : vector<16x16xf32>
    %cst_40 = arith.constant dense<0xFF800000> : vector<16xf32>
    %174 = vector.multi_reduction <maximumf>, %173, %cst_40 [1] : vector<16x16xf32> to vector<16xf32>
    %175 = vector.shape_cast %174 : vector<16xf32> to vector<16x1xf32>
    %176 = vector.broadcast %175 : vector<16x1xf32> to vector<16x16xf32>
    %177 = arith.subf %173, %176 : vector<16x16xf32>
    %178 = math.exp %177 : vector<16x16xf32>
    %179 = arith.mulf %178, %1 : vector<16x16xf32>
    %cst_41 = arith.constant dense<0.000000e+00> : vector<16xf32>
    %180 = vector.multi_reduction <add>, %179, %cst_41 [1] : vector<16x16xf32> to vector<16xf32>
    %181 = vector.shape_cast %180 : vector<16xf32> to vector<16x1xf32>
    %182 = tpu.reciprocal %181 {approx = true} : vector<16x1xf32> -> vector<16x1xf32>
    %183 = vector.broadcast %182 : vector<16x1xf32> to vector<16x16xf32>
    %184 = arith.mulf %179, %183 : vector<16x16xf32>
    %cst_42 = arith.constant dense<0.000000e+00> : vector<16x8xf32>
    %185 = tpu.matmul %184, %155, %cst_42 {dimension_numbers = #tpu.dot_dimension_numbers<[1], [0], [0], [1], [0, 0, 1, 1], [], []>} : vector<16x16xf32>, vector<16x8xf32>, vector<16x8xf32> -> vector<16x8xf32>
    %186 = vector.extract_strided_slice %9 {offsets = [3, 32], sizes = [1, 8], strides = [1, 1]} : vector<4x64xf32> to vector<1x8xf32>
    %187 = vector.broadcast %186 : vector<1x8xf32> to vector<16x8xf32>
    %188 = arith.addf %185, %187 : vector<16x8xf32>
    %189 = vector.extract_strided_slice %13 {offsets = [0, 40], sizes = [16, 8], strides = [1, 1]} : vector<16x64xf32> to vector<16x8xf32>
    %190 = vector.extract_strided_slice %17 {offsets = [0, 40], sizes = [16, 8], strides = [1, 1]} : vector<16x64xf32> to vector<16x8xf32>
    %191 = vector.extract_strided_slice %18 {offsets = [40, 0], sizes = [8, 16], strides = [1, 1]} : vector<64x16xf32> to vector<8x16xf32>
    %192 = vector.extract_strided_slice %9 {offsets = [2, 40], sizes = [1, 8], strides = [1, 1]} : vector<4x64xf32> to vector<1x8xf32>
    %193 = vector.shape_cast %190 : vector<16x8xf32> to vector<16x8x1xf32>
    %194 = vector.shape_cast %191 : vector<8x16xf32> to vector<1x8x16xf32>
    %195 = vector.broadcast %193 : vector<16x8x1xf32> to vector<16x8x16xf32>
    %196 = vector.broadcast %194 : vector<1x8x16xf32> to vector<16x8x16xf32>
    %197 = arith.addf %195, %196 : vector<16x8x16xf32>
    %cst_43 = arith.constant 0.000000e+00 : f32
    %198 = vector.broadcast %cst_43 : f32 to vector<16x8x16xf32>
    %199 = arith.cmpf oge, %197, %198 : vector<16x8x16xf32>
    %cst_44 = arith.constant 2.000000e-01 : f32
    %200 = vector.broadcast %cst_44 : f32 to vector<16x8x16xf32>
    %201 = arith.mulf %200, %197 : vector<16x8x16xf32>
    %202 = arith.select %199, %197, %201 : vector<16x8x16xi1>, vector<16x8x16xf32>
    %203 = vector.shape_cast %192 : vector<1x8xf32> to vector<1x8x1xf32>
    %204 = vector.broadcast %203 : vector<1x8x1xf32> to vector<16x8x16xf32>
    %205 = arith.mulf %202, %204 : vector<16x8x16xf32>
    %cst_45 = arith.constant dense<0.000000e+00> : vector<16x16xf32>
    %206 = vector.multi_reduction <add>, %205, %cst_45 [1] : vector<16x8x16xf32> to vector<16x16xf32>
    %207 = arith.addf %206, %6 : vector<16x16xf32>
    %cst_46 = arith.constant dense<0xFF800000> : vector<16xf32>
    %208 = vector.multi_reduction <maximumf>, %207, %cst_46 [1] : vector<16x16xf32> to vector<16xf32>
    %209 = vector.shape_cast %208 : vector<16xf32> to vector<16x1xf32>
    %210 = vector.broadcast %209 : vector<16x1xf32> to vector<16x16xf32>
    %211 = arith.subf %207, %210 : vector<16x16xf32>
    %212 = math.exp %211 : vector<16x16xf32>
    %213 = arith.mulf %212, %1 : vector<16x16xf32>
    %cst_47 = arith.constant dense<0.000000e+00> : vector<16xf32>
    %214 = vector.multi_reduction <add>, %213, %cst_47 [1] : vector<16x16xf32> to vector<16xf32>
    %215 = vector.shape_cast %214 : vector<16xf32> to vector<16x1xf32>
    %216 = tpu.reciprocal %215 {approx = true} : vector<16x1xf32> -> vector<16x1xf32>
    %217 = vector.broadcast %216 : vector<16x1xf32> to vector<16x16xf32>
    %218 = arith.mulf %213, %217 : vector<16x16xf32>
    %cst_48 = arith.constant dense<0.000000e+00> : vector<16x8xf32>
    %219 = tpu.matmul %218, %189, %cst_48 {dimension_numbers = #tpu.dot_dimension_numbers<[1], [0], [0], [1], [0, 0, 1, 1], [], []>} : vector<16x16xf32>, vector<16x8xf32>, vector<16x8xf32> -> vector<16x8xf32>
    %220 = vector.extract_strided_slice %9 {offsets = [3, 40], sizes = [1, 8], strides = [1, 1]} : vector<4x64xf32> to vector<1x8xf32>
    %221 = vector.broadcast %220 : vector<1x8xf32> to vector<16x8xf32>
    %222 = arith.addf %219, %221 : vector<16x8xf32>
    %223 = vector.extract_strided_slice %13 {offsets = [0, 48], sizes = [16, 8], strides = [1, 1]} : vector<16x64xf32> to vector<16x8xf32>
    %224 = vector.extract_strided_slice %17 {offsets = [0, 48], sizes = [16, 8], strides = [1, 1]} : vector<16x64xf32> to vector<16x8xf32>
    %225 = vector.extract_strided_slice %18 {offsets = [48, 0], sizes = [8, 16], strides = [1, 1]} : vector<64x16xf32> to vector<8x16xf32>
    %226 = vector.extract_strided_slice %9 {offsets = [2, 48], sizes = [1, 8], strides = [1, 1]} : vector<4x64xf32> to vector<1x8xf32>
    %227 = vector.shape_cast %224 : vector<16x8xf32> to vector<16x8x1xf32>
    %228 = vector.shape_cast %225 : vector<8x16xf32> to vector<1x8x16xf32>
    %229 = vector.broadcast %227 : vector<16x8x1xf32> to vector<16x8x16xf32>
    %230 = vector.broadcast %228 : vector<1x8x16xf32> to vector<16x8x16xf32>
    %231 = arith.addf %229, %230 : vector<16x8x16xf32>
    %cst_49 = arith.constant 0.000000e+00 : f32
    %232 = vector.broadcast %cst_49 : f32 to vector<16x8x16xf32>
    %233 = arith.cmpf oge, %231, %232 : vector<16x8x16xf32>
    %cst_50 = arith.constant 2.000000e-01 : f32
    %234 = vector.broadcast %cst_50 : f32 to vector<16x8x16xf32>
    %235 = arith.mulf %234, %231 : vector<16x8x16xf32>
    %236 = arith.select %233, %231, %235 : vector<16x8x16xi1>, vector<16x8x16xf32>
    %237 = vector.shape_cast %226 : vector<1x8xf32> to vector<1x8x1xf32>
    %238 = vector.broadcast %237 : vector<1x8x1xf32> to vector<16x8x16xf32>
    %239 = arith.mulf %236, %238 : vector<16x8x16xf32>
    %cst_51 = arith.constant dense<0.000000e+00> : vector<16x16xf32>
    %240 = vector.multi_reduction <add>, %239, %cst_51 [1] : vector<16x8x16xf32> to vector<16x16xf32>
    %241 = arith.addf %240, %6 : vector<16x16xf32>
    %cst_52 = arith.constant dense<0xFF800000> : vector<16xf32>
    %242 = vector.multi_reduction <maximumf>, %241, %cst_52 [1] : vector<16x16xf32> to vector<16xf32>
    %243 = vector.shape_cast %242 : vector<16xf32> to vector<16x1xf32>
    %244 = vector.broadcast %243 : vector<16x1xf32> to vector<16x16xf32>
    %245 = arith.subf %241, %244 : vector<16x16xf32>
    %246 = math.exp %245 : vector<16x16xf32>
    %247 = arith.mulf %246, %1 : vector<16x16xf32>
    %cst_53 = arith.constant dense<0.000000e+00> : vector<16xf32>
    %248 = vector.multi_reduction <add>, %247, %cst_53 [1] : vector<16x16xf32> to vector<16xf32>
    %249 = vector.shape_cast %248 : vector<16xf32> to vector<16x1xf32>
    %250 = tpu.reciprocal %249 {approx = true} : vector<16x1xf32> -> vector<16x1xf32>
    %251 = vector.broadcast %250 : vector<16x1xf32> to vector<16x16xf32>
    %252 = arith.mulf %247, %251 : vector<16x16xf32>
    %cst_54 = arith.constant dense<0.000000e+00> : vector<16x8xf32>
    %253 = tpu.matmul %252, %223, %cst_54 {dimension_numbers = #tpu.dot_dimension_numbers<[1], [0], [0], [1], [0, 0, 1, 1], [], []>} : vector<16x16xf32>, vector<16x8xf32>, vector<16x8xf32> -> vector<16x8xf32>
    %254 = vector.extract_strided_slice %9 {offsets = [3, 48], sizes = [1, 8], strides = [1, 1]} : vector<4x64xf32> to vector<1x8xf32>
    %255 = vector.broadcast %254 : vector<1x8xf32> to vector<16x8xf32>
    %256 = arith.addf %253, %255 : vector<16x8xf32>
    %257 = vector.extract_strided_slice %13 {offsets = [0, 56], sizes = [16, 8], strides = [1, 1]} : vector<16x64xf32> to vector<16x8xf32>
    %258 = vector.extract_strided_slice %17 {offsets = [0, 56], sizes = [16, 8], strides = [1, 1]} : vector<16x64xf32> to vector<16x8xf32>
    %259 = vector.extract_strided_slice %18 {offsets = [56, 0], sizes = [8, 16], strides = [1, 1]} : vector<64x16xf32> to vector<8x16xf32>
    %260 = vector.extract_strided_slice %9 {offsets = [2, 56], sizes = [1, 8], strides = [1, 1]} : vector<4x64xf32> to vector<1x8xf32>
    %261 = vector.shape_cast %258 : vector<16x8xf32> to vector<16x8x1xf32>
    %262 = vector.shape_cast %259 : vector<8x16xf32> to vector<1x8x16xf32>
    %263 = vector.broadcast %261 : vector<16x8x1xf32> to vector<16x8x16xf32>
    %264 = vector.broadcast %262 : vector<1x8x16xf32> to vector<16x8x16xf32>
    %265 = arith.addf %263, %264 : vector<16x8x16xf32>
    %cst_55 = arith.constant 0.000000e+00 : f32
    %266 = vector.broadcast %cst_55 : f32 to vector<16x8x16xf32>
    %267 = arith.cmpf oge, %265, %266 : vector<16x8x16xf32>
    %cst_56 = arith.constant 2.000000e-01 : f32
    %268 = vector.broadcast %cst_56 : f32 to vector<16x8x16xf32>
    %269 = arith.mulf %268, %265 : vector<16x8x16xf32>
    %270 = arith.select %267, %265, %269 : vector<16x8x16xi1>, vector<16x8x16xf32>
    %271 = vector.shape_cast %260 : vector<1x8xf32> to vector<1x8x1xf32>
    %272 = vector.broadcast %271 : vector<1x8x1xf32> to vector<16x8x16xf32>
    %273 = arith.mulf %270, %272 : vector<16x8x16xf32>
    %cst_57 = arith.constant dense<0.000000e+00> : vector<16x16xf32>
    %274 = vector.multi_reduction <add>, %273, %cst_57 [1] : vector<16x8x16xf32> to vector<16x16xf32>
    %275 = arith.addf %274, %6 : vector<16x16xf32>
    %cst_58 = arith.constant dense<0xFF800000> : vector<16xf32>
    %276 = vector.multi_reduction <maximumf>, %275, %cst_58 [1] : vector<16x16xf32> to vector<16xf32>
    %277 = vector.shape_cast %276 : vector<16xf32> to vector<16x1xf32>
    %278 = vector.broadcast %277 : vector<16x1xf32> to vector<16x16xf32>
    %279 = arith.subf %275, %278 : vector<16x16xf32>
    %280 = math.exp %279 : vector<16x16xf32>
    %281 = arith.mulf %280, %1 : vector<16x16xf32>
    %cst_59 = arith.constant dense<0.000000e+00> : vector<16xf32>
    %282 = vector.multi_reduction <add>, %281, %cst_59 [1] : vector<16x16xf32> to vector<16xf32>
    %283 = vector.shape_cast %282 : vector<16xf32> to vector<16x1xf32>
    %284 = tpu.reciprocal %283 {approx = true} : vector<16x1xf32> -> vector<16x1xf32>
    %285 = vector.broadcast %284 : vector<16x1xf32> to vector<16x16xf32>
    %286 = arith.mulf %281, %285 : vector<16x16xf32>
    %cst_60 = arith.constant dense<0.000000e+00> : vector<16x8xf32>
    %287 = tpu.matmul %286, %257, %cst_60 {dimension_numbers = #tpu.dot_dimension_numbers<[1], [0], [0], [1], [0, 0, 1, 1], [], []>} : vector<16x16xf32>, vector<16x8xf32>, vector<16x8xf32> -> vector<16x8xf32>
    %288 = vector.extract_strided_slice %9 {offsets = [3, 56], sizes = [1, 8], strides = [1, 1]} : vector<4x64xf32> to vector<1x8xf32>
    %289 = vector.broadcast %288 : vector<1x8xf32> to vector<16x8xf32>
    %290 = arith.addf %287, %289 : vector<16x8xf32>
    %291 = tpu.concatenate %52, %86, %120, %154, %188, %222, %256, %290 in 1 : vector<16x8xf32>, vector<16x8xf32>, vector<16x8xf32>, vector<16x8xf32>, vector<16x8xf32>, vector<16x8xf32>, vector<16x8xf32>, vector<16x8xf32> -> vector<16x64xf32>
    %cst_61 = arith.constant 0.000000e+00 : f32
    %292 = vector.broadcast %cst_61 : f32 to vector<16x64xf32>
    %293 = arith.cmpf ogt, %291, %292 : vector<16x64xf32>
    %294 = math.exp %291 : vector<16x64xf32>
    %cst_62 = arith.constant 1.000000e+00 : f32
    %295 = vector.broadcast %cst_62 : f32 to vector<16x64xf32>
    %296 = arith.subf %294, %295 : vector<16x64xf32>
    %297 = arith.select %293, %291, %296 : vector<16x64xi1>, vector<16x64xf32>
    %c0_63 = arith.constant 0 : index
    %c0_64 = arith.constant 0 : index
    %298 = vector.load %arg5[%c0_63, %c0_64] : memref<64x4xf32, #tpu.memory_space<vmem>>, vector<64x4xf32>
    %c0_65 = arith.constant 0 : index
    %c0_66 = arith.constant 0 : index
    %299 = vector.load %arg6[%c0_65, %c0_66] : memref<64x4xf32, #tpu.memory_space<vmem>>, vector<64x4xf32>
    %c0_67 = arith.constant 0 : index
    %c0_68 = arith.constant 0 : index
    %300 = vector.load %arg7[%c0_67, %c0_68] : memref<4x4xf32, #tpu.memory_space<vmem>>, vector<4x4xf32>
    %cst_69 = arith.constant dense<0.000000e+00> : vector<16x4xf32>
    %301 = tpu.matmul %297, %298, %cst_69 {dimension_numbers = #tpu.dot_dimension_numbers<[1], [0], [0], [1], [0, 0, 1, 1], [], []>} : vector<16x64xf32>, vector<64x4xf32>, vector<16x4xf32> -> vector<16x4xf32>
    %302 = vector.extract_strided_slice %300 {offsets = [0, 0], sizes = [1, 4], strides = [1, 1]} : vector<4x4xf32> to vector<1x4xf32>
    %303 = vector.broadcast %302 : vector<1x4xf32> to vector<16x4xf32>
    %304 = arith.addf %301, %303 : vector<16x4xf32>
    %cst_70 = arith.constant dense<0.000000e+00> : vector<16x4xf32>
    %305 = tpu.matmul %297, %299, %cst_70 {dimension_numbers = #tpu.dot_dimension_numbers<[1], [0], [0], [1], [0, 0, 1, 1], [], []>} : vector<16x64xf32>, vector<64x4xf32>, vector<16x4xf32> -> vector<16x4xf32>
    %306 = vector.extract_strided_slice %300 {offsets = [1, 0], sizes = [1, 4], strides = [1, 1]} : vector<4x4xf32> to vector<1x4xf32>
    %307 = vector.broadcast %306 : vector<1x4xf32> to vector<16x4xf32>
    %308 = arith.addf %305, %307 : vector<16x4xf32>
    %309 = tpu.transpose %304, [1, 0] : vector<16x4xf32> -> vector<4x16xf32>
    %310 = vector.extract_strided_slice %300 {offsets = [2, 0], sizes = [1, 4], strides = [1, 1]} : vector<4x4xf32> to vector<1x4xf32>
    %311 = vector.shape_cast %308 : vector<16x4xf32> to vector<16x4x1xf32>
    %312 = vector.shape_cast %309 : vector<4x16xf32> to vector<1x4x16xf32>
    %313 = vector.broadcast %311 : vector<16x4x1xf32> to vector<16x4x16xf32>
    %314 = vector.broadcast %312 : vector<1x4x16xf32> to vector<16x4x16xf32>
    %315 = arith.addf %313, %314 : vector<16x4x16xf32>
    %cst_71 = arith.constant 0.000000e+00 : f32
    %316 = vector.broadcast %cst_71 : f32 to vector<16x4x16xf32>
    %317 = arith.cmpf oge, %315, %316 : vector<16x4x16xf32>
    %cst_72 = arith.constant 2.000000e-01 : f32
    %318 = vector.broadcast %cst_72 : f32 to vector<16x4x16xf32>
    %319 = arith.mulf %318, %315 : vector<16x4x16xf32>
    %320 = arith.select %317, %315, %319 : vector<16x4x16xi1>, vector<16x4x16xf32>
    %321 = vector.shape_cast %310 : vector<1x4xf32> to vector<1x4x1xf32>
    %322 = vector.broadcast %321 : vector<1x4x1xf32> to vector<16x4x16xf32>
    %323 = arith.mulf %320, %322 : vector<16x4x16xf32>
    %cst_73 = arith.constant dense<0.000000e+00> : vector<16x16xf32>
    %324 = vector.multi_reduction <add>, %323, %cst_73 [1] : vector<16x4x16xf32> to vector<16x16xf32>
    %325 = arith.addf %324, %6 : vector<16x16xf32>
    %cst_74 = arith.constant dense<0xFF800000> : vector<16xf32>
    %326 = vector.multi_reduction <maximumf>, %325, %cst_74 [1] : vector<16x16xf32> to vector<16xf32>
    %327 = vector.shape_cast %326 : vector<16xf32> to vector<16x1xf32>
    %328 = vector.broadcast %327 : vector<16x1xf32> to vector<16x16xf32>
    %329 = arith.subf %325, %328 : vector<16x16xf32>
    %330 = math.exp %329 : vector<16x16xf32>
    %331 = arith.mulf %330, %1 : vector<16x16xf32>
    %cst_75 = arith.constant dense<0.000000e+00> : vector<16xf32>
    %332 = vector.multi_reduction <add>, %331, %cst_75 [1] : vector<16x16xf32> to vector<16xf32>
    %333 = vector.shape_cast %332 : vector<16xf32> to vector<16x1xf32>
    %334 = tpu.reciprocal %333 {approx = true} : vector<16x1xf32> -> vector<16x1xf32>
    %335 = vector.broadcast %334 : vector<16x1xf32> to vector<16x16xf32>
    %336 = arith.mulf %331, %335 : vector<16x16xf32>
    %cst_76 = arith.constant dense<0.000000e+00> : vector<16x4xf32>
    %337 = tpu.matmul %336, %304, %cst_76 {dimension_numbers = #tpu.dot_dimension_numbers<[1], [0], [0], [1], [0, 0, 1, 1], [], []>} : vector<16x16xf32>, vector<16x4xf32>, vector<16x4xf32> -> vector<16x4xf32>
    %338 = vector.extract_strided_slice %300 {offsets = [3, 0], sizes = [1, 4], strides = [1, 1]} : vector<4x4xf32> to vector<1x4xf32>
    %339 = vector.broadcast %338 : vector<1x4xf32> to vector<16x4xf32>
    %340 = arith.addf %337, %339 : vector<16x4xf32>
    %c0_77 = arith.constant 0 : index
    %c0_78 = arith.constant 0 : index
    %341 = vector.load %arg8[%c0_77, %c0_78] : memref<16x4xf32, #tpu.memory_space<vmem>>, vector<16x4xf32>
    tpu.vector_store %arg8[%c0_77, %c0_78], %340 {strides = array<i32>} : memref<16x4xf32, #tpu.memory_space<vmem>>, vector<16x4xf32>,
    %cst_79 = arith.constant dense<0xFF800000> : vector<16xf32>
    %342 = vector.multi_reduction <maximumf>, %340, %cst_79 [1] : vector<16x4xf32> to vector<16xf32>
    %343 = vector.shape_cast %342 : vector<16xf32> to vector<16x1xf32>
    %344 = vector.broadcast %343 : vector<16x1xf32> to vector<16x4xf32>
    %345 = arith.subf %340, %344 : vector<16x4xf32>
    %346 = math.exp %345 : vector<16x4xf32>
    %cst_80 = arith.constant dense<0.000000e+00> : vector<16xf32>
    %347 = vector.multi_reduction <add>, %346, %cst_80 [1] : vector<16x4xf32> to vector<16xf32>
    %348 = vector.shape_cast %347 : vector<16xf32> to vector<16x1xf32>
    %349 = math.log %348 : vector<16x1xf32>
    %350 = arith.addf %349, %343 : vector<16x1xf32>
    %351 = vector.broadcast %350 : vector<16x1xf32> to vector<16x4xf32>
    %352 = arith.subf %340, %351 : vector<16x4xf32>
    %c0_81 = arith.constant 0 : index
    %c0_82 = arith.constant 0 : index
    %353 = vector.load %arg9[%c0_81, %c0_82] : memref<16x4xf32, #tpu.memory_space<vmem>>, vector<16x4xf32>
    tpu.vector_store %arg9[%c0_81, %c0_82], %352 {strides = array<i32>} : memref<16x4xf32, #tpu.memory_space<vmem>>, vector<16x4xf32>,
    return
  }
}

</mosaic_0001>

<llo_original>
// kernel: fwd.1
$region0: #{fwd.1}
  #allocation0 [shape = 'u32[]', space=smem, size = 0x4, offset = 0x4, fixed_abs, tag = 'smem constant byte address 0x4 - core index']
  #allocation1 [shape = 'u32[144,128]{1,0:T(1,128)}', space=vmem, size = 0x12000, scoped, tag = 'internal scratch']
  %s0 = inlined_call_operand.vmem [shape: f32[16,16], index: 0, kind: input, shape index: {}]
  %s1 = inlined_call_operand.vmem [shape: f32[16,16], index: 1, kind: input, shape index: {}]
  %s2 = inlined_call_operand.vmem [shape: f32[16,64], index: 2, kind: input, shape index: {}]
  %s3 = inlined_call_operand.vmem [shape: f32[16,64], index: 3, kind: input, shape index: {}]
  %s4 = inlined_call_operand.vmem [shape: f32[4,64], index: 4, kind: input, shape index: {}]
  %s5 = inlined_call_operand.vmem [shape: f32[64,4], index: 5, kind: input, shape index: {}]
  %s6 = inlined_call_operand.vmem [shape: f32[64,4], index: 6, kind: input, shape index: {}]
  %s7 = inlined_call_operand.vmem [shape: f32[4,4], index: 7, kind: input, shape index: {}]
  %s8 = inlined_call_operand.vmem [shape: f32[16,4], index: 8, kind: output, shape index: {0}]
  %s9 = inlined_call_operand.vmem [shape: f32[16,4], index: 9, kind: output, shape index: {1}]
  %10 = xla_tuple %s8, %s9
  %s11 = sld [smem:[#allocation0]]
  $region50: #{fwd.1} parent=0
    _
  %s13 = ssub.s32 1, %s11
  %s14 = scalar_select 0, %s13, %s11
  // Predicated region
  $region2: #{fwd.1} parent=0 // pred_check
    _
  $region3: #{fwd.1} parent=0 // pred_check_branch
    %16 = sbr.rel (0) target = $region5
  $region4: #{fwd.1} parent=0 // pred_region
    _
  $region5: #{fwd.1} parent=0 // pred_fallthru
    _
  // Predicated region
  $region6: #{fwd.1} parent=0 // pred_check
    _
  $region7: #{fwd.1} parent=0 // pred_check_branch
    %18 = sbr.rel (0) target = $region9
  $region8: #{fwd.1} parent=0 // pred_region
    _
  $region9: #{fwd.1} parent=0 // pred_fallthru
    _
  // Predicated region
  $region10: #{fwd.1} parent=0 // pred_check
    _
  $region11: #{fwd.1} parent=0 // pred_check_branch
    %20 = sbr.rel (0) target = $region13
  $region12: #{fwd.1} parent=0 // pred_region
    _
  $region13: #{fwd.1} parent=0 // pred_fallthru
    _
  // Predicated region
  $region14: #{fwd.1} parent=0 // pred_check
    _
  $region15: #{fwd.1} parent=0 // pred_check_branch
    %22 = sbr.rel (0) target = $region17
  $region16: #{fwd.1} parent=0 // pred_region
    _
  $region17: #{fwd.1} parent=0 // pred_fallthru
    _
  // Predicated region
  $region18: #{fwd.1} parent=0 // pred_check
    _
  $region19: #{fwd.1} parent=0 // pred_check_branch
    %24 = sbr.rel (0) target = $region21
  $region20: #{fwd.1} parent=0 // pred_region
    _
  $region21: #{fwd.1} parent=0 // pred_fallthru
    _
  // Predicated region
  $region22: #{fwd.1} parent=0 // pred_check
    _
  $region23: #{fwd.1} parent=0 // pred_check_branch
    %26 = sbr.rel (0) target = $region25
  $region24: #{fwd.1} parent=0 // pred_region
    _
  $region25: #{fwd.1} parent=0 // pred_fallthru
    _
  // Predicated region
  $region26: #{fwd.1} parent=0 // pred_check
    _
  $region27: #{fwd.1} parent=0 // pred_check_branch
    %28 = sbr.rel (0) target = $region29
  $region28: #{fwd.1} parent=0 // pred_region
    _
  $region29: #{fwd.1} parent=0 // pred_fallthru
    _
  // Predicated region
  $region30: #{fwd.1} parent=0 // pred_check
    _
  $region31: #{fwd.1} parent=0 // pred_check_branch
    %30 = sbr.rel (0) target = $region33
  $region32: #{fwd.1} parent=0 // pred_region
    _
  $region33: #{fwd.1} parent=0 // pred_fallthru
    _
  %v31 = vld [vmem:[%s0] sm:$0xff]
  %v32 = vld [vmem:[%s0 + $0x8] sm:$0xff]
  %v33 = vld [vmem:[%s1] sm:$0xff]
  %v34 = vld [vmem:[%s1 + $0x8] sm:$0xff]
  %vm35 = vcmp.gt.f32.partialorder %v33, 0.0
  %vm36 = vcmp.gt.f32.partialorder %v34, 0.0
  %v37 = vsel %vm35, 0.0, -1e+30
  %v38 = vsel %vm36, 0.0, -1e+30
  %v39 = vld [vmem:[%s2] sm:$0xff]
  %v40 = vld [vmem:[%s2 + $0x8] sm:$0xff]
  %v41 = vld [vmem:[%s3] sm:$0xff]
  %v42 = vld [vmem:[%s3 + $0x8] sm:$0xff]
  %v43 = vld [vmem:[%s4] sm:$0xf]
  %v44 = vlaneseq
  %v45 = vshrl.u32 %v44, 7
  %v46 = vsub.s32 0, %v45
  %v47 = vrot.slane %v43, %v46
  %vm48 = vcmask 130048
  %v50 = vsel %vm48, %v31, 0
  %v53 = vsel %vm48, %v32, 0
  %55 = vmatprep.subr.mxu0 0.0
  %56 = vmatpush1.msra.mxu0 %v39
  %57 = vmatprep.subr.mxu0 0.0
  %58 = vmatpush1.msra.mxu0 %v40
  %59 = vmatprep.subr.mxu0 0.0
  %60 = vmatpush1.msra.mxu0 0.0
  %61 = vmatprep.subr.mxu0 0.0
  %62 = vmatpush1.msra.mxu0 0.0
  %63 = vmatprep.subr.mxu0 0.0
  %64 = vmatpush1.msra.mxu0 0.0
  %65 = vmatprep.subr.mxu0 0.0
  %66 = vmatpush1.msra.mxu0 0.0
  %67 = vmatprep.subr.mxu0 0.0
  %68 = vmatpush1.msra.mxu0 0.0
  %69 = vmatprep.subr.mxu0 0.0
  %70 = vmatpush1.msra.mxu0 0.0
  %71 = vmatprep.subr.mxu0 0.0
  %72 = vmatpush1.msra.mxu0 0.0
  %73 = vmatprep.subr.mxu0 0.0
  %74 = vmatpush1.msra.mxu0 0.0
  %75 = vmatprep.subr.mxu0 0.0
  %76 = vmatpush1.msra.mxu0 0.0
  %77 = vmatprep.subr.mxu0 0.0
  %78 = vmatpush1.msra.mxu0 0.0
  %79 = vmatprep.subr.mxu0 0.0
  %80 = vmatpush1.msra.mxu0 0.0
  %81 = vmatprep.subr.mxu0 0.0
  %82 = vmatpush1.msra.mxu0 0.0
  %83 = vmatprep.subr.mxu0 0.0
  %84 = vmatpush1.msra.mxu0 0.0
  %85 = vmatprep.subr.mxu0 0.0
  %86 = vmatpush1.msra.mxu0 0.0
  %87 = vmatprep.subr.mxu0 0.0
  %88 = vmatpush1.msra.mxu0 0.0
  %89 = vmatprep.subr.mxu0 0.0
  %90 = vmatpush1.msra.mxu0 0.0
  %91 = vmatprep.subr.mxu0 0.0
  %92 = vmatpush1.msra.mxu0 0.0
  %93 = vmatprep.subr.mxu0 0.0
  %94 = vmatpush1.msra.mxu0 0.0
  %95 = vmatprep.subr.mxu0 0.0
  %96 = vmatpush1.msra.mxu0 0.0
  %97 = vmatprep.subr.mxu0 0.0
  %98 = vmatpush1.msra.mxu0 0.0
  %99 = vmatprep.subr.mxu0 0.0
  %100 = vmatpush1.msra.mxu0 0.0
  %101 = vmatprep.subr.mxu0 0.0
  %102 = vmatpush1.msra.mxu0 0.0
  %103 = vmatprep.subr.mxu0 0.0
  %104 = vmatpush1.msra.mxu0 0.0
  %105 = vmatprep.subr.mxu0 0.0
  %106 = vmatpush1.msra.mxu0 0.0
  %107 = vmatprep.subr.mxu0 0.0
  %108 = vmatpush1.msra.mxu0 0.0
  %109 = vmatprep.subr.mxu0 0.0
  %110 = vmatpush1.msra.mxu0 0.0
  %111 = vmatprep.subr.mxu0 0.0
  %112 = vmatpush1.msra.mxu0 0.0
  %113 = vmatprep.subr.mxu0 0.0
  %114 = vmatpush1.msra.mxu0 0.0
  %115 = vmatprep.subr.mxu0 0.0
  %116 = vmatpush1.msra.mxu0 0.0
  %117 = vmatprep.subr.mxu0 0.0
  %118 = vmatpush1.msra.mxu0 0.0
  %119 = vmatprep.mubr.f32.mxu0 0.0
  %120 = vmatmul.mubr.f32.gmra.mrb[0].mxu0 %v50
  %v121 = vpop.f32.mrb[0].mxu0
  %v122 = vadd.f32 %v47, %v121
  %v123 = vpop.f32.mrb[0].mxu0
  %124 = vmatprep.mubr.f32.mxu0 0.0
  %125 = vmatmul.mubr.f32.gmra.mrb[0].mxu0 %v53
  %v126 = vpop.f32.mrb[0].mxu0
  %v127 = vadd.f32 %v47, %v126
  %v128 = vpop.f32.mrb[0].mxu0
  %129 = vdwg.mxu0
  %v130 = vlaneseq
  %v131 = vshrl.u32 %v130, 7
  %v132 = vsub.s32 1, %v131
  %v133 = vrot.slane %v43, %v132
  %134 = vmatprep.subr.mxu0 0.0
  %135 = vmatpush1.msra.mxu0 %v41
  %136 = vmatprep.subr.mxu0 0.0
  %137 = vmatpush1.msra.mxu0 %v42
  %138 = vmatprep.subr.mxu0 0.0
  %139 = vmatpush1.msra.mxu0 0.0
  %140 = vmatprep.subr.mxu0 0.0
  %141 = vmatpush1.msra.mxu0 0.0
  %142 = vmatprep.subr.mxu0 0.0
  %143 = vmatpush1.msra.mxu0 0.0
  %144 = vmatprep.subr.mxu0 0.0
  %145 = vmatpush1.msra.mxu0 0.0
  %146 = vmatprep.subr.mxu0 0.0
  %147 = vmatpush1.msra.mxu0 0.0
  %148 = vmatprep.subr.mxu0 0.0
  %149 = vmatpush1.msra.mxu0 0.0
  %150 = vmatprep.subr.mxu0 0.0
  %151 = vmatpush1.msra.mxu0 0.0
  %152 = vmatprep.subr.mxu0 0.0
  %153 = vmatpush1.msra.mxu0 0.0
  %154 = vmatprep.subr.mxu0 0.0
  %155 = vmatpush1.msra.mxu0 0.0
  %156 = vmatprep.subr.mxu0 0.0
  %157 = vmatpush1.msra.mxu0 0.0
  %158 = vmatprep.subr.mxu0 0.0
  %159 = vmatpush1.msra.mxu0 0.0
  %160 = vmatprep.subr.mxu0 0.0
  %161 = vmatpush1.msra.mxu0 0.0
  %162 = vmatprep.subr.mxu0 0.0
  %163 = vmatpush1.msra.mxu0 0.0
  %164 = vmatprep.subr.mxu0 0.0
  %165 = vmatpush1.msra.mxu0 0.0
  %166 = vmatprep.subr.mxu0 0.0
  %167 = vmatpush1.msra.mxu0 0.0
  %168 = vmatprep.subr.mxu0 0.0
  %169 = vmatpush1.msra.mxu0 0.0
  %170 = vmatprep.subr.mxu0 0.0
  %171 = vmatpush1.msra.mxu0 0.0
  %172 = vmatprep.subr.mxu0 0.0
  %173 = vmatpush1.msra.mxu0 0.0
  %174 = vmatprep.subr.mxu0 0.0
  %175 = vmatpush1.msra.mxu0 0.0
  %176 = vmatprep.subr.mxu0 0.0
  %177 = vmatpush1.msra.mxu0 0.0
  %178 = vmatprep.subr.mxu0 0.0
  %179 = vmatpush1.msra.mxu0 0.0
  %180 = vmatprep.subr.mxu0 0.0
  %181 = vmatpush1.msra.mxu0 0.0
  %182 = vmatprep.subr.mxu0 0.0
  %183 = vmatpush1.msra.mxu0 0.0
  %184 = vmatprep.subr.mxu0 0.0
  %185 = vmatpush1.msra.mxu0 0.0
  %186 = vmatprep.subr.mxu0 0.0
  %187 = vmatpush1.msra.mxu0 0.0
  %188 = vmatprep.subr.mxu0 0.0
  %189 = vmatpush1.msra.mxu0 0.0
  %190 = vmatprep.subr.mxu0 0.0
  %191 = vmatpush1.msra.mxu0 0.0
  %192 = vmatprep.subr.mxu0 0.0
  %193 = vmatpush1.msra.mxu0 0.0
  %194 = vmatprep.subr.mxu0 0.0
  %195 = vmatpush1.msra.mxu0 0.0
  %196 = vmatprep.subr.mxu0 0.0
  %197 = vmatpush1.msra.mxu0 0.0
  %198 = vmatprep.mubr.f32.mxu0 0.0
  %199 = vmatmul.mubr.f32.gmra.mrb[0].mxu0 %v50
  %v200 = vpop.f32.mrb[0].mxu0
  %v201 = vadd.f32 %v133, %v200
  %v202 = vpop.f32.mrb[0].mxu0
  %203 = vmatprep.mubr.f32.mxu0 0.0
  %204 = vmatmul.mubr.f32.gmra.mrb[0].mxu0 %v53
  %v205 = vpop.f32.mrb[0].mxu0
  %v206 = vadd.f32 %v133, %v205
  %v207 = vpop.f32.mrb[0].mxu0
  %208 = vdwg.mxu0
  %209 = vxpose.xlu0.b32.start [1/16] %v122, 128
  %210 = vxpose.xlu0.b32.cont [2/16] %v127, 128
  %211 = vxpose.xlu0.b32.cont [3/16] 0.0, 128
  %212 = vxpose.xlu0.b32.cont [4/16] 0.0, 128
  %213 = vxpose.xlu0.b32.cont [5/16] 0.0, 128
  %214 = vxpose.xlu0.b32.cont [6/16] 0.0, 128
  %215 = vxpose.xlu0.b32.cont [7/16] 0.0, 128
  %216 = vxpose.xlu0.b32.cont [8/16] 0.0, 128
  %217 = vxpose.xlu0.b32.cont [9/16] 0.0, 128
  %218 = vxpose.xlu0.b32.cont [10/16] 0.0, 128
  %219 = vxpose.xlu0.b32.cont [11/16] 0.0, 128
  %220 = vxpose.xlu0.b32.cont [12/16] 0.0, 128
  %221 = vxpose.xlu0.b32.cont [13/16] 0.0, 128
  %222 = vxpose.xlu0.b32.cont [14/16] 0.0, 128
  %223 = vxpose.xlu0.b32.cont [15/16] 0.0, 128
  %224 = vxpose.xlu0.b32.end [16/16] 0.0, 128
  %v225 = vpop.trf.xlu0
  %v226 = vpop.trf.xlu0
  %v227 = vpop.trf.xlu0
  %v228 = vpop.trf.xlu0
  %v229 = vpop.trf.xlu0
  %v230 = vpop.trf.xlu0
  %v231 = vpop.trf.xlu0
  %v232 = vpop.trf.xlu0
  %v233 = vpop.trf.xlu0
  %v234 = vpop.trf.xlu0
  %v235 = vpop.trf.xlu0
  %v236 = vpop.trf.xlu0
  %v237 = vpop.trf.xlu0
  %v238 = vpop.trf.xlu0
  %v239 = vpop.trf.xlu0
  %v240 = vpop.trf.xlu0
  %v241 = vlaneseq
  %v242 = vshrl.u32 %v241, 7
  %v243 = vsub.s32 0, %v242
  %v244 = vrot.slane %v201, %v243
  %246 = vbcast.lane.b32.xlu0 %v244, 256
  %v247 = vpop.permute.xlu0 %246
  %v248 = vlaneseq
  %v249 = vshrl.u32 %v248, 7
  %v250 = vsub.s32 1, %v249
  %v251 = vrot.slane %v201, %v250
  %253 = vbcast.lane.b32.xlu0 %v251, 256
  %v254 = vpop.permute.xlu0 %253
  %v255 = vlaneseq
  %v256 = vshrl.u32 %v255, 7
  %v257 = vsub.s32 2, %v256
  %v258 = vrot.slane %v201, %v257
  %260 = vbcast.lane.b32.xlu0 %v258, 256
  %v261 = vpop.permute.xlu0 %260
  %v262 = vlaneseq
  %v263 = vshrl.u32 %v262, 7
  %v264 = vsub.s32 3, %v263
  %v265 = vrot.slane %v201, %v264
  %267 = vbcast.lane.b32.xlu0 %v265, 256
  %v268 = vpop.permute.xlu0 %267
  %v269 = vlaneseq
  %v270 = vshrl.u32 %v269, 7
  %v271 = vsub.s32 4, %v270
  %v272 = vrot.slane %v201, %v271
  %274 = vbcast.lane.b32.xlu0 %v272, 256
  %v275 = vpop.permute.xlu0 %274
  %v276 = vlaneseq
  %v277 = vshrl.u32 %v276, 7
  %v278 = vsub.s32 5, %v277
  %v279 = vrot.slane %v201, %v278
  %281 = vbcast.lane.b32.xlu0 %v279, 256
  %v282 = vpop.permute.xlu0 %281
  %v283 = vlaneseq
  %v284 = vshrl.u32 %v283, 7
  %v285 = vsub.s32 6, %v284
  %v286 = vrot.slane %v201, %v285
  %288 = vbcast.lane.b32.xlu0 %v286, 256
  %v289 = vpop.permute.xlu0 %288
  %v290 = vlaneseq
  %v291 = vshrl.u32 %v290, 7
  %v292 = vsub.s32 7, %v291
  %v293 = vrot.slane %v201, %v292
  %295 = vbcast.lane.b32.xlu0 %v293, 256
  %v296 = vpop.permute.xlu0 %295
  %v297 = vlaneseq
  %v298 = vshrl.u32 %v297, 7
  %v299 = vsub.s32 0, %v298
  %v300 = vrot.slane %v206, %v299
  %302 = vbcast.lane.b32.xlu0 %v300, 256
  %v303 = vpop.permute.xlu0 %302
  %v304 = vlaneseq
  %v305 = vshrl.u32 %v304, 7
  %v306 = vsub.s32 1, %v305
  %v307 = vrot.slane %v206, %v306
  %309 = vbcast.lane.b32.xlu0 %v307, 256
  %v310 = vpop.permute.xlu0 %309
  %v311 = vlaneseq
  %v312 = vshrl.u32 %v311, 7
  %v313 = vsub.s32 2, %v312
  %v314 = vrot.slane %v206, %v313
  %316 = vbcast.lane.b32.xlu0 %v314, 256
  %v317 = vpop.permute.xlu0 %316
  %v318 = vlaneseq
  %v319 = vshrl.u32 %v318, 7
  %v320 = vsub.s32 3, %v319
  %v321 = vrot.slane %v206, %v320
  %323 = vbcast.lane.b32.xlu0 %v321, 256
  %v324 = vpop.permute.xlu0 %323
  %v325 = vlaneseq
  %v326 = vshrl.u32 %v325, 7
  %v327 = vsub.s32 4, %v326
  %v328 = vrot.slane %v206, %v327
  %330 = vbcast.lane.b32.xlu0 %v328, 256
  %v331 = vpop.permute.xlu0 %330
  %v332 = vlaneseq
  %v333 = vshrl.u32 %v332, 7
  %v334 = vsub.s32 5, %v333
  %v335 = vrot.slane %v206, %v334
  %337 = vbcast.lane.b32.xlu0 %v335, 256
  %v338 = vpop.permute.xlu0 %337
  %v339 = vlaneseq
  %v340 = vshrl.u32 %v339, 7
  %v341 = vsub.s32 6, %v340
  %v342 = vrot.slane %v206, %v341
  %344 = vbcast.lane.b32.xlu0 %v342, 256
  %v345 = vpop.permute.xlu0 %344
  %v346 = vlaneseq
  %v347 = vshrl.u32 %v346, 7
  %v348 = vsub.s32 7, %v347
  %v349 = vrot.slane %v206, %v348
  %351 = vbcast.lane.b32.xlu0 %v349, 256
  %v352 = vpop.permute.xlu0 %351
  %v353 = vadd.f32 %v247, %v225
  %v354 = vadd.f32 %v254, %v225
  %v355 = vadd.f32 %v261, %v225
  %v356 = vadd.f32 %v268, %v225
  %v357 = vadd.f32 %v275, %v225
  %v358 = vadd.f32 %v282, %v225
  %v359 = vadd.f32 %v289, %v225
  %v360 = vadd.f32 %v296, %v225
  %v361 = vadd.f32 %v303, %v225
  %v362 = vadd.f32 %v310, %v225
  %v363 = vadd.f32 %v317, %v225
  %v364 = vadd.f32 %v324, %v225
  %v365 = vadd.f32 %v331, %v225
  %v366 = vadd.f32 %v338, %v225
  %v367 = vadd.f32 %v345, %v225
  %v368 = vadd.f32 %v352, %v225
  %vm369 = vcmp.ge.f32.partialorder %v353, 0.0
  %vm370 = vcmp.ge.f32.partialorder %v354, 0.0
  %vm371 = vcmp.ge.f32.partialorder %v355, 0.0
  %vm372 = vcmp.ge.f32.partialorder %v356, 0.0
  %vm373 = vcmp.ge.f32.partialorder %v357, 0.0
  %vm374 = vcmp.ge.f32.partialorder %v358, 0.0
  %vm375 = vcmp.ge.f32.partialorder %v359, 0.0
  %vm376 = vcmp.ge.f32.partialorder %v360, 0.0
  %vm377 = vcmp.ge.f32.partialorder %v361, 0.0
  %vm378 = vcmp.ge.f32.partialorder %v362, 0.0
  %vm379 = vcmp.ge.f32.partialorder %v363, 0.0
  %vm380 = vcmp.ge.f32.partialorder %v364, 0.0
  %vm381 = vcmp.ge.f32.partialorder %v365, 0.0
  %vm382 = vcmp.ge.f32.partialorder %v366, 0.0
  %vm383 = vcmp.ge.f32.partialorder %v367, 0.0
  %vm384 = vcmp.ge.f32.partialorder %v368, 0.0
  %v385 = vmul.f32 %v353, 0.2
  %v386 = vmul.f32 %v354, 0.2
  %v387 = vmul.f32 %v355, 0.2
  %v388 = vmul.f32 %v356, 0.2
  %v389 = vmul.f32 %v357, 0.2
  %v390 = vmul.f32 %v358, 0.2
  %v391 = vmul.f32 %v359, 0.2
  %v392 = vmul.f32 %v360, 0.2
  %v393 = vmul.f32 %v361, 0.2
  %v394 = vmul.f32 %v362, 0.2
  %v395 = vmul.f32 %v363, 0.2
  %v396 = vmul.f32 %v364, 0.2
  %v397 = vmul.f32 %v365, 0.2
  %v398 = vmul.f32 %v366, 0.2
  %v399 = vmul.f32 %v367, 0.2
  %v400 = vmul.f32 %v368, 0.2
  %v401 = vsel %vm369, %v353, %v385
  %v402 = vsel %vm370, %v354, %v386
  %v403 = vsel %vm371, %v355, %v387
  %v404 = vsel %vm372, %v356, %v388
  %v405 = vsel %vm373, %v357, %v389
  %v406 = vsel %vm374, %v358, %v390
  %v407 = vsel %vm375, %v359, %v391
  %v408 = vsel %vm376, %v360, %v392
  %v409 = vsel %vm377, %v361, %v393
  %v410 = vsel %vm378, %v362, %v394
  %v411 = vsel %vm379, %v363, %v395
  %v412 = vsel %vm380, %v364, %v396
  %v413 = vsel %vm381, %v365, %v397
  %v414 = vsel %vm382, %v366, %v398
  %v415 = vsel %vm383, %v367, %v399
  %v416 = vsel %vm384, %v368, %v400
  %v417 = vlaneseq
  %v418 = vshrl.u32 %v417, 7
  %v419 = vsub.s32 2, %v418
  %v420 = vrot.slane %v43, %v419
  %422 = vbcast.lane.b32.xlu0 %v420, 256
  %v423 = vpop.permute.xlu0 %422
  %v424 = vmul.f32 %v401, %v423
  %v425 = vmul.f32 %v402, %v423
  %v426 = vmul.f32 %v403, %v423
  %v427 = vmul.f32 %v404, %v423
  %v428 = vmul.f32 %v405, %v423
  %v429 = vmul.f32 %v406, %v423
  %v430 = vmul.f32 %v407, %v423
  %v431 = vmul.f32 %v408, %v423
  %v432 = vmul.f32 %v409, %v423
  %v433 = vmul.f32 %v410, %v423
  %v434 = vmul.f32 %v411, %v423
  %v435 = vmul.f32 %v412, %v423
  %v436 = vmul.f32 %v413, %v423
  %v437 = vmul.f32 %v414, %v423
  %v438 = vmul.f32 %v415, %v423
  %v439 = vmul.f32 %v416, %v423
  %v440 = vsel %vm48, %v424, 0.0
  %v441 = vrot.slane %v440, 4
  %v442 = vadd.f32 %v440, %v441
  %v443 = vrot.slane %v442, 2
  %v444 = vadd.f32 %v442, %v443
  %v445 = vrot.slane %v444, 1
  %v446 = vadd.f32 %v444, %v445
  %v447 = vsel %vm48, %v425, 0.0
  %v448 = vrot.slane %v447, 4
  %v449 = vadd.f32 %v447, %v448
  %v450 = vrot.slane %v449, 2
  %v451 = vadd.f32 %v449, %v450
  %v452 = vrot.slane %v451, 1
  %v453 = vadd.f32 %v451, %v452
  %v454 = vsel %vm48, %v426, 0.0
  %v455 = vrot.slane %v454, 4
  %v456 = vadd.f32 %v454, %v455
  %v457 = vrot.slane %v456, 2
  %v458 = vadd.f32 %v456, %v457
  %v459 = vrot.slane %v458, 1
  %v460 = vadd.f32 %v458, %v459
  %v461 = vsel %vm48, %v427, 0.0
  %v462 = vrot.slane %v461, 4
  %v463 = vadd.f32 %v461, %v462
  %v464 = vrot.slane %v463, 2
  %v465 = vadd.f32 %v463, %v464
  %v466 = vrot.slane %v465, 1
  %v467 = vadd.f32 %v465, %v466
  %v468 = vsel %vm48, %v428, 0.0
  %v469 = vrot.slane %v468, 4
  %v470 = vadd.f32 %v468, %v469
  %v471 = vrot.slane %v470, 2
  %v472 = vadd.f32 %v470, %v471
  %v473 = vrot.slane %v472, 1
  %v474 = vadd.f32 %v472, %v473
  %v475 = vsel %vm48, %v429, 0.0
  %v476 = vrot.slane %v475, 4
  %v477 = vadd.f32 %v475, %v476
  %v478 = vrot.slane %v477, 2
  %v479 = vadd.f32 %v477, %v478
  %v480 = vrot.slane %v479, 1
  %v481 = vadd.f32 %v479, %v480
  %v482 = vsel %vm48, %v430, 0.0
  %v483 = vrot.slane %v482, 4
  %v484 = vadd.f32 %v482, %v483
  %v485 = vrot.slane %v484, 2
  %v486 = vadd.f32 %v484, %v485
  %v487 = vrot.slane %v486, 1
  %v488 = vadd.f32 %v486, %v487
  %v489 = vsel %vm48, %v431, 0.0
  %v490 = vrot.slane %v489, 4
  %v491 = vadd.f32 %v489, %v490
  %v492 = vrot.slane %v491, 2
  %v493 = vadd.f32 %v491, %v492
  %v494 = vrot.slane %v493, 1
  %v495 = vadd.f32 %v493, %v494
  %v496 = vsel %vm48, %v432, 0.0
  %v497 = vrot.slane %v496, 4
  %v498 = vadd.f32 %v496, %v497
  %v499 = vrot.slane %v498, 2
  %v500 = vadd.f32 %v498, %v499
  %v501 = vrot.slane %v500, 1
  %v502 = vadd.f32 %v500, %v501
  %v503 = vsel %vm48, %v433, 0.0
  %v504 = vrot.slane %v503, 4
  %v505 = vadd.f32 %v503, %v504
  %v506 = vrot.slane %v505, 2
  %v507 = vadd.f32 %v505, %v506
  %v508 = vrot.slane %v507, 1
  %v509 = vadd.f32 %v507, %v508
  %v510 = vsel %vm48, %v434, 0.0
  %v511 = vrot.slane %v510, 4
  %v512 = vadd.f32 %v510, %v511
  %v513 = vrot.slane %v512, 2
  %v514 = vadd.f32 %v512, %v513
  %v515 = vrot.slane %v514, 1
  %v516 = vadd.f32 %v514, %v515
  %v517 = vsel %vm48, %v435, 0.0
  %v518 = vrot.slane %v517, 4
  %v519 = vadd.f32 %v517, %v518
  %v520 = vrot.slane %v519, 2
  %v521 = vadd.f32 %v519, %v520
  %v522 = vrot.slane %v521, 1
  %v523 = vadd.f32 %v521, %v522
  %v524 = vsel %vm48, %v436, 0.0
  %v525 = vrot.slane %v524, 4
  %v526 = vadd.f32 %v524, %v525
  %v527 = vrot.slane %v526, 2
  %v528 = vadd.f32 %v526, %v527
  %v529 = vrot.slane %v528, 1
  %v530 = vadd.f32 %v528, %v529
  %v531 = vsel %vm48, %v437, 0.0
  %v532 = vrot.slane %v531, 4
  %v533 = vadd.f32 %v531, %v532
  %v534 = vrot.slane %v533, 2
  %v535 = vadd.f32 %v533, %v534
  %v536 = vrot.slane %v535, 1
  %v537 = vadd.f32 %v535, %v536
  %v538 = vsel %vm48, %v438, 0.0
  %v539 = vrot.slane %v538, 4
  %v540 = vadd.f32 %v538, %v539
  %v541 = vrot.slane %v540, 2
  %v542 = vadd.f32 %v540, %v541
  %v543 = vrot.slane %v542, 1
  %v544 = vadd.f32 %v542, %v543
  %v545 = vsel %vm48, %v439, 0.0
  %v546 = vrot.slane %v545, 4
  %v547 = vadd.f32 %v545, %v546
  %v548 = vrot.slane %v547, 2
  %v549 = vadd.f32 %v547, %v548
  %v550 = vrot.slane %v549, 1
  %v551 = vadd.f32 %v549, %v550
  %v554 = vrot.slane %v37, 1
  %v555 = vrot.slane %v37, 2
  %v556 = vrot.slane %v37, 3
  %v557 = vrot.slane %v37, 4
  %v558 = vrot.slane %v37, 5
  %v559 = vrot.slane %v37, 6
  %v560 = vrot.slane %v37, 7
  %v561 = vrot.slane %v38, 1
  %v562 = vrot.slane %v38, 2
  %v563 = vrot.slane %v38, 3
  %v564 = vrot.slane %v38, 4
  %v565 = vrot.slane %v38, 5
  %v566 = vrot.slane %v38, 6
  %v567 = vrot.slane %v38, 7
  %v584 = vadd.f32 %v446, %v37
  %v585 = vadd.f32 %v453, %v554
  %v586 = vadd.f32 %v460, %v555
  %v587 = vadd.f32 %v467, %v556
  %v588 = vadd.f32 %v474, %v557
  %v589 = vadd.f32 %v481, %v558
  %v590 = vadd.f32 %v488, %v559
  %v591 = vadd.f32 %v495, %v560
  %v592 = vadd.f32 %v502, %v38
  %v593 = vadd.f32 %v509, %v561
  %v594 = vadd.f32 %v516, %v562
  %v595 = vadd.f32 %v523, %v563
  %v596 = vadd.f32 %v530, %v564
  %v597 = vadd.f32 %v537, %v565
  %v598 = vadd.f32 %v544, %v566
  %v599 = vadd.f32 %v551, %v567
  %v616 = vrot.slane %v585, 7
  %vm617 = vcmask 1041409
  %v618 = vsel %vm617, %v616, %v584
  %v619 = vrot.slane %v586, 6
  %vm620 = vcmask 1042434
  %v621 = vsel %vm620, %v619, %v618
  %v622 = vrot.slane %v587, 5
  %vm623 = vcmask 1043459
  %v624 = vsel %vm623, %v622, %v621
  %v625 = vrot.slane %v588, 4
  %vm626 = vcmask 1044484
  %v627 = vsel %vm626, %v625, %v624
  %v628 = vrot.slane %v589, 3
  %vm629 = vcmask 1045509
  %v630 = vsel %vm629, %v628, %v627
  %v631 = vrot.slane %v590, 2
  %vm632 = vcmask 1046534
  %v633 = vsel %vm632, %v631, %v630
  %v634 = vrot.slane %v591, 1
  %vm635 = vcmask 1047559
  %v636 = vsel %vm635, %v634, %v633
  %v637 = vrot.slane %v593, 7
  %v638 = vsel %vm617, %v637, %v592
  %v639 = vrot.slane %v594, 6
  %v640 = vsel %vm620, %v639, %v638
  %v641 = vrot.slane %v595, 5
  %v642 = vsel %vm623, %v641, %v640
  %v643 = vrot.slane %v596, 4
  %v644 = vsel %vm626, %v643, %v642
  %v645 = vrot.slane %v597, 3
  %v646 = vsel %vm629, %v645, %v644
  %v647 = vrot.slane %v598, 2
  %v648 = vsel %vm632, %v647, %v646
  %v649 = vrot.slane %v599, 1
  %v650 = vsel %vm635, %v649, %v648
  %v653 = vsel %vm48, %v636, -inf
  %654 = vmax.xlane.f32.xlu0 %v653
  %v655 = vpop.xlane.xlu0 %654
  %v656 = vsel %vm48, %v650, -inf
  %657 = vmax.xlane.f32.xlu0 %v656
  %v658 = vpop.xlane.xlu0 %657
  %v661 = vrot.slane %v655, 1
  %v662 = vrot.slane %v655, 2
  %v663 = vrot.slane %v655, 3
  %v664 = vrot.slane %v655, 4
  %v665 = vrot.slane %v655, 5
  %v666 = vrot.slane %v655, 6
  %v667 = vrot.slane %v655, 7
  %v668 = vrot.slane %v658, 1
  %v669 = vrot.slane %v658, 2
  %v670 = vrot.slane %v658, 3
  %v671 = vrot.slane %v658, 4
  %v672 = vrot.slane %v658, 5
  %v673 = vrot.slane %v658, 6
  %v674 = vrot.slane %v658, 7
  %v691 = vsub.f32 %v584, %v655
  %v692 = vsub.f32 %v585, %v661
  %v693 = vsub.f32 %v586, %v662
  %v694 = vsub.f32 %v587, %v663
  %v695 = vsub.f32 %v588, %v664
  %v696 = vsub.f32 %v589, %v665
  %v697 = vsub.f32 %v590, %v666
  %v698 = vsub.f32 %v591, %v667
  %v699 = vsub.f32 %v592, %v658
  %v700 = vsub.f32 %v593, %v668
  %v701 = vsub.f32 %v594, %v669
  %v702 = vsub.f32 %v595, %v670
  %v703 = vsub.f32 %v596, %v671
  %v704 = vsub.f32 %v597, %v672
  %v705 = vsub.f32 %v598, %v673
  %v706 = vsub.f32 %v599, %v674
  %v707 = vmul.f32 %v691, 1.442695
  %v708 = vpow.pop %v707
  %v709 = vmul.f32 %v692, 1.442695
  %v710 = vpow.pop %v709
  %v711 = vmul.f32 %v693, 1.442695
  %v712 = vpow.pop %v711
  %v713 = vmul.f32 %v694, 1.442695
  %v714 = vpow.pop %v713
  %v715 = vmul.f32 %v695, 1.442695
  %v716 = vpow.pop %v715
  %v717 = vmul.f32 %v696, 1.442695
  %v718 = vpow.pop %v717
  %v719 = vmul.f32 %v697, 1.442695
  %v720 = vpow.pop %v719
  %v721 = vmul.f32 %v698, 1.442695
  %v722 = vpow.pop %v721
  %v723 = vmul.f32 %v699, 1.442695
  %v724 = vpow.pop %v723
  %v725 = vmul.f32 %v700, 1.442695
  %v726 = vpow.pop %v725
  %v727 = vmul.f32 %v701, 1.442695
  %v728 = vpow.pop %v727
  %v729 = vmul.f32 %v702, 1.442695
  %v730 = vpow.pop %v729
  %v731 = vmul.f32 %v703, 1.442695
  %v732 = vpow.pop %v731
  %v733 = vmul.f32 %v704, 1.442695
  %v734 = vpow.pop %v733
  %v735 = vmul.f32 %v705, 1.442695
  %v736 = vpow.pop %v735
  %v737 = vmul.f32 %v706, 1.442695
  %v738 = vpow.pop %v737
  %v741 = vrot.slane %v33, 1
  %v742 = vrot.slane %v33, 2
  %v743 = vrot.slane %v33, 3
  %v744 = vrot.slane %v33, 4
  %v745 = vrot.slane %v33, 5
  %v746 = vrot.slane %v33, 6
  %v747 = vrot.slane %v33, 7
  %v748 = vrot.slane %v34, 1
  %v749 = vrot.slane %v34, 2
  %v750 = vrot.slane %v34, 3
  %v751 = vrot.slane %v34, 4
  %v752 = vrot.slane %v34, 5
  %v753 = vrot.slane %v34, 6
  %v754 = vrot.slane %v34, 7
  %v771 = vmul.f32 %v708, %v33
  %v772 = vmul.f32 %v710, %v741
  %v773 = vmul.f32 %v712, %v742
  %v774 = vmul.f32 %v714, %v743
  %v775 = vmul.f32 %v716, %v744
  %v776 = vmul.f32 %v718, %v745
  %v777 = vmul.f32 %v720, %v746
  %v778 = vmul.f32 %v722, %v747
  %v779 = vmul.f32 %v724, %v34
  %v780 = vmul.f32 %v726, %v748
  %v781 = vmul.f32 %v728, %v749
  %v782 = vmul.f32 %v730, %v750
  %v783 = vmul.f32 %v732, %v751
  %v784 = vmul.f32 %v734, %v752
  %v785 = vmul.f32 %v736, %v753
  %v786 = vmul.f32 %v738, %v754
  %v803 = vrot.slane %v772, 7
  %v804 = vsel %vm617, %v803, %v771
  %v805 = vrot.slane %v773, 6
  %v806 = vsel %vm620, %v805, %v804
  %v807 = vrot.slane %v774, 5
  %v808 = vsel %vm623, %v807, %v806
  %v809 = vrot.slane %v775, 4
  %v810 = vsel %vm626, %v809, %v808
  %v811 = vrot.slane %v776, 3
  %v812 = vsel %vm629, %v811, %v810
  %v813 = vrot.slane %v777, 2
  %v814 = vsel %vm632, %v813, %v812
  %v815 = vrot.slane %v778, 1
  %v816 = vsel %vm635, %v815, %v814
  %v817 = vrot.slane %v780, 7
  %v818 = vsel %vm617, %v817, %v779
  %v819 = vrot.slane %v781, 6
  %v820 = vsel %vm620, %v819, %v818
  %v821 = vrot.slane %v782, 5
  %v822 = vsel %vm623, %v821, %v820
  %v823 = vrot.slane %v783, 4
  %v824 = vsel %vm626, %v823, %v822
  %v825 = vrot.slane %v784, 3
  %v826 = vsel %vm629, %v825, %v824
  %v827 = vrot.slane %v785, 2
  %v828 = vsel %vm632, %v827, %v826
  %v829 = vrot.slane %v786, 1
  %v830 = vsel %vm635, %v829, %v828
  %v833 = vsel %vm48, %v816, 0.0
  %834 = vadd.xlane.f32.xlu0 %v833
  %v835 = vpop.xlane.xlu0 %834
  %v836 = vsel %vm48, %v830, 0.0
  %837 = vadd.xlane.f32.xlu0 %v836
  %v838 = vpop.xlane.xlu0 %837
  %v839 = vrcp.pop %v835
  %v840 = vrcp.pop %v838
  %v843 = vrot.slane %v839, 1
  %v844 = vrot.slane %v839, 2
  %v845 = vrot.slane %v839, 3
  %v846 = vrot.slane %v839, 4
  %v847 = vrot.slane %v839, 5
  %v848 = vrot.slane %v839, 6
  %v849 = vrot.slane %v839, 7
  %v850 = vrot.slane %v840, 1
  %v851 = vrot.slane %v840, 2
  %v852 = vrot.slane %v840, 3
  %v853 = vrot.slane %v840, 4
  %v854 = vrot.slane %v840, 5
  %v855 = vrot.slane %v840, 6
  %v856 = vrot.slane %v840, 7
  %v873 = vmul.f32 %v771, %v839
  %v874 = vmul.f32 %v772, %v843
  %v875 = vmul.f32 %v773, %v844
  %v876 = vmul.f32 %v774, %v845
  %v877 = vmul.f32 %v775, %v846
  %v878 = vmul.f32 %v776, %v847
  %v879 = vmul.f32 %v777, %v848
  %v880 = vmul.f32 %v778, %v849
  %v881 = vmul.f32 %v779, %v840
  %v882 = vmul.f32 %v780, %v850
  %v883 = vmul.f32 %v781, %v851
  %v884 = vmul.f32 %v782, %v852
  %v885 = vmul.f32 %v783, %v853
  %v886 = vmul.f32 %v784, %v854
  %v887 = vmul.f32 %v785, %v855
  %v888 = vmul.f32 %v786, %v856
  %v889 = vlaneseq
  %v890 = vshrl.u32 %v889, 7
  %v891 = vsub.s32 3, %v890
  %v892 = vrot.slane %v43, %v891
  %v909 = vrot.slane %v874, 7
  %v910 = vsel %vm617, %v909, %v873
  %v911 = vrot.slane %v875, 6
  %v912 = vsel %vm620, %v911, %v910
  %v913 = vrot.slane %v876, 5
  %v914 = vsel %vm623, %v913, %v912
  %v915 = vrot.slane %v877, 4
  %v916 = vsel %vm626, %v915, %v914
  %v917 = vrot.slane %v878, 3
  %v918 = vsel %vm629, %v917, %v916
  %v919 = vrot.slane %v879, 2
  %v920 = vsel %vm632, %v919, %v918
  %v921 = vrot.slane %v880, 1
  %v922 = vsel %vm635, %v921, %v920
  %v923 = vrot.slane %v882, 7
  %v924 = vsel %vm617, %v923, %v881
  %v925 = vrot.slane %v883, 6
  %v926 = vsel %vm620, %v925, %v924
  %v927 = vrot.slane %v884, 5
  %v928 = vsel %vm623, %v927, %v926
  %v929 = vrot.slane %v885, 4
  %v930 = vsel %vm626, %v929, %v928
  %v931 = vrot.slane %v886, 3
  %v932 = vsel %vm629, %v931, %v930
  %v933 = vrot.slane %v887, 2
  %v934 = vsel %vm632, %v933, %v932
  %v935 = vrot.slane %v888, 1
  %v936 = vsel %vm635, %v935, %v934
  %v937 = vsel %vm48, %v922, 0
  %v939 = vsel %vm48, %v936, 0
  %941 = vmatprep.subr.mxu0 0.0
  %942 = vmatpush1.msra.mxu0 %v122
  %943 = vmatprep.subr.mxu0 0.0
  %944 = vmatpush1.msra.mxu0 %v127
  %945 = vmatprep.subr.mxu0 0.0
  %946 = vmatpush1.msra.mxu0 0.0
  %947 = vmatprep.subr.mxu0 0.0
  %948 = vmatpush1.msra.mxu0 0.0
  %949 = vmatprep.subr.mxu0 0.0
  %950 = vmatpush1.msra.mxu0 0.0
  %951 = vmatprep.subr.mxu0 0.0
  %952 = vmatpush1.msra.mxu0 0.0
  %953 = vmatprep.subr.mxu0 0.0
  %954 = vmatpush1.msra.mxu0 0.0
  %955 = vmatprep.subr.mxu0 0.0
  %956 = vmatpush1.msra.mxu0 0.0
  %957 = vmatprep.subr.mxu0 0.0
  %958 = vmatpush1.msra.mxu0 0.0
  %959 = vmatprep.subr.mxu0 0.0
  %960 = vmatpush1.msra.mxu0 0.0
  %961 = vmatprep.subr.mxu0 0.0
  %962 = vmatpush1.msra.mxu0 0.0
  %963 = vmatprep.subr.mxu0 0.0
  %964 = vmatpush1.msra.mxu0 0.0
  %965 = vmatprep.subr.mxu0 0.0
  %966 = vmatpush1.msra.mxu0 0.0
  %967 = vmatprep.subr.mxu0 0.0
  %968 = vmatpush1.msra.mxu0 0.0
  %969 = vmatprep.subr.mxu0 0.0
  %970 = vmatpush1.msra.mxu0 0.0
  %971 = vmatprep.subr.mxu0 0.0
  %972 = vmatpush1.msra.mxu0 0.0
  %973 = vmatprep.subr.mxu0 0.0
  %974 = vmatpush1.msra.mxu0 0.0
  %975 = vmatprep.subr.mxu0 0.0
  %976 = vmatpush1.msra.mxu0 0.0
  %977 = vmatprep.subr.mxu0 0.0
  %978 = vmatpush1.msra.mxu0 0.0
  %979 = vmatprep.subr.mxu0 0.0
  %980 = vmatpush1.msra.mxu0 0.0
  %981 = vmatprep.subr.mxu0 0.0
  %982 = vmatpush1.msra.mxu0 0.0
  %983 = vmatprep.subr.mxu0 0.0
  %984 = vmatpush1.msra.mxu0 0.0
  %985 = vmatprep.subr.mxu0 0.0
  %986 = vmatpush1.msra.mxu0 0.0
  %987 = vmatprep.subr.mxu0 0.0
  %988 = vmatpush1.msra.mxu0 0.0
  %989 = vmatprep.subr.mxu0 0.0
  %990 = vmatpush1.msra.mxu0 0.0
  %991 = vmatprep.subr.mxu0 0.0
  %992 = vmatpush1.msra.mxu0 0.0
  %993 = vmatprep.subr.mxu0 0.0
  %994 = vmatpush1.msra.mxu0 0.0
  %995 = vmatprep.subr.mxu0 0.0
  %996 = vmatpush1.msra.mxu0 0.0
  %997 = vmatprep.subr.mxu0 0.0
  %998 = vmatpush1.msra.mxu0 0.0
  %999 = vmatprep.subr.mxu0 0.0
  %1000 = vmatpush1.msra.mxu0 0.0
  %1001 = vmatprep.subr.mxu0 0.0
  %1002 = vmatpush1.msra.mxu0 0.0
  %1003 = vmatprep.subr.mxu0 0.0
  %1004 = vmatpush1.msra.mxu0 0.0
  %1005 = vmatprep.mubr.f32.mxu0 0.0
  %1006 = vmatmul.mubr.f32.gmra.mrb[0].mxu0 %v937
  %v1007 = vpop.f32.mrb[0].mxu0
  %v1008 = vadd.f32 %v892, %v1007
  %v1009 = vpop.f32.mrb[0].mxu0
  %1010 = vmatprep.mubr.f32.mxu0 0.0
  %1011 = vmatmul.mubr.f32.gmra.mrb[0].mxu0 %v939
  %v1012 = vpop.f32.mrb[0].mxu0
  %v1013 = vadd.f32 %v892, %v1012
  %v1014 = vpop.f32.mrb[0].mxu0
  %1015 = vdwg.mxu0
  %s1017 = sor.u32 256, 8
  %1018 = vbcast.lane.b32.xlu0 %v244, %s1017
  %v1019 = vpop.permute.xlu0 %1018
  %s1021 = sor.u32 256, 8
  %1022 = vbcast.lane.b32.xlu0 %v251, %s1021
  %v1023 = vpop.permute.xlu0 %1022
  %s1025 = sor.u32 256, 8
  %1026 = vbcast.lane.b32.xlu0 %v258, %s1025
  %v1027 = vpop.permute.xlu0 %1026
  %s1029 = sor.u32 256, 8
  %1030 = vbcast.lane.b32.xlu0 %v265, %s1029
  %v1031 = vpop.permute.xlu0 %1030
  %s1033 = sor.u32 256, 8
  %1034 = vbcast.lane.b32.xlu0 %v272, %s1033
  %v1035 = vpop.permute.xlu0 %1034
  %s1037 = sor.u32 256, 8
  %1038 = vbcast.lane.b32.xlu0 %v279, %s1037
  %v1039 = vpop.permute.xlu0 %1038
  %s1041 = sor.u32 256, 8
  %1042 = vbcast.lane.b32.xlu0 %v286, %s1041
  %v1043 = vpop.permute.xlu0 %1042
  %s1045 = sor.u32 256, 8
  %1046 = vbcast.lane.b32.xlu0 %v293, %s1045
  %v1047 = vpop.permute.xlu0 %1046
  %s1049 = sor.u32 256, 8
  %1050 = vbcast.lane.b32.xlu0 %v300, %s1049
  %v1051 = vpop.permute.xlu0 %1050
  %s1053 = sor.u32 256, 8
  %1054 = vbcast.lane.b32.xlu0 %v307, %s1053
  %v1055 = vpop.permute.xlu0 %1054
  %s1057 = sor.u32 256, 8
  %1058 = vbcast.lane.b32.xlu0 %v314, %s1057
  %v1059 = vpop.permute.xlu0 %1058
  %s1061 = sor.u32 256, 8
  %1062 = vbcast.lane.b32.xlu0 %v321, %s1061
  %v1063 = vpop.permute.xlu0 %1062
  %s1065 = sor.u32 256, 8
  %1066 = vbcast.lane.b32.xlu0 %v328, %s1065
  %v1067 = vpop.permute.xlu0 %1066
  %s1069 = sor.u32 256, 8
  %1070 = vbcast.lane.b32.xlu0 %v335, %s1069
  %v1071 = vpop.permute.xlu0 %1070
  %s1073 = sor.u32 256, 8
  %1074 = vbcast.lane.b32.xlu0 %v342, %s1073
  %v1075 = vpop.permute.xlu0 %1074
  %s1077 = sor.u32 256, 8
  %1078 = vbcast.lane.b32.xlu0 %v349, %s1077
  %v1079 = vpop.permute.xlu0 %1078
  %v1080 = vadd.f32 %v1019, %v226
  %v1081 = vadd.f32 %v1023, %v226
  %v1082 = vadd.f32 %v1027, %v226
  %v1083 = vadd.f32 %v1031, %v226
  %v1084 = vadd.f32 %v1035, %v226
  %v1085 = vadd.f32 %v1039, %v226
  %v1086 = vadd.f32 %v1043, %v226
  %v1087 = vadd.f32 %v1047, %v226
  %v1088 = vadd.f32 %v1051, %v226
  %v1089 = vadd.f32 %v1055, %v226
  %v1090 = vadd.f32 %v1059, %v226
  %v1091 = vadd.f32 %v1063, %v226
  %v1092 = vadd.f32 %v1067, %v226
  %v1093 = vadd.f32 %v1071, %v226
  %v1094 = vadd.f32 %v1075, %v226
  %v1095 = vadd.f32 %v1079, %v226
  %vm1096 = vcmp.ge.f32.partialorder %v1080, 0.0
  %vm1097 = vcmp.ge.f32.partialorder %v1081, 0.0
  %vm1098 = vcmp.ge.f32.partialorder %v1082, 0.0
  %vm1099 = vcmp.ge.f32.partialorder %v1083, 0.0
  %vm1100 = vcmp.ge.f32.partialorder %v1084, 0.0
  %vm1101 = vcmp.ge.f32.partialorder %v1085, 0.0
  %vm1102 = vcmp.ge.f32.partialorder %v1086, 0.0
  %vm1103 = vcmp.ge.f32.partialorder %v1087, 0.0
  %vm1104 = vcmp.ge.f32.partialorder %v1088, 0.0
  %vm1105 = vcmp.ge.f32.partialorder %v1089, 0.0
  %vm1106 = vcmp.ge.f32.partialorder %v1090, 0.0
  %vm1107 = vcmp.ge.f32.partialorder %v1091, 0.0
  %vm1108 = vcmp.ge.f32.partialorder %v1092, 0.0
  %vm1109 = vcmp.ge.f32.partialorder %v1093, 0.0
  %vm1110 = vcmp.ge.f32.partialorder %v1094, 0.0
  %vm1111 = vcmp.ge.f32.partialorder %v1095, 0.0
  %v1112 = vmul.f32 %v1080, 0.2
  %v1113 = vmul.f32 %v1081, 0.2
  %v1114 = vmul.f32 %v1082, 0.2
  %v1115 = vmul.f32 %v1083, 0.2
  %v1116 = vmul.f32 %v1084, 0.2
  %v1117 = vmul.f32 %v1085, 0.2
  %v1118 = vmul.f32 %v1086, 0.2
  %v1119 = vmul.f32 %v1087, 0.2
  %v1120 = vmul.f32 %v1088, 0.2
  %v1121 = vmul.f32 %v1089, 0.2
  %v1122 = vmul.f32 %v1090, 0.2
  %v1123 = vmul.f32 %v1091, 0.2
  %v1124 = vmul.f32 %v1092, 0.2
  %v1125 = vmul.f32 %v1093, 0.2
  %v1126 = vmul.f32 %v1094, 0.2
  %v1127 = vmul.f32 %v1095, 0.2
  %v1128 = vsel %vm1096, %v1080, %v1112
  %v1129 = vsel %vm1097, %v1081, %v1113
  %v1130 = vsel %vm1098, %v1082, %v1114
  %v1131 = vsel %vm1099, %v1083, %v1115
  %v1132 = vsel %vm1100, %v1084, %v1116
  %v1133 = vsel %vm1101, %v1085, %v1117
  %v1134 = vsel %vm1102, %v1086, %v1118
  %v1135 = vsel %vm1103, %v1087, %v1119
  %v1136 = vsel %vm1104, %v1088, %v1120
  %v1137 = vsel %vm1105, %v1089, %v1121
  %v1138 = vsel %vm1106, %v1090, %v1122
  %v1139 = vsel %vm1107, %v1091, %v1123
  %v1140 = vsel %vm1108, %v1092, %v1124
  %v1141 = vsel %vm1109, %v1093, %v1125
  %v1142 = vsel %vm1110, %v1094, %v1126
  %v1143 = vsel %vm1111, %v1095, %v1127
  %s1145 = sor.u32 256, 8
  %1146 = vbcast.lane.b32.xlu0 %v420, %s1145
  %v1147 = vpop.permute.xlu0 %1146
  %v1148 = vmul.f32 %v1128, %v1147
  %v1149 = vmul.f32 %v1129, %v1147
  %v1150 = vmul.f32 %v1130, %v1147
  %v1151 = vmul.f32 %v1131, %v1147
  %v1152 = vmul.f32 %v1132, %v1147
  %v1153 = vmul.f32 %v1133, %v1147
  %v1154 = vmul.f32 %v1134, %v1147
  %v1155 = vmul.f32 %v1135, %v1147
  %v1156 = vmul.f32 %v1136, %v1147
  %v1157 = vmul.f32 %v1137, %v1147
  %v1158 = vmul.f32 %v1138, %v1147
  %v1159 = vmul.f32 %v1139, %v1147
  %v1160 = vmul.f32 %v1140, %v1147
  %v1161 = vmul.f32 %v1141, %v1147
  %v1162 = vmul.f32 %v1142, %v1147
  %v1163 = vmul.f32 %v1143, %v1147
  %v1164 = vsel %vm48, %v1148, 0.0
  %v1165 = vrot.slane %v1164, 4
  %v1166 = vadd.f32 %v1164, %v1165
  %v1167 = vrot.slane %v1166, 2
  %v1168 = vadd.f32 %v1166, %v1167
  %v1169 = vrot.slane %v1168, 1
  %v1170 = vadd.f32 %v1168, %v1169
  %v1171 = vsel %vm48, %v1149, 0.0
  %v1172 = vrot.slane %v1171, 4
  %v1173 = vadd.f32 %v1171, %v1172
  %v1174 = vrot.slane %v1173, 2
  %v1175 = vadd.f32 %v1173, %v1174
  %v1176 = vrot.slane %v1175, 1
  %v1177 = vadd.f32 %v1175, %v1176
  %v1178 = vsel %vm48, %v1150, 0.0
  %v1179 = vrot.slane %v1178, 4
  %v1180 = vadd.f32 %v1178, %v1179
  %v1181 = vrot.slane %v1180, 2
  %v1182 = vadd.f32 %v1180, %v1181
  %v1183 = vrot.slane %v1182, 1
  %v1184 = vadd.f32 %v1182, %v1183
  %v1185 = vsel %vm48, %v1151, 0.0
  %v1186 = vrot.slane %v1185, 4
  %v1187 = vadd.f32 %v1185, %v1186
  %v1188 = vrot.slane %v1187, 2
  %v1189 = vadd.f32 %v1187, %v1188
  %v1190 = vrot.slane %v1189, 1
  %v1191 = vadd.f32 %v1189, %v1190
  %v1192 = vsel %vm48, %v1152, 0.0
  %v1193 = vrot.slane %v1192, 4
  %v1194 = vadd.f32 %v1192, %v1193
  %v1195 = vrot.slane %v1194, 2
  %v1196 = vadd.f32 %v1194, %v1195
  %v1197 = vrot.slane %v1196, 1
  %v1198 = vadd.f32 %v1196, %v1197
  %v1199 = vsel %vm48, %v1153, 0.0
  %v1200 = vrot.slane %v1199, 4
  %v1201 = vadd.f32 %v1199, %v1200
  %v1202 = vrot.slane %v1201, 2
  %v1203 = vadd.f32 %v1201, %v1202
  %v1204 = vrot.slane %v1203, 1
  %v1205 = vadd.f32 %v1203, %v1204
  %v1206 = vsel %vm48, %v1154, 0.0
  %v1207 = vrot.slane %v1206, 4
  %v1208 = vadd.f32 %v1206, %v1207
  %v1209 = vrot.slane %v1208, 2
  %v1210 = vadd.f32 %v1208, %v1209
  %v1211 = vrot.slane %v1210, 1
  %v1212 = vadd.f32 %v1210, %v1211
  %v1213 = vsel %vm48, %v1155, 0.0
  %v1214 = vrot.slane %v1213, 4
  %v1215 = vadd.f32 %v1213, %v1214
  %v1216 = vrot.slane %v1215, 2
  %v1217 = vadd.f32 %v1215, %v1216
  %v1218 = vrot.slane %v1217, 1
  %v1219 = vadd.f32 %v1217, %v1218
  %v1220 = vsel %vm48, %v1156, 0.0
  %v1221 = vrot.slane %v1220, 4
  %v1222 = vadd.f32 %v1220, %v1221
  %v1223 = vrot.slane %v1222, 2
  %v1224 = vadd.f32 %v1222, %v1223
  %v1225 = vrot.slane %v1224, 1
  %v1226 = vadd.f32 %v1224, %v1225
  %v1227 = vsel %vm48, %v1157, 0.0
  %v1228 = vrot.slane %v1227, 4
  %v1229 = vadd.f32 %v1227, %v1228
  %v1230 = vrot.slane %v1229, 2
  %v1231 = vadd.f32 %v1229, %v1230
  %v1232 = vrot.slane %v1231, 1
  %v1233 = vadd.f32 %v1231, %v1232
  %v1234 = vsel %vm48, %v1158, 0.0
  %v1235 = vrot.slane %v1234, 4
  %v1236 = vadd.f32 %v1234, %v1235
  %v1237 = vrot.slane %v1236, 2
  %v1238 = vadd.f32 %v1236, %v1237
  %v1239 = vrot.slane %v1238, 1
  %v1240 = vadd.f32 %v1238, %v1239
  %v1241 = vsel %vm48, %v1159, 0.0
  %v1242 = vrot.slane %v1241, 4
  %v1243 = vadd.f32 %v1241, %v1242
  %v1244 = vrot.slane %v1243, 2
  %v1245 = vadd.f32 %v1243, %v1244
  %v1246 = vrot.slane %v1245, 1
  %v1247 = vadd.f32 %v1245, %v1246
  %v1248 = vsel %vm48, %v1160, 0.0
  %v1249 = vrot.slane %v1248, 4
  %v1250 = vadd.f32 %v1248, %v1249
  %v1251 = vrot.slane %v1250, 2
  %v1252 = vadd.f32 %v1250, %v1251
  %v1253 = vrot.slane %v1252, 1
  %v1254 = vadd.f32 %v1252, %v1253
  %v1255 = vsel %vm48, %v1161, 0.0
  %v1256 = vrot.slane %v1255, 4
  %v1257 = vadd.f32 %v1255, %v1256
  %v1258 = vrot.slane %v1257, 2
  %v1259 = vadd.f32 %v1257, %v1258
  %v1260 = vrot.slane %v1259, 1
  %v1261 = vadd.f32 %v1259, %v1260
  %v1262 = vsel %vm48, %v1162, 0.0
  %v1263 = vrot.slane %v1262, 4
  %v1264 = vadd.f32 %v1262, %v1263
  %v1265 = vrot.slane %v1264, 2
  %v1266 = vadd.f32 %v1264, %v1265
  %v1267 = vrot.slane %v1266, 1
  %v1268 = vadd.f32 %v1266, %v1267
  %v1269 = vsel %vm48, %v1163, 0.0
  %v1270 = vrot.slane %v1269, 4
  %v1271 = vadd.f32 %v1269, %v1270
  %v1272 = vrot.slane %v1271, 2
  %v1273 = vadd.f32 %v1271, %v1272
  %v1274 = vrot.slane %v1273, 1
  %v1275 = vadd.f32 %v1273, %v1274
  %v1276 = vadd.f32 %v1170, %v37
  %v1277 = vadd.f32 %v1177, %v554
  %v1278 = vadd.f32 %v1184, %v555
  %v1279 = vadd.f32 %v1191, %v556
  %v1280 = vadd.f32 %v1198, %v557
  %v1281 = vadd.f32 %v1205, %v558
  %v1282 = vadd.f32 %v1212, %v559
  %v1283 = vadd.f32 %v1219, %v560
  %v1284 = vadd.f32 %v1226, %v38
  %v1285 = vadd.f32 %v1233, %v561
  %v1286 = vadd.f32 %v1240, %v562
  %v1287 = vadd.f32 %v1247, %v563
  %v1288 = vadd.f32 %v1254, %v564
  %v1289 = vadd.f32 %v1261, %v565
  %v1290 = vadd.f32 %v1268, %v566
  %v1291 = vadd.f32 %v1275, %v567
  %v1308 = vrot.slane %v1277, 7
  %v1309 = vsel %vm617, %v1308, %v1276
  %v1310 = vrot.slane %v1278, 6
  %v1311 = vsel %vm620, %v1310, %v1309
  %v1312 = vrot.slane %v1279, 5
  %v1313 = vsel %vm623, %v1312, %v1311
  %v1314 = vrot.slane %v1280, 4
  %v1315 = vsel %vm626, %v1314, %v1313
  %v1316 = vrot.slane %v1281, 3
  %v1317 = vsel %vm629, %v1316, %v1315
  %v1318 = vrot.slane %v1282, 2
  %v1319 = vsel %vm632, %v1318, %v1317
  %v1320 = vrot.slane %v1283, 1
  %v1321 = vsel %vm635, %v1320, %v1319
  %v1322 = vrot.slane %v1285, 7
  %v1323 = vsel %vm617, %v1322, %v1284
  %v1324 = vrot.slane %v1286, 6
  %v1325 = vsel %vm620, %v1324, %v1323
  %v1326 = vrot.slane %v1287, 5
  %v1327 = vsel %vm623, %v1326, %v1325
  %v1328 = vrot.slane %v1288, 4
  %v1329 = vsel %vm626, %v1328, %v1327
  %v1330 = vrot.slane %v1289, 3
  %v1331 = vsel %vm629, %v1330, %v1329
  %v1332 = vrot.slane %v1290, 2
  %v1333 = vsel %vm632, %v1332, %v1331
  %v1334 = vrot.slane %v1291, 1
  %v1335 = vsel %vm635, %v1334, %v1333
  %v1338 = vsel %vm48, %v1321, -inf
  %1339 = vmax.xlane.f32.xlu0 %v1338
  %v1340 = vpop.xlane.xlu0 %1339
  %v1341 = vsel %vm48, %v1335, -inf
  %1342 = vmax.xlane.f32.xlu0 %v1341
  %v1343 = vpop.xlane.xlu0 %1342
  %v1346 = vrot.slane %v1340, 1
  %v1347 = vrot.slane %v1340, 2
  %v1348 = vrot.slane %v1340, 3
  %v1349 = vrot.slane %v1340, 4
  %v1350 = vrot.slane %v1340, 5
  %v1351 = vrot.slane %v1340, 6
  %v1352 = vrot.slane %v1340, 7
  %v1353 = vrot.slane %v1343, 1
  %v1354 = vrot.slane %v1343, 2
  %v1355 = vrot.slane %v1343, 3
  %v1356 = vrot.slane %v1343, 4
  %v1357 = vrot.slane %v1343, 5
  %v1358 = vrot.slane %v1343, 6
  %v1359 = vrot.slane %v1343, 7
  %v1376 = vsub.f32 %v1276, %v1340
  %v1377 = vsub.f32 %v1277, %v1346
  %v1378 = vsub.f32 %v1278, %v1347
  %v1379 = vsub.f32 %v1279, %v1348
  %v1380 = vsub.f32 %v1280, %v1349
  %v1381 = vsub.f32 %v1281, %v1350
  %v1382 = vsub.f32 %v1282, %v1351
  %v1383 = vsub.f32 %v1283, %v1352
  %v1384 = vsub.f32 %v1284, %v1343
  %v1385 = vsub.f32 %v1285, %v1353
  %v1386 = vsub.f32 %v1286, %v1354
  %v1387 = vsub.f32 %v1287, %v1355
  %v1388 = vsub.f32 %v1288, %v1356
  %v1389 = vsub.f32 %v1289, %v1357
  %v1390 = vsub.f32 %v1290, %v1358
  %v1391 = vsub.f32 %v1291, %v1359
  %v1392 = vmul.f32 %v1376, 1.442695
  %v1393 = vpow.pop %v1392
  %v1394 = vmul.f32 %v1377, 1.442695
  %v1395 = vpow.pop %v1394
  %v1396 = vmul.f32 %v1378, 1.442695
  %v1397 = vpow.pop %v1396
  %v1398 = vmul.f32 %v1379, 1.442695
  %v1399 = vpow.pop %v1398
  %v1400 = vmul.f32 %v1380, 1.442695
  %v1401 = vpow.pop %v1400
  %v1402 = vmul.f32 %v1381, 1.442695
  %v1403 = vpow.pop %v1402
  %v1404 = vmul.f32 %v1382, 1.442695
  %v1405 = vpow.pop %v1404
  %v1406 = vmul.f32 %v1383, 1.442695
  %v1407 = vpow.pop %v1406
  %v1408 = vmul.f32 %v1384, 1.442695
  %v1409 = vpow.pop %v1408
  %v1410 = vmul.f32 %v1385, 1.442695
  %v1411 = vpow.pop %v1410
  %v1412 = vmul.f32 %v1386, 1.442695
  %v1413 = vpow.pop %v1412
  %v1414 = vmul.f32 %v1387, 1.442695
  %v1415 = vpow.pop %v1414
  %v1416 = vmul.f32 %v1388, 1.442695
  %v1417 = vpow.pop %v1416
  %v1418 = vmul.f32 %v1389, 1.442695
  %v1419 = vpow.pop %v1418
  %v1420 = vmul.f32 %v1390, 1.442695
  %v1421 = vpow.pop %v1420
  %v1422 = vmul.f32 %v1391, 1.442695
  %v1423 = vpow.pop %v1422
  %v1424 = vmul.f32 %v1393, %v33
  %v1425 = vmul.f32 %v1395, %v741
  %v1426 = vmul.f32 %v1397, %v742
  %v1427 = vmul.f32 %v1399, %v743
  %v1428 = vmul.f32 %v1401, %v744
  %v1429 = vmul.f32 %v1403, %v745
  %v1430 = vmul.f32 %v1405, %v746
  %v1431 = vmul.f32 %v1407, %v747
  %v1432 = vmul.f32 %v1409, %v34
  %v1433 = vmul.f32 %v1411, %v748
  %v1434 = vmul.f32 %v1413, %v749
  %v1435 = vmul.f32 %v1415, %v750
  %v1436 = vmul.f32 %v1417, %v751
  %v1437 = vmul.f32 %v1419, %v752
  %v1438 = vmul.f32 %v1421, %v753
  %v1439 = vmul.f32 %v1423, %v754
  %v1456 = vrot.slane %v1425, 7
  %v1457 = vsel %vm617, %v1456, %v1424
  %v1458 = vrot.slane %v1426, 6
  %v1459 = vsel %vm620, %v1458, %v1457
  %v1460 = vrot.slane %v1427, 5
  %v1461 = vsel %vm623, %v1460, %v1459
  %v1462 = vrot.slane %v1428, 4
  %v1463 = vsel %vm626, %v1462, %v1461
  %v1464 = vrot.slane %v1429, 3
  %v1465 = vsel %vm629, %v1464, %v1463
  %v1466 = vrot.slane %v1430, 2
  %v1467 = vsel %vm632, %v1466, %v1465
  %v1468 = vrot.slane %v1431, 1
  %v1469 = vsel %vm635, %v1468, %v1467
  %v1470 = vrot.slane %v1433, 7
  %v1471 = vsel %vm617, %v1470, %v1432
  %v1472 = vrot.slane %v1434, 6
  %v1473 = vsel %vm620, %v1472, %v1471
  %v1474 = vrot.slane %v1435, 5
  %v1475 = vsel %vm623, %v1474, %v1473
  %v1476 = vrot.slane %v1436, 4
  %v1477 = vsel %vm626, %v1476, %v1475
  %v1478 = vrot.slane %v1437, 3
  %v1479 = vsel %vm629, %v1478, %v1477
  %v1480 = vrot.slane %v1438, 2
  %v1481 = vsel %vm632, %v1480, %v1479
  %v1482 = vrot.slane %v1439, 1
  %v1483 = vsel %vm635, %v1482, %v1481
  %v1486 = vsel %vm48, %v1469, 0.0
  %1487 = vadd.xlane.f32.xlu0 %v1486
  %v1488 = vpop.xlane.xlu0 %1487
  %v1489 = vsel %vm48, %v1483, 0.0
  %1490 = vadd.xlane.f32.xlu0 %v1489
  %v1491 = vpop.xlane.xlu0 %1490
  %v1492 = vrcp.pop %v1488
  %v1493 = vrcp.pop %v1491
  %v1496 = vrot.slane %v1492, 1
  %v1497 = vrot.slane %v1492, 2
  %v1498 = vrot.slane %v1492, 3
  %v1499 = vrot.slane %v1492, 4
  %v1500 = vrot.slane %v1492, 5
  %v1501 = vrot.slane %v1492, 6
  %v1502 = vrot.slane %v1492, 7
  %v1503 = vrot.slane %v1493, 1
  %v1504 = vrot.slane %v1493, 2
  %v1505 = vrot.slane %v1493, 3
  %v1506 = vrot.slane %v1493, 4
  %v1507 = vrot.slane %v1493, 5
  %v1508 = vrot.slane %v1493, 6
  %v1509 = vrot.slane %v1493, 7
  %v1526 = vmul.f32 %v1424, %v1492
  %v1527 = vmul.f32 %v1425, %v1496
  %v1528 = vmul.f32 %v1426, %v1497
  %v1529 = vmul.f32 %v1427, %v1498
  %v1530 = vmul.f32 %v1428, %v1499
  %v1531 = vmul.f32 %v1429, %v1500
  %v1532 = vmul.f32 %v1430, %v1501
  %v1533 = vmul.f32 %v1431, %v1502
  %v1534 = vmul.f32 %v1432, %v1493
  %v1535 = vmul.f32 %v1433, %v1503
  %v1536 = vmul.f32 %v1434, %v1504
  %v1537 = vmul.f32 %v1435, %v1505
  %v1538 = vmul.f32 %v1436, %v1506
  %v1539 = vmul.f32 %v1437, %v1507
  %v1540 = vmul.f32 %v1438, %v1508
  %v1541 = vmul.f32 %v1439, %v1509
  %v1558 = vrot.slane %v1527, 7
  %v1559 = vsel %vm617, %v1558, %v1526
  %v1560 = vrot.slane %v1528, 6
  %v1561 = vsel %vm620, %v1560, %v1559
  %v1562 = vrot.slane %v1529, 5
  %v1563 = vsel %vm623, %v1562, %v1561
  %v1564 = vrot.slane %v1530, 4
  %v1565 = vsel %vm626, %v1564, %v1563
  %v1566 = vrot.slane %v1531, 3
  %v1567 = vsel %vm629, %v1566, %v1565
  %v1568 = vrot.slane %v1532, 2
  %v1569 = vsel %vm632, %v1568, %v1567
  %v1570 = vrot.slane %v1533, 1
  %v1571 = vsel %vm635, %v1570, %v1569
  %v1572 = vrot.slane %v1535, 7
  %v1573 = vsel %vm617, %v1572, %v1534
  %v1574 = vrot.slane %v1536, 6
  %v1575 = vsel %vm620, %v1574, %v1573
  %v1576 = vrot.slane %v1537, 5
  %v1577 = vsel %vm623, %v1576, %v1575
  %v1578 = vrot.slane %v1538, 4
  %v1579 = vsel %vm626, %v1578, %v1577
  %v1580 = vrot.slane %v1539, 3
  %v1581 = vsel %vm629, %v1580, %v1579
  %v1582 = vrot.slane %v1540, 2
  %v1583 = vsel %vm632, %v1582, %v1581
  %v1584 = vrot.slane %v1541, 1
  %v1585 = vsel %vm635, %v1584, %v1583
  %1588 = vrot.lane.b32.xlu0 %v122, 120
  %v1589 = vpop.permute.xlu0 %1588
  %1590 = vrot.lane.b32.xlu0 %v127, 120
  %v1591 = vpop.permute.xlu0 %1590
  %1595 = vrot.lane.b32.xlu0 %v892, 120
  %v1596 = vpop.permute.xlu0 %1595
  %v1598 = vsel %vm48, %v1571, 0
  %v1600 = vsel %vm48, %v1585, 0
  %1602 = vmatprep.subr.mxu0 0.0
  %1603 = vmatpush1.msra.mxu0 %v1589
  %1604 = vmatprep.subr.mxu0 0.0
  %1605 = vmatpush1.msra.mxu0 %v1591
  %1606 = vmatprep.subr.mxu0 0.0
  %1607 = vmatpush1.msra.mxu0 0.0
  %1608 = vmatprep.subr.mxu0 0.0
  %1609 = vmatpush1.msra.mxu0 0.0
  %1610 = vmatprep.subr.mxu0 0.0
  %1611 = vmatpush1.msra.mxu0 0.0
  %1612 = vmatprep.subr.mxu0 0.0
  %1613 = vmatpush1.msra.mxu0 0.0
  %1614 = vmatprep.subr.mxu0 0.0
  %1615 = vmatpush1.msra.mxu0 0.0
  %1616 = vmatprep.subr.mxu0 0.0
  %1617 = vmatpush1.msra.mxu0 0.0
  %1618 = vmatprep.subr.mxu0 0.0
  %1619 = vmatpush1.msra.mxu0 0.0
  %1620 = vmatprep.subr.mxu0 0.0
  %1621 = vmatpush1.msra.mxu0 0.0
  %1622 = vmatprep.subr.mxu0 0.0
  %1623 = vmatpush1.msra.mxu0 0.0
  %1624 = vmatprep.subr.mxu0 0.0
  %1625 = vmatpush1.msra.mxu0 0.0
  %1626 = vmatprep.subr.mxu0 0.0
  %1627 = vmatpush1.msra.mxu0 0.0
  %1628 = vmatprep.subr.mxu0 0.0
  %1629 = vmatpush1.msra.mxu0 0.0
  %1630 = vmatprep.subr.mxu0 0.0
  %1631 = vmatpush1.msra.mxu0 0.0
  %1632 = vmatprep.subr.mxu0 0.0
  %1633 = vmatpush1.msra.mxu0 0.0
  %1634 = vmatprep.subr.mxu0 0.0
  %1635 = vmatpush1.msra.mxu0 0.0
  %1636 = vmatprep.subr.mxu0 0.0
  %1637 = vmatpush1.msra.mxu0 0.0
  %1638 = vmatprep.subr.mxu0 0.0
  %1639 = vmatpush1.msra.mxu0 0.0
  %1640 = vmatprep.subr.mxu0 0.0
  %1641 = vmatpush1.msra.mxu0 0.0
  %1642 = vmatprep.subr.mxu0 0.0
  %1643 = vmatpush1.msra.mxu0 0.0
  %1644 = vmatprep.subr.mxu0 0.0
  %1645 = vmatpush1.msra.mxu0 0.0
  %1646 = vmatprep.subr.mxu0 0.0
  %1647 = vmatpush1.msra.mxu0 0.0
  %1648 = vmatprep.subr.mxu0 0.0
  %1649 = vmatpush1.msra.mxu0 0.0
  %1650 = vmatprep.subr.mxu0 0.0
  %1651 = vmatpush1.msra.mxu0 0.0
  %1652 = vmatprep.subr.mxu0 0.0
  %1653 = vmatpush1.msra.mxu0 0.0
  %1654 = vmatprep.subr.mxu0 0.0
  %1655 = vmatpush1.msra.mxu0 0.0
  %1656 = vmatprep.subr.mxu0 0.0
  %1657 = vmatpush1.msra.mxu0 0.0
  %1658 = vmatprep.subr.mxu0 0.0
  %1659 = vmatpush1.msra.mxu0 0.0
  %1660 = vmatprep.subr.mxu0 0.0
  %1661 = vmatpush1.msra.mxu0 0.0
  %1662 = vmatprep.subr.mxu0 0.0
  %1663 = vmatpush1.msra.mxu0 0.0
  %1664 = vmatprep.subr.mxu0 0.0
  %1665 = vmatpush1.msra.mxu0 0.0
  %1666 = vmatprep.mubr.f32.mxu0 0.0
  %1667 = vmatmul.mubr.f32.gmra.mrb[0].mxu0 %v1598
  %v1668 = vpop.f32.mrb[0].mxu0
  %v1669 = vadd.f32 %v1596, %v1668
  %v1670 = vpop.f32.mrb[0].mxu0
  %1671 = vmatprep.mubr.f32.mxu0 0.0
  %1672 = vmatmul.mubr.f32.gmra.mrb[0].mxu0 %v1600
  %v1673 = vpop.f32.mrb[0].mxu0
  %v1674 = vadd.f32 %v1596, %v1673
  %v1675 = vpop.f32.mrb[0].mxu0
  %1676 = vdwg.mxu0
  %s1678 = sor.u32 256, 16
  %1679 = vbcast.lane.b32.xlu0 %v244, %s1678
  %v1680 = vpop.permute.xlu0 %1679
  %s1682 = sor.u32 256, 16
  %1683 = vbcast.lane.b32.xlu0 %v251, %s1682
  %v1684 = vpop.permute.xlu0 %1683
  %s1686 = sor.u32 256, 16
  %1687 = vbcast.lane.b32.xlu0 %v258, %s1686
  %v1688 = vpop.permute.xlu0 %1687
  %s1690 = sor.u32 256, 16
  %1691 = vbcast.lane.b32.xlu0 %v265, %s1690
  %v1692 = vpop.permute.xlu0 %1691
  %s1694 = sor.u32 256, 16
  %1695 = vbcast.lane.b32.xlu0 %v272, %s1694
  %v1696 = vpop.permute.xlu0 %1695
  %s1698 = sor.u32 256, 16
  %1699 = vbcast.lane.b32.xlu0 %v279, %s1698
  %v1700 = vpop.permute.xlu0 %1699
  %s1702 = sor.u32 256, 16
  %1703 = vbcast.lane.b32.xlu0 %v286, %s1702
  %v1704 = vpop.permute.xlu0 %1703
  %s1706 = sor.u32 256, 16
  %1707 = vbcast.lane.b32.xlu0 %v293, %s1706
  %v1708 = vpop.permute.xlu0 %1707
  %s1710 = sor.u32 256, 16
  %1711 = vbcast.lane.b32.xlu0 %v300, %s1710
  %v1712 = vpop.permute.xlu0 %1711
  %s1714 = sor.u32 256, 16
  %1715 = vbcast.lane.b32.xlu0 %v307, %s1714
  %v1716 = vpop.permute.xlu0 %1715
  %s1718 = sor.u32 256, 16
  %1719 = vbcast.lane.b32.xlu0 %v314, %s1718
  %v1720 = vpop.permute.xlu0 %1719
  %s1722 = sor.u32 256, 16
  %1723 = vbcast.lane.b32.xlu0 %v321, %s1722
  %v1724 = vpop.permute.xlu0 %1723
  %s1726 = sor.u32 256, 16
  %1727 = vbcast.lane.b32.xlu0 %v328, %s1726
  %v1728 = vpop.permute.xlu0 %1727
  %s1730 = sor.u32 256, 16
  %1731 = vbcast.lane.b32.xlu0 %v335, %s1730
  %v1732 = vpop.permute.xlu0 %1731
  %s1734 = sor.u32 256, 16
  %1735 = vbcast.lane.b32.xlu0 %v342, %s1734
  %v1736 = vpop.permute.xlu0 %1735
  %s1738 = sor.u32 256, 16
  %1739 = vbcast.lane.b32.xlu0 %v349, %s1738
  %v1740 = vpop.permute.xlu0 %1739
  %v1741 = vadd.f32 %v1680, %v227
  %v1742 = vadd.f32 %v1684, %v227
  %v1743 = vadd.f32 %v1688, %v227
  %v1744 = vadd.f32 %v1692, %v227
  %v1745 = vadd.f32 %v1696, %v227
  %v1746 = vadd.f32 %v1700, %v227
  %v1747 = vadd.f32 %v1704, %v227
  %v1748 = vadd.f32 %v1708, %v227
  %v1749 = vadd.f32 %v1712, %v227
  %v1750 = vadd.f32 %v1716, %v227
  %v1751 = vadd.f32 %v1720, %v227
  %v1752 = vadd.f32 %v1724, %v227
  %v1753 = vadd.f32 %v1728, %v227
  %v1754 = vadd.f32 %v1732, %v227
  %v1755 = vadd.f32 %v1736, %v227
  %v1756 = vadd.f32 %v1740, %v227
  %vm1757 = vcmp.ge.f32.partialorder %v1741, 0.0
  %vm1758 = vcmp.ge.f32.partialorder %v1742, 0.0
  %vm1759 = vcmp.ge.f32.partialorder %v1743, 0.0
  %vm1760 = vcmp.ge.f32.partialorder %v1744, 0.0
  %vm1761 = vcmp.ge.f32.partialorder %v1745, 0.0
  %vm1762 = vcmp.ge.f32.partialorder %v1746, 0.0
  %vm1763 = vcmp.ge.f32.partialorder %v1747, 0.0
  %vm1764 = vcmp.ge.f32.partialorder %v1748, 0.0
  %vm1765 = vcmp.ge.f32.partialorder %v1749, 0.0
  %vm1766 = vcmp.ge.f32.partialorder %v1750, 0.0
  %vm1767 = vcmp.ge.f32.partialorder %v1751, 0.0
  %vm1768 = vcmp.ge.f32.partialorder %v1752, 0.0
  %vm1769 = vcmp.ge.f32.partialorder %v1753, 0.0
  %vm1770 = vcmp.ge.f32.partialorder %v1754, 0.0
  %vm1771 = vcmp.ge.f32.partialorder %v1755, 0.0
  %vm1772 = vcmp.ge.f32.partialorder %v1756, 0.0
  %v1773 = vmul.f32 %v1741, 0.2
  %v1774 = vmul.f32 %v1742, 0.2
  %v1775 = vmul.f32 %v1743, 0.2
  %v1776 = vmul.f32 %v1744, 0.2
  %v1777 = vmul.f32 %v1745, 0.2
  %v1778 = vmul.f32 %v1746, 0.2
  %v1779 = vmul.f32 %v1747, 0.2
  %v1780 = vmul.f32 %v1748, 0.2
  %v1781 = vmul.f32 %v1749, 0.2
  %v1782 = vmul.f32 %v1750, 0.2
  %v1783 = vmul.f32 %v1751, 0.2
  %v1784 = vmul.f32 %v1752, 0.2
  %v1785 = vmul.f32 %v1753, 0.2
  %v1786 = vmul.f32 %v1754, 0.2
  %v1787 = vmul.f32 %v1755, 0.2
  %v1788 = vmul.f32 %v1756, 0.2
  %v1789 = vsel %vm1757, %v1741, %v1773
  %v1790 = vsel %vm1758, %v1742, %v1774
  %v1791 = vsel %vm1759, %v1743, %v1775
  %v1792 = vsel %vm1760, %v1744, %v1776
  %v1793 = vsel %vm1761, %v1745, %v1777
  %v1794 = vsel %vm1762, %v1746, %v1778
  %v1795 = vsel %vm1763, %v1747, %v1779
  %v1796 = vsel %vm1764, %v1748, %v1780
  %v1797 = vsel %vm1765, %v1749, %v1781
  %v1798 = vsel %vm1766, %v1750, %v1782
  %v1799 = vsel %vm1767, %v1751, %v1783
  %v1800 = vsel %vm1768, %v1752, %v1784
  %v1801 = vsel %vm1769, %v1753, %v1785
  %v1802 = vsel %vm1770, %v1754, %v1786
  %v1803 = vsel %vm1771, %v1755, %v1787
  %v1804 = vsel %vm1772, %v1756, %v1788
  %s1806 = sor.u32 256, 16
  %1807 = vbcast.lane.b32.xlu0 %v420, %s1806
  %v1808 = vpop.permute.xlu0 %1807
  %v1809 = vmul.f32 %v1789, %v1808
  %v1810 = vmul.f32 %v1790, %v1808
  %v1811 = vmul.f32 %v1791, %v1808
  %v1812 = vmul.f32 %v1792, %v1808
  %v1813 = vmul.f32 %v1793, %v1808
  %v1814 = vmul.f32 %v1794, %v1808
  %v1815 = vmul.f32 %v1795, %v1808
  %v1816 = vmul.f32 %v1796, %v1808
  %v1817 = vmul.f32 %v1797, %v1808
  %v1818 = vmul.f32 %v1798, %v1808
  %v1819 = vmul.f32 %v1799, %v1808
  %v1820 = vmul.f32 %v1800, %v1808
  %v1821 = vmul.f32 %v1801, %v1808
  %v1822 = vmul.f32 %v1802, %v1808
  %v1823 = vmul.f32 %v1803, %v1808
  %v1824 = vmul.f32 %v1804, %v1808
  %v1825 = vsel %vm48, %v1809, 0.0
  %v1826 = vrot.slane %v1825, 4
  %v1827 = vadd.f32 %v1825, %v1826
  %v1828 = vrot.slane %v1827, 2
  %v1829 = vadd.f32 %v1827, %v1828
  %v1830 = vrot.slane %v1829, 1
  %v1831 = vadd.f32 %v1829, %v1830
  %v1832 = vsel %vm48, %v1810, 0.0
  %v1833 = vrot.slane %v1832, 4
  %v1834 = vadd.f32 %v1832, %v1833
  %v1835 = vrot.slane %v1834, 2
  %v1836 = vadd.f32 %v1834, %v1835
  %v1837 = vrot.slane %v1836, 1
  %v1838 = vadd.f32 %v1836, %v1837
  %v1839 = vsel %vm48, %v1811, 0.0
  %v1840 = vrot.slane %v1839, 4
  %v1841 = vadd.f32 %v1839, %v1840
  %v1842 = vrot.slane %v1841, 2
  %v1843 = vadd.f32 %v1841, %v1842
  %v1844 = vrot.slane %v1843, 1
  %v1845 = vadd.f32 %v1843, %v1844
  %v1846 = vsel %vm48, %v1812, 0.0
  %v1847 = vrot.slane %v1846, 4
  %v1848 = vadd.f32 %v1846, %v1847
  %v1849 = vrot.slane %v1848, 2
  %v1850 = vadd.f32 %v1848, %v1849
  %v1851 = vrot.slane %v1850, 1
  %v1852 = vadd.f32 %v1850, %v1851
  %v1853 = vsel %vm48, %v1813, 0.0
  %v1854 = vrot.slane %v1853, 4
  %v1855 = vadd.f32 %v1853, %v1854
  %v1856 = vrot.slane %v1855, 2
  %v1857 = vadd.f32 %v1855, %v1856
  %v1858 = vrot.slane %v1857, 1
  %v1859 = vadd.f32 %v1857, %v1858
  %v1860 = vsel %vm48, %v1814, 0.0
  %v1861 = vrot.slane %v1860, 4
  %v1862 = vadd.f32 %v1860, %v1861
  %v1863 = vrot.slane %v1862, 2
  %v1864 = vadd.f32 %v1862, %v1863
  %v1865 = vrot.slane %v1864, 1
  %v1866 = vadd.f32 %v1864, %v1865
  %v1867 = vsel %vm48, %v1815, 0.0
  %v1868 = vrot.slane %v1867, 4
  %v1869 = vadd.f32 %v1867, %v1868
  %v1870 = vrot.slane %v1869, 2
  %v1871 = vadd.f32 %v1869, %v1870
  %v1872 = vrot.slane %v1871, 1
  %v1873 = vadd.f32 %v1871, %v1872
  %v1874 = vsel %vm48, %v1816, 0.0
  %v1875 = vrot.slane %v1874, 4
  %v1876 = vadd.f32 %v1874, %v1875
  %v1877 = vrot.slane %v1876, 2
  %v1878 = vadd.f32 %v1876, %v1877
  %v1879 = vrot.slane %v1878, 1
  %v1880 = vadd.f32 %v1878, %v1879
  %v1881 = vsel %vm48, %v1817, 0.0
  %v1882 = vrot.slane %v1881, 4
  %v1883 = vadd.f32 %v1881, %v1882
  %v1884 = vrot.slane %v1883, 2
  %v1885 = vadd.f32 %v1883, %v1884
  %v1886 = vrot.slane %v1885, 1
  %v1887 = vadd.f32 %v1885, %v1886
  %v1888 = vsel %vm48, %v1818, 0.0
  %v1889 = vrot.slane %v1888, 4
  %v1890 = vadd.f32 %v1888, %v1889
  %v1891 = vrot.slane %v1890, 2
  %v1892 = vadd.f32 %v1890, %v1891
  %v1893 = vrot.slane %v1892, 1
  %v1894 = vadd.f32 %v1892, %v1893
  %v1895 = vsel %vm48, %v1819, 0.0
  %v1896 = vrot.slane %v1895, 4
  %v1897 = vadd.f32 %v1895, %v1896
  %v1898 = vrot.slane %v1897, 2
  %v1899 = vadd.f32 %v1897, %v1898
  %v1900 = vrot.slane %v1899, 1
  %v1901 = vadd.f32 %v1899, %v1900
  %v1902 = vsel %vm48, %v1820, 0.0
  %v1903 = vrot.slane %v1902, 4
  %v1904 = vadd.f32 %v1902, %v1903
  %v1905 = vrot.slane %v1904, 2
  %v1906 = vadd.f32 %v1904, %v1905
  %v1907 = vrot.slane %v1906, 1
  %v1908 = vadd.f32 %v1906, %v1907
  %v1909 = vsel %vm48, %v1821, 0.0
  %v1910 = vrot.slane %v1909, 4
  %v1911 = vadd.f32 %v1909, %v1910
  %v1912 = vrot.slane %v1911, 2
  %v1913 = vadd.f32 %v1911, %v1912
  %v1914 = vrot.slane %v1913, 1
  %v1915 = vadd.f32 %v1913, %v1914
  %v1916 = vsel %vm48, %v1822, 0.0
  %v1917 = vrot.slane %v1916, 4
  %v1918 = vadd.f32 %v1916, %v1917
  %v1919 = vrot.slane %v1918, 2
  %v1920 = vadd.f32 %v1918, %v1919
  %v1921 = vrot.slane %v1920, 1
  %v1922 = vadd.f32 %v1920, %v1921
  %v1923 = vsel %vm48, %v1823, 0.0
  %v1924 = vrot.slane %v1923, 4
  %v1925 = vadd.f32 %v1923, %v1924
  %v1926 = vrot.slane %v1925, 2
  %v1927 = vadd.f32 %v1925, %v1926
  %v1928 = vrot.slane %v1927, 1
  %v1929 = vadd.f32 %v1927, %v1928
  %v1930 = vsel %vm48, %v1824, 0.0
  %v1931 = vrot.slane %v1930, 4
  %v1932 = vadd.f32 %v1930, %v1931
  %v1933 = vrot.slane %v1932, 2
  %v1934 = vadd.f32 %v1932, %v1933
  %v1935 = vrot.slane %v1934, 1
  %v1936 = vadd.f32 %v1934, %v1935
  %v1937 = vadd.f32 %v1831, %v37
  %v1938 = vadd.f32 %v1838, %v554
  %v1939 = vadd.f32 %v1845, %v555
  %v1940 = vadd.f32 %v1852, %v556
  %v1941 = vadd.f32 %v1859, %v557
  %v1942 = vadd.f32 %v1866, %v558
  %v1943 = vadd.f32 %v1873, %v559
  %v1944 = vadd.f32 %v1880, %v560
  %v1945 = vadd.f32 %v1887, %v38
  %v1946 = vadd.f32 %v1894, %v561
  %v1947 = vadd.f32 %v1901, %v562
  %v1948 = vadd.f32 %v1908, %v563
  %v1949 = vadd.f32 %v1915, %v564
  %v1950 = vadd.f32 %v1922, %v565
  %v1951 = vadd.f32 %v1929, %v566
  %v1952 = vadd.f32 %v1936, %v567
  %v1969 = vrot.slane %v1938, 7
  %v1970 = vsel %vm617, %v1969, %v1937
  %v1971 = vrot.slane %v1939, 6
  %v1972 = vsel %vm620, %v1971, %v1970
  %v1973 = vrot.slane %v1940, 5
  %v1974 = vsel %vm623, %v1973, %v1972
  %v1975 = vrot.slane %v1941, 4
  %v1976 = vsel %vm626, %v1975, %v1974
  %v1977 = vrot.slane %v1942, 3
  %v1978 = vsel %vm629, %v1977, %v1976
  %v1979 = vrot.slane %v1943, 2
  %v1980 = vsel %vm632, %v1979, %v1978
  %v1981 = vrot.slane %v1944, 1
  %v1982 = vsel %vm635, %v1981, %v1980
  %v1983 = vrot.slane %v1946, 7
  %v1984 = vsel %vm617, %v1983, %v1945
  %v1985 = vrot.slane %v1947, 6
  %v1986 = vsel %vm620, %v1985, %v1984
  %v1987 = vrot.slane %v1948, 5
  %v1988 = vsel %vm623, %v1987, %v1986
  %v1989 = vrot.slane %v1949, 4
  %v1990 = vsel %vm626, %v1989, %v1988
  %v1991 = vrot.slane %v1950, 3
  %v1992 = vsel %vm629, %v1991, %v1990
  %v1993 = vrot.slane %v1951, 2
  %v1994 = vsel %vm632, %v1993, %v1992
  %v1995 = vrot.slane %v1952, 1
  %v1996 = vsel %vm635, %v1995, %v1994
  %v1999 = vsel %vm48, %v1982, -inf
  %2000 = vmax.xlane.f32.xlu0 %v1999
  %v2001 = vpop.xlane.xlu0 %2000
  %v2002 = vsel %vm48, %v1996, -inf
  %2003 = vmax.xlane.f32.xlu0 %v2002
  %v2004 = vpop.xlane.xlu0 %2003
  %v2007 = vrot.slane %v2001, 1
  %v2008 = vrot.slane %v2001, 2
  %v2009 = vrot.slane %v2001, 3
  %v2010 = vrot.slane %v2001, 4
  %v2011 = vrot.slane %v2001, 5
  %v2012 = vrot.slane %v2001, 6
  %v2013 = vrot.slane %v2001, 7
  %v2014 = vrot.slane %v2004, 1
  %v2015 = vrot.slane %v2004, 2
  %v2016 = vrot.slane %v2004, 3
  %v2017 = vrot.slane %v2004, 4
  %v2018 = vrot.slane %v2004, 5
  %v2019 = vrot.slane %v2004, 6
  %v2020 = vrot.slane %v2004, 7
  %v2037 = vsub.f32 %v1937, %v2001
  %v2038 = vsub.f32 %v1938, %v2007
  %v2039 = vsub.f32 %v1939, %v2008
  %v2040 = vsub.f32 %v1940, %v2009
  %v2041 = vsub.f32 %v1941, %v2010
  %v2042 = vsub.f32 %v1942, %v2011
  %v2043 = vsub.f32 %v1943, %v2012
  %v2044 = vsub.f32 %v1944, %v2013
  %v2045 = vsub.f32 %v1945, %v2004
  %v2046 = vsub.f32 %v1946, %v2014
  %v2047 = vsub.f32 %v1947, %v2015
  %v2048 = vsub.f32 %v1948, %v2016
  %v2049 = vsub.f32 %v1949, %v2017
  %v2050 = vsub.f32 %v1950, %v2018
  %v2051 = vsub.f32 %v1951, %v2019
  %v2052 = vsub.f32 %v1952, %v2020
  %v2053 = vmul.f32 %v2037, 1.442695
  %v2054 = vpow.pop %v2053
  %v2055 = vmul.f32 %v2038, 1.442695
  %v2056 = vpow.pop %v2055
  %v2057 = vmul.f32 %v2039, 1.442695
  %v2058 = vpow.pop %v2057
  %v2059 = vmul.f32 %v2040, 1.442695
  %v2060 = vpow.pop %v2059
  %v2061 = vmul.f32 %v2041, 1.442695
  %v2062 = vpow.pop %v2061
  %v2063 = vmul.f32 %v2042, 1.442695
  %v2064 = vpow.pop %v2063
  %v2065 = vmul.f32 %v2043, 1.442695
  %v2066 = vpow.pop %v2065
  %v2067 = vmul.f32 %v2044, 1.442695
  %v2068 = vpow.pop %v2067
  %v2069 = vmul.f32 %v2045, 1.442695
  %v2070 = vpow.pop %v2069
  %v2071 = vmul.f32 %v2046, 1.442695
  %v2072 = vpow.pop %v2071
  %v2073 = vmul.f32 %v2047, 1.442695
  %v2074 = vpow.pop %v2073
  %v2075 = vmul.f32 %v2048, 1.442695
  %v2076 = vpow.pop %v2075
  %v2077 = vmul.f32 %v2049, 1.442695
  %v2078 = vpow.pop %v2077
  %v2079 = vmul.f32 %v2050, 1.442695
  %v2080 = vpow.pop %v2079
  %v2081 = vmul.f32 %v2051, 1.442695
  %v2082 = vpow.pop %v2081
  %v2083 = vmul.f32 %v2052, 1.442695
  %v2084 = vpow.pop %v2083
  %v2085 = vmul.f32 %v2054, %v33
  %v2086 = vmul.f32 %v2056, %v741
  %v2087 = vmul.f32 %v2058, %v742
  %v2088 = vmul.f32 %v2060, %v743
  %v2089 = vmul.f32 %v2062, %v744
  %v2090 = vmul.f32 %v2064, %v745
  %v2091 = vmul.f32 %v2066, %v746
  %v2092 = vmul.f32 %v2068, %v747
  %v2093 = vmul.f32 %v2070, %v34
  %v2094 = vmul.f32 %v2072, %v748
  %v2095 = vmul.f32 %v2074, %v749
  %v2096 = vmul.f32 %v2076, %v750
  %v2097 = vmul.f32 %v2078, %v751
  %v2098 = vmul.f32 %v2080, %v752
  %v2099 = vmul.f32 %v2082, %v753
  %v2100 = vmul.f32 %v2084, %v754
  %v2117 = vrot.slane %v2086, 7
  %v2118 = vsel %vm617, %v2117, %v2085
  %v2119 = vrot.slane %v2087, 6
  %v2120 = vsel %vm620, %v2119, %v2118
  %v2121 = vrot.slane %v2088, 5
  %v2122 = vsel %vm623, %v2121, %v2120
  %v2123 = vrot.slane %v2089, 4
  %v2124 = vsel %vm626, %v2123, %v2122
  %v2125 = vrot.slane %v2090, 3
  %v2126 = vsel %vm629, %v2125, %v2124
  %v2127 = vrot.slane %v2091, 2
  %v2128 = vsel %vm632, %v2127, %v2126
  %v2129 = vrot.slane %v2092, 1
  %v2130 = vsel %vm635, %v2129, %v2128
  %v2131 = vrot.slane %v2094, 7
  %v2132 = vsel %vm617, %v2131, %v2093
  %v2133 = vrot.slane %v2095, 6
  %v2134 = vsel %vm620, %v2133, %v2132
  %v2135 = vrot.slane %v2096, 5
  %v2136 = vsel %vm623, %v2135, %v2134
  %v2137 = vrot.slane %v2097, 4
  %v2138 = vsel %vm626, %v2137, %v2136
  %v2139 = vrot.slane %v2098, 3
  %v2140 = vsel %vm629, %v2139, %v2138
  %v2141 = vrot.slane %v2099, 2
  %v2142 = vsel %vm632, %v2141, %v2140
  %v2143 = vrot.slane %v2100, 1
  %v2144 = vsel %vm635, %v2143, %v2142
  %v2147 = vsel %vm48, %v2130, 0.0
  %2148 = vadd.xlane.f32.xlu0 %v2147
  %v2149 = vpop.xlane.xlu0 %2148
  %v2150 = vsel %vm48, %v2144, 0.0
  %2151 = vadd.xlane.f32.xlu0 %v2150
  %v2152 = vpop.xlane.xlu0 %2151
  %v2153 = vrcp.pop %v2149
  %v2154 = vrcp.pop %v2152
  %v2157 = vrot.slane %v2153, 1
  %v2158 = vrot.slane %v2153, 2
  %v2159 = vrot.slane %v2153, 3
  %v2160 = vrot.slane %v2153, 4
  %v2161 = vrot.slane %v2153, 5
  %v2162 = vrot.slane %v2153, 6
  %v2163 = vrot.slane %v2153, 7
  %v2164 = vrot.slane %v2154, 1
  %v2165 = vrot.slane %v2154, 2
  %v2166 = vrot.slane %v2154, 3
  %v2167 = vrot.slane %v2154, 4
  %v2168 = vrot.slane %v2154, 5
  %v2169 = vrot.slane %v2154, 6
  %v2170 = vrot.slane %v2154, 7
  %v2187 = vmul.f32 %v2085, %v2153
  %v2188 = vmul.f32 %v2086, %v2157
  %v2189 = vmul.f32 %v2087, %v2158
  %v2190 = vmul.f32 %v2088, %v2159
  %v2191 = vmul.f32 %v2089, %v2160
  %v2192 = vmul.f32 %v2090, %v2161
  %v2193 = vmul.f32 %v2091, %v2162
  %v2194 = vmul.f32 %v2092, %v2163
  %v2195 = vmul.f32 %v2093, %v2154
  %v2196 = vmul.f32 %v2094, %v2164
  %v2197 = vmul.f32 %v2095, %v2165
  %v2198 = vmul.f32 %v2096, %v2166
  %v2199 = vmul.f32 %v2097, %v2167
  %v2200 = vmul.f32 %v2098, %v2168
  %v2201 = vmul.f32 %v2099, %v2169
  %v2202 = vmul.f32 %v2100, %v2170
  %v2219 = vrot.slane %v2188, 7
  %v2220 = vsel %vm617, %v2219, %v2187
  %v2221 = vrot.slane %v2189, 6
  %v2222 = vsel %vm620, %v2221, %v2220
  %v2223 = vrot.slane %v2190, 5
  %v2224 = vsel %vm623, %v2223, %v2222
  %v2225 = vrot.slane %v2191, 4
  %v2226 = vsel %vm626, %v2225, %v2224
  %v2227 = vrot.slane %v2192, 3
  %v2228 = vsel %vm629, %v2227, %v2226
  %v2229 = vrot.slane %v2193, 2
  %v2230 = vsel %vm632, %v2229, %v2228
  %v2231 = vrot.slane %v2194, 1
  %v2232 = vsel %vm635, %v2231, %v2230
  %v2233 = vrot.slane %v2196, 7
  %v2234 = vsel %vm617, %v2233, %v2195
  %v2235 = vrot.slane %v2197, 6
  %v2236 = vsel %vm620, %v2235, %v2234
  %v2237 = vrot.slane %v2198, 5
  %v2238 = vsel %vm623, %v2237, %v2236
  %v2239 = vrot.slane %v2199, 4
  %v2240 = vsel %vm626, %v2239, %v2238
  %v2241 = vrot.slane %v2200, 3
  %v2242 = vsel %vm629, %v2241, %v2240
  %v2243 = vrot.slane %v2201, 2
  %v2244 = vsel %vm632, %v2243, %v2242
  %v2245 = vrot.slane %v2202, 1
  %v2246 = vsel %vm635, %v2245, %v2244
  %2247 = vrot.lane.b32.xlu0 %v122, 112
  %v2248 = vpop.permute.xlu0 %2247
  %2249 = vrot.lane.b32.xlu0 %v127, 112
  %v2250 = vpop.permute.xlu0 %2249
  %2253 = vrot.lane.b32.xlu0 %v892, 112
  %v2254 = vpop.permute.xlu0 %2253
  %v2256 = vsel %vm48, %v2232, 0
  %v2258 = vsel %vm48, %v2246, 0
  %2260 = vmatprep.subr.mxu0 0.0
  %2261 = vmatpush1.msra.mxu0 %v2248
  %2262 = vmatprep.subr.mxu0 0.0
  %2263 = vmatpush1.msra.mxu0 %v2250
  %2264 = vmatprep.subr.mxu0 0.0
  %2265 = vmatpush1.msra.mxu0 0.0
  %2266 = vmatprep.subr.mxu0 0.0
  %2267 = vmatpush1.msra.mxu0 0.0
  %2268 = vmatprep.subr.mxu0 0.0
  %2269 = vmatpush1.msra.mxu0 0.0
  %2270 = vmatprep.subr.mxu0 0.0
  %2271 = vmatpush1.msra.mxu0 0.0
  %2272 = vmatprep.subr.mxu0 0.0
  %2273 = vmatpush1.msra.mxu0 0.0
  %2274 = vmatprep.subr.mxu0 0.0
  %2275 = vmatpush1.msra.mxu0 0.0
  %2276 = vmatprep.subr.mxu0 0.0
  %2277 = vmatpush1.msra.mxu0 0.0
  %2278 = vmatprep.subr.mxu0 0.0
  %2279 = vmatpush1.msra.mxu0 0.0
  %2280 = vmatprep.subr.mxu0 0.0
  %2281 = vmatpush1.msra.mxu0 0.0
  %2282 = vmatprep.subr.mxu0 0.0
  %2283 = vmatpush1.msra.mxu0 0.0
  %2284 = vmatprep.subr.mxu0 0.0
  %2285 = vmatpush1.msra.mxu0 0.0
  %2286 = vmatprep.subr.mxu0 0.0
  %2287 = vmatpush1.msra.mxu0 0.0
  %2288 = vmatprep.subr.mxu0 0.0
  %2289 = vmatpush1.msra.mxu0 0.0
  %2290 = vmatprep.subr.mxu0 0.0
  %2291 = vmatpush1.msra.mxu0 0.0
  %2292 = vmatprep.subr.mxu0 0.0
  %2293 = vmatpush1.msra.mxu0 0.0
  %2294 = vmatprep.subr.mxu0 0.0
  %2295 = vmatpush1.msra.mxu0 0.0
  %2296 = vmatprep.subr.mxu0 0.0
  %2297 = vmatpush1.msra.mxu0 0.0
  %2298 = vmatprep.subr.mxu0 0.0
  %2299 = vmatpush1.msra.mxu0 0.0
  %2300 = vmatprep.subr.mxu0 0.0
  %2301 = vmatpush1.msra.mxu0 0.0
  %2302 = vmatprep.subr.mxu0 0.0
  %2303 = vmatpush1.msra.mxu0 0.0
  %2304 = vmatprep.subr.mxu0 0.0
  %2305 = vmatpush1.msra.mxu0 0.0
  %2306 = vmatprep.subr.mxu0 0.0
  %2307 = vmatpush1.msra.mxu0 0.0
  %2308 = vmatprep.subr.mxu0 0.0
  %2309 = vmatpush1.msra.mxu0 0.0
  %2310 = vmatprep.subr.mxu0 0.0
  %2311 = vmatpush1.msra.mxu0 0.0
  %2312 = vmatprep.subr.mxu0 0.0
  %2313 = vmatpush1.msra.mxu0 0.0
  %2314 = vmatprep.subr.mxu0 0.0
  %2315 = vmatpush1.msra.mxu0 0.0
  %2316 = vmatprep.subr.mxu0 0.0
  %2317 = vmatpush1.msra.mxu0 0.0
  %2318 = vmatprep.subr.mxu0 0.0
  %2319 = vmatpush1.msra.mxu0 0.0
  %2320 = vmatprep.subr.mxu0 0.0
  %2321 = vmatpush1.msra.mxu0 0.0
  %2322 = vmatprep.subr.mxu0 0.0
  %2323 = vmatpush1.msra.mxu0 0.0
  %2324 = vmatprep.mubr.f32.mxu0 0.0
  %2325 = vmatmul.mubr.f32.gmra.mrb[0].mxu0 %v2256
  %v2326 = vpop.f32.mrb[0].mxu0
  %v2327 = vadd.f32 %v2254, %v2326
  %v2328 = vpop.f32.mrb[0].mxu0
  %2329 = vmatprep.mubr.f32.mxu0 0.0
  %2330 = vmatmul.mubr.f32.gmra.mrb[0].mxu0 %v2258
  %v2331 = vpop.f32.mrb[0].mxu0
  %v2332 = vadd.f32 %v2254, %v2331
  %v2333 = vpop.f32.mrb[0].mxu0
  %2334 = vdwg.mxu0
  %s2336 = sor.u32 256, 24
  %2337 = vbcast.lane.b32.xlu0 %v244, %s2336
  %v2338 = vpop.permute.xlu0 %2337
  %s2340 = sor.u32 256, 24
  %2341 = vbcast.lane.b32.xlu0 %v251, %s2340
  %v2342 = vpop.permute.xlu0 %2341
  %s2344 = sor.u32 256, 24
  %2345 = vbcast.lane.b32.xlu0 %v258, %s2344
  %v2346 = vpop.permute.xlu0 %2345
  %s2348 = sor.u32 256, 24
  %2349 = vbcast.lane.b32.xlu0 %v265, %s2348
  %v2350 = vpop.permute.xlu0 %2349
  %s2352 = sor.u32 256, 24
  %2353 = vbcast.lane.b32.xlu0 %v272, %s2352
  %v2354 = vpop.permute.xlu0 %2353
  %s2356 = sor.u32 256, 24
  %2357 = vbcast.lane.b32.xlu0 %v279, %s2356
  %v2358 = vpop.permute.xlu0 %2357
  %s2360 = sor.u32 256, 24
  %2361 = vbcast.lane.b32.xlu0 %v286, %s2360
  %v2362 = vpop.permute.xlu0 %2361
  %s2364 = sor.u32 256, 24
  %2365 = vbcast.lane.b32.xlu0 %v293, %s2364
  %v2366 = vpop.permute.xlu0 %2365
  %s2368 = sor.u32 256, 24
  %2369 = vbcast.lane.b32.xlu0 %v300, %s2368
  %v2370 = vpop.permute.xlu0 %2369
  %s2372 = sor.u32 256, 24
  %2373 = vbcast.lane.b32.xlu0 %v307, %s2372
  %v2374 = vpop.permute.xlu0 %2373
  %s2376 = sor.u32 256, 24
  %2377 = vbcast.lane.b32.xlu0 %v314, %s2376
  %v2378 = vpop.permute.xlu0 %2377
  %s2380 = sor.u32 256, 24
  %2381 = vbcast.lane.b32.xlu0 %v321, %s2380
  %v2382 = vpop.permute.xlu0 %2381
  %s2384 = sor.u32 256, 24
  %2385 = vbcast.lane.b32.xlu0 %v328, %s2384
  %v2386 = vpop.permute.xlu0 %2385
  %s2388 = sor.u32 256, 24
  %2389 = vbcast.lane.b32.xlu0 %v335, %s2388
  %v2390 = vpop.permute.xlu0 %2389
  %s2392 = sor.u32 256, 24
  %2393 = vbcast.lane.b32.xlu0 %v342, %s2392
  %v2394 = vpop.permute.xlu0 %2393
  %s2396 = sor.u32 256, 24
  %2397 = vbcast.lane.b32.xlu0 %v349, %s2396
  %v2398 = vpop.permute.xlu0 %2397
  %v2399 = vadd.f32 %v2338, %v228
  %v2400 = vadd.f32 %v2342, %v228
  %v2401 = vadd.f32 %v2346, %v228
  %v2402 = vadd.f32 %v2350, %v228
  %v2403 = vadd.f32 %v2354, %v228
  %v2404 = vadd.f32 %v2358, %v228
  %v2405 = vadd.f32 %v2362, %v228
  %v2406 = vadd.f32 %v2366, %v228
  %v2407 = vadd.f32 %v2370, %v228
  %v2408 = vadd.f32 %v2374, %v228
  %v2409 = vadd.f32 %v2378, %v228
  %v2410 = vadd.f32 %v2382, %v228
  %v2411 = vadd.f32 %v2386, %v228
  %v2412 = vadd.f32 %v2390, %v228
  %v2413 = vadd.f32 %v2394, %v228
  %v2414 = vadd.f32 %v2398, %v228
  %vm2415 = vcmp.ge.f32.partialorder %v2399, 0.0
  %vm2416 = vcmp.ge.f32.partialorder %v2400, 0.0
  %vm2417 = vcmp.ge.f32.partialorder %v2401, 0.0
  %vm2418 = vcmp.ge.f32.partialorder %v2402, 0.0
  %vm2419 = vcmp.ge.f32.partialorder %v2403, 0.0
  %vm2420 = vcmp.ge.f32.partialorder %v2404, 0.0
  %vm2421 = vcmp.ge.f32.partialorder %v2405, 0.0
  %vm2422 = vcmp.ge.f32.partialorder %v2406, 0.0
  %vm2423 = vcmp.ge.f32.partialorder %v2407, 0.0
  %vm2424 = vcmp.ge.f32.partialorder %v2408, 0.0
  %vm2425 = vcmp.ge.f32.partialorder %v2409, 0.0
  %vm2426 = vcmp.ge.f32.partialorder %v2410, 0.0
  %vm2427 = vcmp.ge.f32.partialorder %v2411, 0.0
  %vm2428 = vcmp.ge.f32.partialorder %v2412, 0.0
  %vm2429 = vcmp.ge.f32.partialorder %v2413, 0.0
  %vm2430 = vcmp.ge.f32.partialorder %v2414, 0.0
  %v2431 = vmul.f32 %v2399, 0.2
  %v2432 = vmul.f32 %v2400, 0.2
  %v2433 = vmul.f32 %v2401, 0.2
  %v2434 = vmul.f32 %v2402, 0.2
  %v2435 = vmul.f32 %v2403, 0.2
  %v2436 = vmul.f32 %v2404, 0.2
  %v2437 = vmul.f32 %v2405, 0.2
  %v2438 = vmul.f32 %v2406, 0.2
  %v2439 = vmul.f32 %v2407, 0.2
  %v2440 = vmul.f32 %v2408, 0.2
  %v2441 = vmul.f32 %v2409, 0.2
  %v2442 = vmul.f32 %v2410, 0.2
  %v2443 = vmul.f32 %v2411, 0.2
  %v2444 = vmul.f32 %v2412, 0.2
  %v2445 = vmul.f32 %v2413, 0.2
  %v2446 = vmul.f32 %v2414, 0.2
  %v2447 = vsel %vm2415, %v2399, %v2431
  %v2448 = vsel %vm2416, %v2400, %v2432
  %v2449 = vsel %vm2417, %v2401, %v2433
  %v2450 = vsel %vm2418, %v2402, %v2434
  %v2451 = vsel %vm2419, %v2403, %v2435
  %v2452 = vsel %vm2420, %v2404, %v2436
  %v2453 = vsel %vm2421, %v2405, %v2437
  %v2454 = vsel %vm2422, %v2406, %v2438
  %v2455 = vsel %vm2423, %v2407, %v2439
  %v2456 = vsel %vm2424, %v2408, %v2440
  %v2457 = vsel %vm2425, %v2409, %v2441
  %v2458 = vsel %vm2426, %v2410, %v2442
  %v2459 = vsel %vm2427, %v2411, %v2443
  %v2460 = vsel %vm2428, %v2412, %v2444
  %v2461 = vsel %vm2429, %v2413, %v2445
  %v2462 = vsel %vm2430, %v2414, %v2446
  %s2464 = sor.u32 256, 24
  %2465 = vbcast.lane.b32.xlu0 %v420, %s2464
  %v2466 = vpop.permute.xlu0 %2465
  %v2467 = vmul.f32 %v2447, %v2466
  %v2468 = vmul.f32 %v2448, %v2466
  %v2469 = vmul.f32 %v2449, %v2466
  %v2470 = vmul.f32 %v2450, %v2466
  %v2471 = vmul.f32 %v2451, %v2466
  %v2472 = vmul.f32 %v2452, %v2466
  %v2473 = vmul.f32 %v2453, %v2466
  %v2474 = vmul.f32 %v2454, %v2466
  %v2475 = vmul.f32 %v2455, %v2466
  %v2476 = vmul.f32 %v2456, %v2466
  %v2477 = vmul.f32 %v2457, %v2466
  %v2478 = vmul.f32 %v2458, %v2466
  %v2479 = vmul.f32 %v2459, %v2466
  %v2480 = vmul.f32 %v2460, %v2466
  %v2481 = vmul.f32 %v2461, %v2466
  %v2482 = vmul.f32 %v2462, %v2466
  %v2483 = vsel %vm48, %v2467, 0.0
  %v2484 = vrot.slane %v2483, 4
  %v2485 = vadd.f32 %v2483, %v2484
  %v2486 = vrot.slane %v2485, 2
  %v2487 = vadd.f32 %v2485, %v2486
  %v2488 = vrot.slane %v2487, 1
  %v2489 = vadd.f32 %v2487, %v2488
  %v2490 = vsel %vm48, %v2468, 0.0
  %v2491 = vrot.slane %v2490, 4
  %v2492 = vadd.f32 %v2490, %v2491
  %v2493 = vrot.slane %v2492, 2
  %v2494 = vadd.f32 %v2492, %v2493
  %v2495 = vrot.slane %v2494, 1
  %v2496 = vadd.f32 %v2494, %v2495
  %v2497 = vsel %vm48, %v2469, 0.0
  %v2498 = vrot.slane %v2497, 4
  %v2499 = vadd.f32 %v2497, %v2498
  %v2500 = vrot.slane %v2499, 2
  %v2501 = vadd.f32 %v2499, %v2500
  %v2502 = vrot.slane %v2501, 1
  %v2503 = vadd.f32 %v2501, %v2502
  %v2504 = vsel %vm48, %v2470, 0.0
  %v2505 = vrot.slane %v2504, 4
  %v2506 = vadd.f32 %v2504, %v2505
  %v2507 = vrot.slane %v2506, 2
  %v2508 = vadd.f32 %v2506, %v2507
  %v2509 = vrot.slane %v2508, 1
  %v2510 = vadd.f32 %v2508, %v2509
  %v2511 = vsel %vm48, %v2471, 0.0
  %v2512 = vrot.slane %v2511, 4
  %v2513 = vadd.f32 %v2511, %v2512
  %v2514 = vrot.slane %v2513, 2
  %v2515 = vadd.f32 %v2513, %v2514
  %v2516 = vrot.slane %v2515, 1
  %v2517 = vadd.f32 %v2515, %v2516
  %v2518 = vsel %vm48, %v2472, 0.0
  %v2519 = vrot.slane %v2518, 4
  %v2520 = vadd.f32 %v2518, %v2519
  %v2521 = vrot.slane %v2520, 2
  %v2522 = vadd.f32 %v2520, %v2521
  %v2523 = vrot.slane %v2522, 1
  %v2524 = vadd.f32 %v2522, %v2523
  %v2525 = vsel %vm48, %v2473, 0.0
  %v2526 = vrot.slane %v2525, 4
  %v2527 = vadd.f32 %v2525, %v2526
  %v2528 = vrot.slane %v2527, 2
  %v2529 = vadd.f32 %v2527, %v2528
  %v2530 = vrot.slane %v2529, 1
  %v2531 = vadd.f32 %v2529, %v2530
  %v2532 = vsel %vm48, %v2474, 0.0
  %v2533 = vrot.slane %v2532, 4
  %v2534 = vadd.f32 %v2532, %v2533
  %v2535 = vrot.slane %v2534, 2
  %v2536 = vadd.f32 %v2534, %v2535
  %v2537 = vrot.slane %v2536, 1
  %v2538 = vadd.f32 %v2536, %v2537
  %v2539 = vsel %vm48, %v2475, 0.0
  %v2540 = vrot.slane %v2539, 4
  %v2541 = vadd.f32 %v2539, %v2540
  %v2542 = vrot.slane %v2541, 2
  %v2543 = vadd.f32 %v2541, %v2542
  %v2544 = vrot.slane %v2543, 1
  %v2545 = vadd.f32 %v2543, %v2544
  %v2546 = vsel %vm48, %v2476, 0.0
  %v2547 = vrot.slane %v2546, 4
  %v2548 = vadd.f32 %v2546, %v2547
  %v2549 = vrot.slane %v2548, 2
  %v2550 = vadd.f32 %v2548, %v2549
  %v2551 = vrot.slane %v2550, 1
  %v2552 = vadd.f32 %v2550, %v2551
  %v2553 = vsel %vm48, %v2477, 0.0
  %v2554 = vrot.slane %v2553, 4
  %v2555 = vadd.f32 %v2553, %v2554
  %v2556 = vrot.slane %v2555, 2
  %v2557 = vadd.f32 %v2555, %v2556
  %v2558 = vrot.slane %v2557, 1
  %v2559 = vadd.f32 %v2557, %v2558
  %v2560 = vsel %vm48, %v2478, 0.0
  %v2561 = vrot.slane %v2560, 4
  %v2562 = vadd.f32 %v2560, %v2561
  %v2563 = vrot.slane %v2562, 2
  %v2564 = vadd.f32 %v2562, %v2563
  %v2565 = vrot.slane %v2564, 1
  %v2566 = vadd.f32 %v2564, %v2565
  %v2567 = vsel %vm48, %v2479, 0.0
  %v2568 = vrot.slane %v2567, 4
  %v2569 = vadd.f32 %v2567, %v2568
  %v2570 = vrot.slane %v2569, 2
  %v2571 = vadd.f32 %v2569, %v2570
  %v2572 = vrot.slane %v2571, 1
  %v2573 = vadd.f32 %v2571, %v2572
  %v2574 = vsel %vm48, %v2480, 0.0
  %v2575 = vrot.slane %v2574, 4
  %v2576 = vadd.f32 %v2574, %v2575
  %v2577 = vrot.slane %v2576, 2
  %v2578 = vadd.f32 %v2576, %v2577
  %v2579 = vrot.slane %v2578, 1
  %v2580 = vadd.f32 %v2578, %v2579
  %v2581 = vsel %vm48, %v2481, 0.0
  %v2582 = vrot.slane %v2581, 4
  %v2583 = vadd.f32 %v2581, %v2582
  %v2584 = vrot.slane %v2583, 2
  %v2585 = vadd.f32 %v2583, %v2584
  %v2586 = vrot.slane %v2585, 1
  %v2587 = vadd.f32 %v2585, %v2586
  %v2588 = vsel %vm48, %v2482, 0.0
  %v2589 = vrot.slane %v2588, 4
  %v2590 = vadd.f32 %v2588, %v2589
  %v2591 = vrot.slane %v2590, 2
  %v2592 = vadd.f32 %v2590, %v2591
  %v2593 = vrot.slane %v2592, 1
  %v2594 = vadd.f32 %v2592, %v2593
  %v2595 = vadd.f32 %v2489, %v37
  %v2596 = vadd.f32 %v2496, %v554
  %v2597 = vadd.f32 %v2503, %v555
  %v2598 = vadd.f32 %v2510, %v556
  %v2599 = vadd.f32 %v2517, %v557
  %v2600 = vadd.f32 %v2524, %v558
  %v2601 = vadd.f32 %v2531, %v559
  %v2602 = vadd.f32 %v2538, %v560
  %v2603 = vadd.f32 %v2545, %v38
  %v2604 = vadd.f32 %v2552, %v561
  %v2605 = vadd.f32 %v2559, %v562
  %v2606 = vadd.f32 %v2566, %v563
  %v2607 = vadd.f32 %v2573, %v564
  %v2608 = vadd.f32 %v2580, %v565
  %v2609 = vadd.f32 %v2587, %v566
  %v2610 = vadd.f32 %v2594, %v567
  %v2627 = vrot.slane %v2596, 7
  %v2628 = vsel %vm617, %v2627, %v2595
  %v2629 = vrot.slane %v2597, 6
  %v2630 = vsel %vm620, %v2629, %v2628
  %v2631 = vrot.slane %v2598, 5
  %v2632 = vsel %vm623, %v2631, %v2630
  %v2633 = vrot.slane %v2599, 4
  %v2634 = vsel %vm626, %v2633, %v2632
  %v2635 = vrot.slane %v2600, 3
  %v2636 = vsel %vm629, %v2635, %v2634
  %v2637 = vrot.slane %v2601, 2
  %v2638 = vsel %vm632, %v2637, %v2636
  %v2639 = vrot.slane %v2602, 1
  %v2640 = vsel %vm635, %v2639, %v2638
  %v2641 = vrot.slane %v2604, 7
  %v2642 = vsel %vm617, %v2641, %v2603
  %v2643 = vrot.slane %v2605, 6
  %v2644 = vsel %vm620, %v2643, %v2642
  %v2645 = vrot.slane %v2606, 5
  %v2646 = vsel %vm623, %v2645, %v2644
  %v2647 = vrot.slane %v2607, 4
  %v2648 = vsel %vm626, %v2647, %v2646
  %v2649 = vrot.slane %v2608, 3
  %v2650 = vsel %vm629, %v2649, %v2648
  %v2651 = vrot.slane %v2609, 2
  %v2652 = vsel %vm632, %v2651, %v2650
  %v2653 = vrot.slane %v2610, 1
  %v2654 = vsel %vm635, %v2653, %v2652
  %v2657 = vsel %vm48, %v2640, -inf
  %2658 = vmax.xlane.f32.xlu0 %v2657
  %v2659 = vpop.xlane.xlu0 %2658
  %v2660 = vsel %vm48, %v2654, -inf
  %2661 = vmax.xlane.f32.xlu0 %v2660
  %v2662 = vpop.xlane.xlu0 %2661
  %v2665 = vrot.slane %v2659, 1
  %v2666 = vrot.slane %v2659, 2
  %v2667 = vrot.slane %v2659, 3
  %v2668 = vrot.slane %v2659, 4
  %v2669 = vrot.slane %v2659, 5
  %v2670 = vrot.slane %v2659, 6
  %v2671 = vrot.slane %v2659, 7
  %v2672 = vrot.slane %v2662, 1
  %v2673 = vrot.slane %v2662, 2
  %v2674 = vrot.slane %v2662, 3
  %v2675 = vrot.slane %v2662, 4
  %v2676 = vrot.slane %v2662, 5
  %v2677 = vrot.slane %v2662, 6
  %v2678 = vrot.slane %v2662, 7
  %v2695 = vsub.f32 %v2595, %v2659
  %v2696 = vsub.f32 %v2596, %v2665
  %v2697 = vsub.f32 %v2597, %v2666
  %v2698 = vsub.f32 %v2598, %v2667
  %v2699 = vsub.f32 %v2599, %v2668
  %v2700 = vsub.f32 %v2600, %v2669
  %v2701 = vsub.f32 %v2601, %v2670
  %v2702 = vsub.f32 %v2602, %v2671
  %v2703 = vsub.f32 %v2603, %v2662
  %v2704 = vsub.f32 %v2604, %v2672
  %v2705 = vsub.f32 %v2605, %v2673
  %v2706 = vsub.f32 %v2606, %v2674
  %v2707 = vsub.f32 %v2607, %v2675
  %v2708 = vsub.f32 %v2608, %v2676
  %v2709 = vsub.f32 %v2609, %v2677
  %v2710 = vsub.f32 %v2610, %v2678
  %v2711 = vmul.f32 %v2695, 1.442695
  %v2712 = vpow.pop %v2711
  %v2713 = vmul.f32 %v2696, 1.442695
  %v2714 = vpow.pop %v2713
  %v2715 = vmul.f32 %v2697, 1.442695
  %v2716 = vpow.pop %v2715
  %v2717 = vmul.f32 %v2698, 1.442695
  %v2718 = vpow.pop %v2717
  %v2719 = vmul.f32 %v2699, 1.442695
  %v2720 = vpow.pop %v2719
  %v2721 = vmul.f32 %v2700, 1.442695
  %v2722 = vpow.pop %v2721
  %v2723 = vmul.f32 %v2701, 1.442695
  %v2724 = vpow.pop %v2723
  %v2725 = vmul.f32 %v2702, 1.442695
  %v2726 = vpow.pop %v2725
  %v2727 = vmul.f32 %v2703, 1.442695
  %v2728 = vpow.pop %v2727
  %v2729 = vmul.f32 %v2704, 1.442695
  %v2730 = vpow.pop %v2729
  %v2731 = vmul.f32 %v2705, 1.442695
  %v2732 = vpow.pop %v2731
  %v2733 = vmul.f32 %v2706, 1.442695
  %v2734 = vpow.pop %v2733
  %v2735 = vmul.f32 %v2707, 1.442695
  %v2736 = vpow.pop %v2735
  %v2737 = vmul.f32 %v2708, 1.442695
  %v2738 = vpow.pop %v2737
  %v2739 = vmul.f32 %v2709, 1.442695
  %v2740 = vpow.pop %v2739
  %v2741 = vmul.f32 %v2710, 1.442695
  %v2742 = vpow.pop %v2741
  %v2743 = vmul.f32 %v2712, %v33
  %v2744 = vmul.f32 %v2714, %v741
  %v2745 = vmul.f32 %v2716, %v742
  %v2746 = vmul.f32 %v2718, %v743
  %v2747 = vmul.f32 %v2720, %v744
  %v2748 = vmul.f32 %v2722, %v745
  %v2749 = vmul.f32 %v2724, %v746
  %v2750 = vmul.f32 %v2726, %v747
  %v2751 = vmul.f32 %v2728, %v34
  %v2752 = vmul.f32 %v2730, %v748
  %v2753 = vmul.f32 %v2732, %v749
  %v2754 = vmul.f32 %v2734, %v750
  %v2755 = vmul.f32 %v2736, %v751
  %v2756 = vmul.f32 %v2738, %v752
  %v2757 = vmul.f32 %v2740, %v753
  %v2758 = vmul.f32 %v2742, %v754
  %v2775 = vrot.slane %v2744, 7
  %v2776 = vsel %vm617, %v2775, %v2743
  %v2777 = vrot.slane %v2745, 6
  %v2778 = vsel %vm620, %v2777, %v2776
  %v2779 = vrot.slane %v2746, 5
  %v2780 = vsel %vm623, %v2779, %v2778
  %v2781 = vrot.slane %v2747, 4
  %v2782 = vsel %vm626, %v2781, %v2780
  %v2783 = vrot.slane %v2748, 3
  %v2784 = vsel %vm629, %v2783, %v2782
  %v2785 = vrot.slane %v2749, 2
  %v2786 = vsel %vm632, %v2785, %v2784
  %v2787 = vrot.slane %v2750, 1
  %v2788 = vsel %vm635, %v2787, %v2786
  %v2789 = vrot.slane %v2752, 7
  %v2790 = vsel %vm617, %v2789, %v2751
  %v2791 = vrot.slane %v2753, 6
  %v2792 = vsel %vm620, %v2791, %v2790
  %v2793 = vrot.slane %v2754, 5
  %v2794 = vsel %vm623, %v2793, %v2792
  %v2795 = vrot.slane %v2755, 4
  %v2796 = vsel %vm626, %v2795, %v2794
  %v2797 = vrot.slane %v2756, 3
  %v2798 = vsel %vm629, %v2797, %v2796
  %v2799 = vrot.slane %v2757, 2
  %v2800 = vsel %vm632, %v2799, %v2798
  %v2801 = vrot.slane %v2758, 1
  %v2802 = vsel %vm635, %v2801, %v2800
  %v2805 = vsel %vm48, %v2788, 0.0
  %2806 = vadd.xlane.f32.xlu0 %v2805
  %v2807 = vpop.xlane.xlu0 %2806
  %v2808 = vsel %vm48, %v2802, 0.0
  %2809 = vadd.xlane.f32.xlu0 %v2808
  %v2810 = vpop.xlane.xlu0 %2809
  %v2811 = vrcp.pop %v2807
  %v2812 = vrcp.pop %v2810
  %v2815 = vrot.slane %v2811, 1
  %v2816 = vrot.slane %v2811, 2
  %v2817 = vrot.slane %v2811, 3
  %v2818 = vrot.slane %v2811, 4
  %v2819 = vrot.slane %v2811, 5
  %v2820 = vrot.slane %v2811, 6
  %v2821 = vrot.slane %v2811, 7
  %v2822 = vrot.slane %v2812, 1
  %v2823 = vrot.slane %v2812, 2
  %v2824 = vrot.slane %v2812, 3
  %v2825 = vrot.slane %v2812, 4
  %v2826 = vrot.slane %v2812, 5
  %v2827 = vrot.slane %v2812, 6
  %v2828 = vrot.slane %v2812, 7
  %v2845 = vmul.f32 %v2743, %v2811
  %v2846 = vmul.f32 %v2744, %v2815
  %v2847 = vmul.f32 %v2745, %v2816
  %v2848 = vmul.f32 %v2746, %v2817
  %v2849 = vmul.f32 %v2747, %v2818
  %v2850 = vmul.f32 %v2748, %v2819
  %v2851 = vmul.f32 %v2749, %v2820
  %v2852 = vmul.f32 %v2750, %v2821
  %v2853 = vmul.f32 %v2751, %v2812
  %v2854 = vmul.f32 %v2752, %v2822
  %v2855 = vmul.f32 %v2753, %v2823
  %v2856 = vmul.f32 %v2754, %v2824
  %v2857 = vmul.f32 %v2755, %v2825
  %v2858 = vmul.f32 %v2756, %v2826
  %v2859 = vmul.f32 %v2757, %v2827
  %v2860 = vmul.f32 %v2758, %v2828
  %v2877 = vrot.slane %v2846, 7
  %v2878 = vsel %vm617, %v2877, %v2845
  %v2879 = vrot.slane %v2847, 6
  %v2880 = vsel %vm620, %v2879, %v2878
  %v2881 = vrot.slane %v2848, 5
  %v2882 = vsel %vm623, %v2881, %v2880
  %v2883 = vrot.slane %v2849, 4
  %v2884 = vsel %vm626, %v2883, %v2882
  %v2885 = vrot.slane %v2850, 3
  %v2886 = vsel %vm629, %v2885, %v2884
  %v2887 = vrot.slane %v2851, 2
  %v2888 = vsel %vm632, %v2887, %v2886
  %v2889 = vrot.slane %v2852, 1
  %v2890 = vsel %vm635, %v2889, %v2888
  %v2891 = vrot.slane %v2854, 7
  %v2892 = vsel %vm617, %v2891, %v2853
  %v2893 = vrot.slane %v2855, 6
  %v2894 = vsel %vm620, %v2893, %v2892
  %v2895 = vrot.slane %v2856, 5
  %v2896 = vsel %vm623, %v2895, %v2894
  %v2897 = vrot.slane %v2857, 4
  %v2898 = vsel %vm626, %v2897, %v2896
  %v2899 = vrot.slane %v2858, 3
  %v2900 = vsel %vm629, %v2899, %v2898
  %v2901 = vrot.slane %v2859, 2
  %v2902 = vsel %vm632, %v2901, %v2900
  %v2903 = vrot.slane %v2860, 1
  %v2904 = vsel %vm635, %v2903, %v2902
  %2905 = vrot.lane.b32.xlu0 %v122, 104
  %v2906 = vpop.permute.xlu0 %2905
  %2907 = vrot.lane.b32.xlu0 %v127, 104
  %v2908 = vpop.permute.xlu0 %2907
  %2911 = vrot.lane.b32.xlu0 %v892, 104
  %v2912 = vpop.permute.xlu0 %2911
  %v2914 = vsel %vm48, %v2890, 0
  %v2916 = vsel %vm48, %v2904, 0
  %2918 = vmatprep.subr.mxu0 0.0
  %2919 = vmatpush1.msra.mxu0 %v2906
  %2920 = vmatprep.subr.mxu0 0.0
  %2921 = vmatpush1.msra.mxu0 %v2908
  %2922 = vmatprep.subr.mxu0 0.0
  %2923 = vmatpush1.msra.mxu0 0.0
  %2924 = vmatprep.subr.mxu0 0.0
  %2925 = vmatpush1.msra.mxu0 0.0
  %2926 = vmatprep.subr.mxu0 0.0
  %2927 = vmatpush1.msra.mxu0 0.0
  %2928 = vmatprep.subr.mxu0 0.0
  %2929 = vmatpush1.msra.mxu0 0.0
  %2930 = vmatprep.subr.mxu0 0.0
  %2931 = vmatpush1.msra.mxu0 0.0
  %2932 = vmatprep.subr.mxu0 0.0
  %2933 = vmatpush1.msra.mxu0 0.0
  %2934 = vmatprep.subr.mxu0 0.0
  %2935 = vmatpush1.msra.mxu0 0.0
  %2936 = vmatprep.subr.mxu0 0.0
  %2937 = vmatpush1.msra.mxu0 0.0
  %2938 = vmatprep.subr.mxu0 0.0
  %2939 = vmatpush1.msra.mxu0 0.0
  %2940 = vmatprep.subr.mxu0 0.0
  %2941 = vmatpush1.msra.mxu0 0.0
  %2942 = vmatprep.subr.mxu0 0.0
  %2943 = vmatpush1.msra.mxu0 0.0
  %2944 = vmatprep.subr.mxu0 0.0
  %2945 = vmatpush1.msra.mxu0 0.0
  %2946 = vmatprep.subr.mxu0 0.0
  %2947 = vmatpush1.msra.mxu0 0.0
  %2948 = vmatprep.subr.mxu0 0.0
  %2949 = vmatpush1.msra.mxu0 0.0
  %2950 = vmatprep.subr.mxu0 0.0
  %2951 = vmatpush1.msra.mxu0 0.0
  %2952 = vmatprep.subr.mxu0 0.0
  %2953 = vmatpush1.msra.mxu0 0.0
  %2954 = vmatprep.subr.mxu0 0.0
  %2955 = vmatpush1.msra.mxu0 0.0
  %2956 = vmatprep.subr.mxu0 0.0
  %2957 = vmatpush1.msra.mxu0 0.0
  %2958 = vmatprep.subr.mxu0 0.0
  %2959 = vmatpush1.msra.mxu0 0.0
  %2960 = vmatprep.subr.mxu0 0.0
  %2961 = vmatpush1.msra.mxu0 0.0
  %2962 = vmatprep.subr.mxu0 0.0
  %2963 = vmatpush1.msra.mxu0 0.0
  %2964 = vmatprep.subr.mxu0 0.0
  %2965 = vmatpush1.msra.mxu0 0.0
  %2966 = vmatprep.subr.mxu0 0.0
  %2967 = vmatpush1.msra.mxu0 0.0
  %2968 = vmatprep.subr.mxu0 0.0
  %2969 = vmatpush1.msra.mxu0 0.0
  %2970 = vmatprep.subr.mxu0 0.0
  %2971 = vmatpush1.msra.mxu0 0.0
  %2972 = vmatprep.subr.mxu0 0.0
  %2973 = vmatpush1.msra.mxu0 0.0
  %2974 = vmatprep.subr.mxu0 0.0
  %2975 = vmatpush1.msra.mxu0 0.0
  %2976 = vmatprep.subr.mxu0 0.0
  %2977 = vmatpush1.msra.mxu0 0.0
  %2978 = vmatprep.subr.mxu0 0.0
  %2979 = vmatpush1.msra.mxu0 0.0
  %2980 = vmatprep.subr.mxu0 0.0
  %2981 = vmatpush1.msra.mxu0 0.0
  %2982 = vmatprep.mubr.f32.mxu0 0.0
  %2983 = vmatmul.mubr.f32.gmra.mrb[0].mxu0 %v2914
  %v2984 = vpop.f32.mrb[0].mxu0
  %v2985 = vadd.f32 %v2912, %v2984
  %v2986 = vpop.f32.mrb[0].mxu0
  %2987 = vmatprep.mubr.f32.mxu0 0.0
  %2988 = vmatmul.mubr.f32.gmra.mrb[0].mxu0 %v2916
  %v2989 = vpop.f32.mrb[0].mxu0
  %v2990 = vadd.f32 %v2912, %v2989
  %v2991 = vpop.f32.mrb[0].mxu0
  %2992 = vdwg.mxu0
  %s2994 = sor.u32 256, 32
  %2995 = vbcast.lane.b32.xlu0 %v244, %s2994
  %v2996 = vpop.permute.xlu0 %2995
  %s2998 = sor.u32 256, 32
  %2999 = vbcast.lane.b32.xlu0 %v251, %s2998
  %v3000 = vpop.permute.xlu0 %2999
  %s3002 = sor.u32 256, 32
  %3003 = vbcast.lane.b32.xlu0 %v258, %s3002
  %v3004 = vpop.permute.xlu0 %3003
  %s3006 = sor.u32 256, 32
  %3007 = vbcast.lane.b32.xlu0 %v265, %s3006
  %v3008 = vpop.permute.xlu0 %3007
  %s3010 = sor.u32 256, 32
  %3011 = vbcast.lane.b32.xlu0 %v272, %s3010
  %v3012 = vpop.permute.xlu0 %3011
  %s3014 = sor.u32 256, 32
  %3015 = vbcast.lane.b32.xlu0 %v279, %s3014
  %v3016 = vpop.permute.xlu0 %3015
  %s3018 = sor.u32 256, 32
  %3019 = vbcast.lane.b32.xlu0 %v286, %s3018
  %v3020 = vpop.permute.xlu0 %3019
  %s3022 = sor.u32 256, 32
  %3023 = vbcast.lane.b32.xlu0 %v293, %s3022
  %v3024 = vpop.permute.xlu0 %3023
  %s3026 = sor.u32 256, 32
  %3027 = vbcast.lane.b32.xlu0 %v300, %s3026
  %v3028 = vpop.permute.xlu0 %3027
  %s3030 = sor.u32 256, 32
  %3031 = vbcast.lane.b32.xlu0 %v307, %s3030
  %v3032 = vpop.permute.xlu0 %3031
  %s3034 = sor.u32 256, 32
  %3035 = vbcast.lane.b32.xlu0 %v314, %s3034
  %v3036 = vpop.permute.xlu0 %3035
  %s3038 = sor.u32 256, 32
  %3039 = vbcast.lane.b32.xlu0 %v321, %s3038
  %v3040 = vpop.permute.xlu0 %3039
  %s3042 = sor.u32 256, 32
  %3043 = vbcast.lane.b32.xlu0 %v328, %s3042
  %v3044 = vpop.permute.xlu0 %3043
  %s3046 = sor.u32 256, 32
  %3047 = vbcast.lane.b32.xlu0 %v335, %s3046
  %v3048 = vpop.permute.xlu0 %3047
  %s3050 = sor.u32 256, 32
  %3051 = vbcast.lane.b32.xlu0 %v342, %s3050
  %v3052 = vpop.permute.xlu0 %3051
  %s3054 = sor.u32 256, 32
  %3055 = vbcast.lane.b32.xlu0 %v349, %s3054
  %v3056 = vpop.permute.xlu0 %3055
  %v3057 = vadd.f32 %v2996, %v229
  %v3058 = vadd.f32 %v3000, %v229
  %v3059 = vadd.f32 %v3004, %v229
  %v3060 = vadd.f32 %v3008, %v229
  %v3061 = vadd.f32 %v3012, %v229
  %v3062 = vadd.f32 %v3016, %v229
  %v3063 = vadd.f32 %v3020, %v229
  %v3064 = vadd.f32 %v3024, %v229
  %v3065 = vadd.f32 %v3028, %v229
  %v3066 = vadd.f32 %v3032, %v229
  %v3067 = vadd.f32 %v3036, %v229
  %v3068 = vadd.f32 %v3040, %v229
  %v3069 = vadd.f32 %v3044, %v229
  %v3070 = vadd.f32 %v3048, %v229
  %v3071 = vadd.f32 %v3052, %v229
  %v3072 = vadd.f32 %v3056, %v229
  %vm3073 = vcmp.ge.f32.partialorder %v3057, 0.0
  %vm3074 = vcmp.ge.f32.partialorder %v3058, 0.0
  %vm3075 = vcmp.ge.f32.partialorder %v3059, 0.0
  %vm3076 = vcmp.ge.f32.partialorder %v3060, 0.0
  %vm3077 = vcmp.ge.f32.partialorder %v3061, 0.0
  %vm3078 = vcmp.ge.f32.partialorder %v3062, 0.0
  %vm3079 = vcmp.ge.f32.partialorder %v3063, 0.0
  %vm3080 = vcmp.ge.f32.partialorder %v3064, 0.0
  %vm3081 = vcmp.ge.f32.partialorder %v3065, 0.0
  %vm3082 = vcmp.ge.f32.partialorder %v3066, 0.0
  %vm3083 = vcmp.ge.f32.partialorder %v3067, 0.0
  %vm3084 = vcmp.ge.f32.partialorder %v3068, 0.0
  %vm3085 = vcmp.ge.f32.partialorder %v3069, 0.0
  %vm3086 = vcmp.ge.f32.partialorder %v3070, 0.0
  %vm3087 = vcmp.ge.f32.partialorder %v3071, 0.0
  %vm3088 = vcmp.ge.f32.partialorder %v3072, 0.0
  %v3089 = vmul.f32 %v3057, 0.2
  %v3090 = vmul.f32 %v3058, 0.2
  %v3091 = vmul.f32 %v3059, 0.2
  %v3092 = vmul.f32 %v3060, 0.2
  %v3093 = vmul.f32 %v3061, 0.2
  %v3094 = vmul.f32 %v3062, 0.2
  %v3095 = vmul.f32 %v3063, 0.2
  %v3096 = vmul.f32 %v3064, 0.2
  %v3097 = vmul.f32 %v3065, 0.2
  %v3098 = vmul.f32 %v3066, 0.2
  %v3099 = vmul.f32 %v3067, 0.2
  %v3100 = vmul.f32 %v3068, 0.2
  %v3101 = vmul.f32 %v3069, 0.2
  %v3102 = vmul.f32 %v3070, 0.2
  %v3103 = vmul.f32 %v3071, 0.2
  %v3104 = vmul.f32 %v3072, 0.2
  %v3105 = vsel %vm3073, %v3057, %v3089
  %v3106 = vsel %vm3074, %v3058, %v3090
  %v3107 = vsel %vm3075, %v3059, %v3091
  %v3108 = vsel %vm3076, %v3060, %v3092
  %v3109 = vsel %vm3077, %v3061, %v3093
  %v3110 = vsel %vm3078, %v3062, %v3094
  %v3111 = vsel %vm3079, %v3063, %v3095
  %v3112 = vsel %vm3080, %v3064, %v3096
  %v3113 = vsel %vm3081, %v3065, %v3097
  %v3114 = vsel %vm3082, %v3066, %v3098
  %v3115 = vsel %vm3083, %v3067, %v3099
  %v3116 = vsel %vm3084, %v3068, %v3100
  %v3117 = vsel %vm3085, %v3069, %v3101
  %v3118 = vsel %vm3086, %v3070, %v3102
  %v3119 = vsel %vm3087, %v3071, %v3103
  %v3120 = vsel %vm3088, %v3072, %v3104
  %s3122 = sor.u32 256, 32
  %3123 = vbcast.lane.b32.xlu0 %v420, %s3122
  %v3124 = vpop.permute.xlu0 %3123
  %v3125 = vmul.f32 %v3105, %v3124
  %v3126 = vmul.f32 %v3106, %v3124
  %v3127 = vmul.f32 %v3107, %v3124
  %v3128 = vmul.f32 %v3108, %v3124
  %v3129 = vmul.f32 %v3109, %v3124
  %v3130 = vmul.f32 %v3110, %v3124
  %v3131 = vmul.f32 %v3111, %v3124
  %v3132 = vmul.f32 %v3112, %v3124
  %v3133 = vmul.f32 %v3113, %v3124
  %v3134 = vmul.f32 %v3114, %v3124
  %v3135 = vmul.f32 %v3115, %v3124
  %v3136 = vmul.f32 %v3116, %v3124
  %v3137 = vmul.f32 %v3117, %v3124
  %v3138 = vmul.f32 %v3118, %v3124
  %v3139 = vmul.f32 %v3119, %v3124
  %v3140 = vmul.f32 %v3120, %v3124
  %v3141 = vsel %vm48, %v3125, 0.0
  %v3142 = vrot.slane %v3141, 4
  %v3143 = vadd.f32 %v3141, %v3142
  %v3144 = vrot.slane %v3143, 2
  %v3145 = vadd.f32 %v3143, %v3144
  %v3146 = vrot.slane %v3145, 1
  %v3147 = vadd.f32 %v3145, %v3146
  %v3148 = vsel %vm48, %v3126, 0.0
  %v3149 = vrot.slane %v3148, 4
  %v3150 = vadd.f32 %v3148, %v3149
  %v3151 = vrot.slane %v3150, 2
  %v3152 = vadd.f32 %v3150, %v3151
  %v3153 = vrot.slane %v3152, 1
  %v3154 = vadd.f32 %v3152, %v3153
  %v3155 = vsel %vm48, %v3127, 0.0
  %v3156 = vrot.slane %v3155, 4
  %v3157 = vadd.f32 %v3155, %v3156
  %v3158 = vrot.slane %v3157, 2
  %v3159 = vadd.f32 %v3157, %v3158
  %v3160 = vrot.slane %v3159, 1
  %v3161 = vadd.f32 %v3159, %v3160
  %v3162 = vsel %vm48, %v3128, 0.0
  %v3163 = vrot.slane %v3162, 4
  %v3164 = vadd.f32 %v3162, %v3163
  %v3165 = vrot.slane %v3164, 2
  %v3166 = vadd.f32 %v3164, %v3165
  %v3167 = vrot.slane %v3166, 1
  %v3168 = vadd.f32 %v3166, %v3167
  %v3169 = vsel %vm48, %v3129, 0.0
  %v3170 = vrot.slane %v3169, 4
  %v3171 = vadd.f32 %v3169, %v3170
  %v3172 = vrot.slane %v3171, 2
  %v3173 = vadd.f32 %v3171, %v3172
  %v3174 = vrot.slane %v3173, 1
  %v3175 = vadd.f32 %v3173, %v3174
  %v3176 = vsel %vm48, %v3130, 0.0
  %v3177 = vrot.slane %v3176, 4
  %v3178 = vadd.f32 %v3176, %v3177
  %v3179 = vrot.slane %v3178, 2
  %v3180 = vadd.f32 %v3178, %v3179
  %v3181 = vrot.slane %v3180, 1
  %v3182 = vadd.f32 %v3180, %v3181
  %v3183 = vsel %vm48, %v3131, 0.0
  %v3184 = vrot.slane %v3183, 4
  %v3185 = vadd.f32 %v3183, %v3184
  %v3186 = vrot.slane %v3185, 2
  %v3187 = vadd.f32 %v3185, %v3186
  %v3188 = vrot.slane %v3187, 1
  %v3189 = vadd.f32 %v3187, %v3188
  %v3190 = vsel %vm48, %v3132, 0.0
  %v3191 = vrot.slane %v3190, 4
  %v3192 = vadd.f32 %v3190, %v3191
  %v3193 = vrot.slane %v3192, 2
  %v3194 = vadd.f32 %v3192, %v3193
  %v3195 = vrot.slane %v3194, 1
  %v3196 = vadd.f32 %v3194, %v3195
  %v3197 = vsel %vm48, %v3133, 0.0
  %v3198 = vrot.slane %v3197, 4
  %v3199 = vadd.f32 %v3197, %v3198
  %v3200 = vrot.slane %v3199, 2
  %v3201 = vadd.f32 %v3199, %v3200
  %v3202 = vrot.slane %v3201, 1
  %v3203 = vadd.f32 %v3201, %v3202
  %v3204 = vsel %vm48, %v3134, 0.0
  %v3205 = vrot.slane %v3204, 4
  %v3206 = vadd.f32 %v3204, %v3205
  %v3207 = vrot.slane %v3206, 2
  %v3208 = vadd.f32 %v3206, %v3207
  %v3209 = vrot.slane %v3208, 1
  %v3210 = vadd.f32 %v3208, %v3209
  %v3211 = vsel %vm48, %v3135, 0.0
  %v3212 = vrot.slane %v3211, 4
  %v3213 = vadd.f32 %v3211, %v3212
  %v3214 = vrot.slane %v3213, 2
  %v3215 = vadd.f32 %v3213, %v3214
  %v3216 = vrot.slane %v3215, 1
  %v3217 = vadd.f32 %v3215, %v3216
  %v3218 = vsel %vm48, %v3136, 0.0
  %v3219 = vrot.slane %v3218, 4
  %v3220 = vadd.f32 %v3218, %v3219
  %v3221 = vrot.slane %v3220, 2
  %v3222 = vadd.f32 %v3220, %v3221
  %v3223 = vrot.slane %v3222, 1
  %v3224 = vadd.f32 %v3222, %v3223
  %v3225 = vsel %vm48, %v3137, 0.0
  %v3226 = vrot.slane %v3225, 4
  %v3227 = vadd.f32 %v3225, %v3226
  %v3228 = vrot.slane %v3227, 2
  %v3229 = vadd.f32 %v3227, %v3228
  %v3230 = vrot.slane %v3229, 1
  %v3231 = vadd.f32 %v3229, %v3230
  %v3232 = vsel %vm48, %v3138, 0.0
  %v3233 = vrot.slane %v3232, 4
  %v3234 = vadd.f32 %v3232, %v3233
  %v3235 = vrot.slane %v3234, 2
  %v3236 = vadd.f32 %v3234, %v3235
  %v3237 = vrot.slane %v3236, 1
  %v3238 = vadd.f32 %v3236, %v3237
  %v3239 = vsel %vm48, %v3139, 0.0
  %v3240 = vrot.slane %v3239, 4
  %v3241 = vadd.f32 %v3239, %v3240
  %v3242 = vrot.slane %v3241, 2
  %v3243 = vadd.f32 %v3241, %v3242
  %v3244 = vrot.slane %v3243, 1
  %v3245 = vadd.f32 %v3243, %v3244
  %v3246 = vsel %vm48, %v3140, 0.0
  %v3247 = vrot.slane %v3246, 4
  %v3248 = vadd.f32 %v3246, %v3247
  %v3249 = vrot.slane %v3248, 2
  %v3250 = vadd.f32 %v3248, %v3249
  %v3251 = vrot.slane %v3250, 1
  %v3252 = vadd.f32 %v3250, %v3251
  %v3253 = vadd.f32 %v3147, %v37
  %v3254 = vadd.f32 %v3154, %v554
  %v3255 = vadd.f32 %v3161, %v555
  %v3256 = vadd.f32 %v3168, %v556
  %v3257 = vadd.f32 %v3175, %v557
  %v3258 = vadd.f32 %v3182, %v558
  %v3259 = vadd.f32 %v3189, %v559
  %v3260 = vadd.f32 %v3196, %v560
  %v3261 = vadd.f32 %v3203, %v38
  %v3262 = vadd.f32 %v3210, %v561
  %v3263 = vadd.f32 %v3217, %v562
  %v3264 = vadd.f32 %v3224, %v563
  %v3265 = vadd.f32 %v3231, %v564
  %v3266 = vadd.f32 %v3238, %v565
  %v3267 = vadd.f32 %v3245, %v566
  %v3268 = vadd.f32 %v3252, %v567
  %v3285 = vrot.slane %v3254, 7
  %v3286 = vsel %vm617, %v3285, %v3253
  %v3287 = vrot.slane %v3255, 6
  %v3288 = vsel %vm620, %v3287, %v3286
  %v3289 = vrot.slane %v3256, 5
  %v3290 = vsel %vm623, %v3289, %v3288
  %v3291 = vrot.slane %v3257, 4
  %v3292 = vsel %vm626, %v3291, %v3290
  %v3293 = vrot.slane %v3258, 3
  %v3294 = vsel %vm629, %v3293, %v3292
  %v3295 = vrot.slane %v3259, 2
  %v3296 = vsel %vm632, %v3295, %v3294
  %v3297 = vrot.slane %v3260, 1
  %v3298 = vsel %vm635, %v3297, %v3296
  %v3299 = vrot.slane %v3262, 7
  %v3300 = vsel %vm617, %v3299, %v3261
  %v3301 = vrot.slane %v3263, 6
  %v3302 = vsel %vm620, %v3301, %v3300
  %v3303 = vrot.slane %v3264, 5
  %v3304 = vsel %vm623, %v3303, %v3302
  %v3305 = vrot.slane %v3265, 4
  %v3306 = vsel %vm626, %v3305, %v3304
  %v3307 = vrot.slane %v3266, 3
  %v3308 = vsel %vm629, %v3307, %v3306
  %v3309 = vrot.slane %v3267, 2
  %v3310 = vsel %vm632, %v3309, %v3308
  %v3311 = vrot.slane %v3268, 1
  %v3312 = vsel %vm635, %v3311, %v3310
  %v3315 = vsel %vm48, %v3298, -inf
  %3316 = vmax.xlane.f32.xlu0 %v3315
  %v3317 = vpop.xlane.xlu0 %3316
  %v3318 = vsel %vm48, %v3312, -inf
  %3319 = vmax.xlane.f32.xlu0 %v3318
  %v3320 = vpop.xlane.xlu0 %3319
  %v3323 = vrot.slane %v3317, 1
  %v3324 = vrot.slane %v3317, 2
  %v3325 = vrot.slane %v3317, 3
  %v3326 = vrot.slane %v3317, 4
  %v3327 = vrot.slane %v3317, 5
  %v3328 = vrot.slane %v3317, 6
  %v3329 = vrot.slane %v3317, 7
  %v3330 = vrot.slane %v3320, 1
  %v3331 = vrot.slane %v3320, 2
  %v3332 = vrot.slane %v3320, 3
  %v3333 = vrot.slane %v3320, 4
  %v3334 = vrot.slane %v3320, 5
  %v3335 = vrot.slane %v3320, 6
  %v3336 = vrot.slane %v3320, 7
  %v3353 = vsub.f32 %v3253, %v3317
  %v3354 = vsub.f32 %v3254, %v3323
  %v3355 = vsub.f32 %v3255, %v3324
  %v3356 = vsub.f32 %v3256, %v3325
  %v3357 = vsub.f32 %v3257, %v3326
  %v3358 = vsub.f32 %v3258, %v3327
  %v3359 = vsub.f32 %v3259, %v3328
  %v3360 = vsub.f32 %v3260, %v3329
  %v3361 = vsub.f32 %v3261, %v3320
  %v3362 = vsub.f32 %v3262, %v3330
  %v3363 = vsub.f32 %v3263, %v3331
  %v3364 = vsub.f32 %v3264, %v3332
  %v3365 = vsub.f32 %v3265, %v3333
  %v3366 = vsub.f32 %v3266, %v3334
  %v3367 = vsub.f32 %v3267, %v3335
  %v3368 = vsub.f32 %v3268, %v3336
  %v3369 = vmul.f32 %v3353, 1.442695
  %v3370 = vpow.pop %v3369
  %v3371 = vmul.f32 %v3354, 1.442695
  %v3372 = vpow.pop %v3371
  %v3373 = vmul.f32 %v3355, 1.442695
  %v3374 = vpow.pop %v3373
  %v3375 = vmul.f32 %v3356, 1.442695
  %v3376 = vpow.pop %v3375
  %v3377 = vmul.f32 %v3357, 1.442695
  %v3378 = vpow.pop %v3377
  %v3379 = vmul.f32 %v3358, 1.442695
  %v3380 = vpow.pop %v3379
  %v3381 = vmul.f32 %v3359, 1.442695
  %v3382 = vpow.pop %v3381
  %v3383 = vmul.f32 %v3360, 1.442695
  %v3384 = vpow.pop %v3383
  %v3385 = vmul.f32 %v3361, 1.442695
  %v3386 = vpow.pop %v3385
  %v3387 = vmul.f32 %v3362, 1.442695
  %v3388 = vpow.pop %v3387
  %v3389 = vmul.f32 %v3363, 1.442695
  %v3390 = vpow.pop %v3389
  %v3391 = vmul.f32 %v3364, 1.442695
  %v3392 = vpow.pop %v3391
  %v3393 = vmul.f32 %v3365, 1.442695
  %v3394 = vpow.pop %v3393
  %v3395 = vmul.f32 %v3366, 1.442695
  %v3396 = vpow.pop %v3395
  %v3397 = vmul.f32 %v3367, 1.442695
  %v3398 = vpow.pop %v3397
  %v3399 = vmul.f32 %v3368, 1.442695
  %v3400 = vpow.pop %v3399
  %v3401 = vmul.f32 %v3370, %v33
  %v3402 = vmul.f32 %v3372, %v741
  %v3403 = vmul.f32 %v3374, %v742
  %v3404 = vmul.f32 %v3376, %v743
  %v3405 = vmul.f32 %v3378, %v744
  %v3406 = vmul.f32 %v3380, %v745
  %v3407 = vmul.f32 %v3382, %v746
  %v3408 = vmul.f32 %v3384, %v747
  %v3409 = vmul.f32 %v3386, %v34
  %v3410 = vmul.f32 %v3388, %v748
  %v3411 = vmul.f32 %v3390, %v749
  %v3412 = vmul.f32 %v3392, %v750
  %v3413 = vmul.f32 %v3394, %v751
  %v3414 = vmul.f32 %v3396, %v752
  %v3415 = vmul.f32 %v3398, %v753
  %v3416 = vmul.f32 %v3400, %v754
  %v3433 = vrot.slane %v3402, 7
  %v3434 = vsel %vm617, %v3433, %v3401
  %v3435 = vrot.slane %v3403, 6
  %v3436 = vsel %vm620, %v3435, %v3434
  %v3437 = vrot.slane %v3404, 5
  %v3438 = vsel %vm623, %v3437, %v3436
  %v3439 = vrot.slane %v3405, 4
  %v3440 = vsel %vm626, %v3439, %v3438
  %v3441 = vrot.slane %v3406, 3
  %v3442 = vsel %vm629, %v3441, %v3440
  %v3443 = vrot.slane %v3407, 2
  %v3444 = vsel %vm632, %v3443, %v3442
  %v3445 = vrot.slane %v3408, 1
  %v3446 = vsel %vm635, %v3445, %v3444
  %v3447 = vrot.slane %v3410, 7
  %v3448 = vsel %vm617, %v3447, %v3409
  %v3449 = vrot.slane %v3411, 6
  %v3450 = vsel %vm620, %v3449, %v3448
  %v3451 = vrot.slane %v3412, 5
  %v3452 = vsel %vm623, %v3451, %v3450
  %v3453 = vrot.slane %v3413, 4
  %v3454 = vsel %vm626, %v3453, %v3452
  %v3455 = vrot.slane %v3414, 3
  %v3456 = vsel %vm629, %v3455, %v3454
  %v3457 = vrot.slane %v3415, 2
  %v3458 = vsel %vm632, %v3457, %v3456
  %v3459 = vrot.slane %v3416, 1
  %v3460 = vsel %vm635, %v3459, %v3458
  %v3463 = vsel %vm48, %v3446, 0.0
  %3464 = vadd.xlane.f32.xlu0 %v3463
  %v3465 = vpop.xlane.xlu0 %3464
  %v3466 = vsel %vm48, %v3460, 0.0
  %3467 = vadd.xlane.f32.xlu0 %v3466
  %v3468 = vpop.xlane.xlu0 %3467
  %v3469 = vrcp.pop %v3465
  %v3470 = vrcp.pop %v3468
  %v3473 = vrot.slane %v3469, 1
  %v3474 = vrot.slane %v3469, 2
  %v3475 = vrot.slane %v3469, 3
  %v3476 = vrot.slane %v3469, 4
  %v3477 = vrot.slane %v3469, 5
  %v3478 = vrot.slane %v3469, 6
  %v3479 = vrot.slane %v3469, 7
  %v3480 = vrot.slane %v3470, 1
  %v3481 = vrot.slane %v3470, 2
  %v3482 = vrot.slane %v3470, 3
  %v3483 = vrot.slane %v3470, 4
  %v3484 = vrot.slane %v3470, 5
  %v3485 = vrot.slane %v3470, 6
  %v3486 = vrot.slane %v3470, 7
  %v3503 = vmul.f32 %v3401, %v3469
  %v3504 = vmul.f32 %v3402, %v3473
  %v3505 = vmul.f32 %v3403, %v3474
  %v3506 = vmul.f32 %v3404, %v3475
  %v3507 = vmul.f32 %v3405, %v3476
  %v3508 = vmul.f32 %v3406, %v3477
  %v3509 = vmul.f32 %v3407, %v3478
  %v3510 = vmul.f32 %v3408, %v3479
  %v3511 = vmul.f32 %v3409, %v3470
  %v3512 = vmul.f32 %v3410, %v3480
  %v3513 = vmul.f32 %v3411, %v3481
  %v3514 = vmul.f32 %v3412, %v3482
  %v3515 = vmul.f32 %v3413, %v3483
  %v3516 = vmul.f32 %v3414, %v3484
  %v3517 = vmul.f32 %v3415, %v3485
  %v3518 = vmul.f32 %v3416, %v3486
  %v3535 = vrot.slane %v3504, 7
  %v3536 = vsel %vm617, %v3535, %v3503
  %v3537 = vrot.slane %v3505, 6
  %v3538 = vsel %vm620, %v3537, %v3536
  %v3539 = vrot.slane %v3506, 5
  %v3540 = vsel %vm623, %v3539, %v3538
  %v3541 = vrot.slane %v3507, 4
  %v3542 = vsel %vm626, %v3541, %v3540
  %v3543 = vrot.slane %v3508, 3
  %v3544 = vsel %vm629, %v3543, %v3542
  %v3545 = vrot.slane %v3509, 2
  %v3546 = vsel %vm632, %v3545, %v3544
  %v3547 = vrot.slane %v3510, 1
  %v3548 = vsel %vm635, %v3547, %v3546
  %v3549 = vrot.slane %v3512, 7
  %v3550 = vsel %vm617, %v3549, %v3511
  %v3551 = vrot.slane %v3513, 6
  %v3552 = vsel %vm620, %v3551, %v3550
  %v3553 = vrot.slane %v3514, 5
  %v3554 = vsel %vm623, %v3553, %v3552
  %v3555 = vrot.slane %v3515, 4
  %v3556 = vsel %vm626, %v3555, %v3554
  %v3557 = vrot.slane %v3516, 3
  %v3558 = vsel %vm629, %v3557, %v3556
  %v3559 = vrot.slane %v3517, 2
  %v3560 = vsel %vm632, %v3559, %v3558
  %v3561 = vrot.slane %v3518, 1
  %v3562 = vsel %vm635, %v3561, %v3560
  %3563 = vrot.lane.b32.xlu0 %v122, 96
  %v3564 = vpop.permute.xlu0 %3563
  %3565 = vrot.lane.b32.xlu0 %v127, 96
  %v3566 = vpop.permute.xlu0 %3565
  %3569 = vrot.lane.b32.xlu0 %v892, 96
  %v3570 = vpop.permute.xlu0 %3569
  %v3572 = vsel %vm48, %v3548, 0
  %v3574 = vsel %vm48, %v3562, 0
  %3576 = vmatprep.subr.mxu0 0.0
  %3577 = vmatpush1.msra.mxu0 %v3564
  %3578 = vmatprep.subr.mxu0 0.0
  %3579 = vmatpush1.msra.mxu0 %v3566
  %3580 = vmatprep.subr.mxu0 0.0
  %3581 = vmatpush1.msra.mxu0 0.0
  %3582 = vmatprep.subr.mxu0 0.0
  %3583 = vmatpush1.msra.mxu0 0.0
  %3584 = vmatprep.subr.mxu0 0.0
  %3585 = vmatpush1.msra.mxu0 0.0
  %3586 = vmatprep.subr.mxu0 0.0
  %3587 = vmatpush1.msra.mxu0 0.0
  %3588 = vmatprep.subr.mxu0 0.0
  %3589 = vmatpush1.msra.mxu0 0.0
  %3590 = vmatprep.subr.mxu0 0.0
  %3591 = vmatpush1.msra.mxu0 0.0
  %3592 = vmatprep.subr.mxu0 0.0
  %3593 = vmatpush1.msra.mxu0 0.0
  %3594 = vmatprep.subr.mxu0 0.0
  %3595 = vmatpush1.msra.mxu0 0.0
  %3596 = vmatprep.subr.mxu0 0.0
  %3597 = vmatpush1.msra.mxu0 0.0
  %3598 = vmatprep.subr.mxu0 0.0
  %3599 = vmatpush1.msra.mxu0 0.0
  %3600 = vmatprep.subr.mxu0 0.0
  %3601 = vmatpush1.msra.mxu0 0.0
  %3602 = vmatprep.subr.mxu0 0.0
  %3603 = vmatpush1.msra.mxu0 0.0
  %3604 = vmatprep.subr.mxu0 0.0
  %3605 = vmatpush1.msra.mxu0 0.0
  %3606 = vmatprep.subr.mxu0 0.0
  %3607 = vmatpush1.msra.mxu0 0.0
  %3608 = vmatprep.subr.mxu0 0.0
  %3609 = vmatpush1.msra.mxu0 0.0
  %3610 = vmatprep.subr.mxu0 0.0
  %3611 = vmatpush1.msra.mxu0 0.0
  %3612 = vmatprep.subr.mxu0 0.0
  %3613 = vmatpush1.msra.mxu0 0.0
  %3614 = vmatprep.subr.mxu0 0.0
  %3615 = vmatpush1.msra.mxu0 0.0
  %3616 = vmatprep.subr.mxu0 0.0
  %3617 = vmatpush1.msra.mxu0 0.0
  %3618 = vmatprep.subr.mxu0 0.0
  %3619 = vmatpush1.msra.mxu0 0.0
  %3620 = vmatprep.subr.mxu0 0.0
  %3621 = vmatpush1.msra.mxu0 0.0
  %3622 = vmatprep.subr.mxu0 0.0
  %3623 = vmatpush1.msra.mxu0 0.0
  %3624 = vmatprep.subr.mxu0 0.0
  %3625 = vmatpush1.msra.mxu0 0.0
  %3626 = vmatprep.subr.mxu0 0.0
  %3627 = vmatpush1.msra.mxu0 0.0
  %3628 = vmatprep.subr.mxu0 0.0
  %3629 = vmatpush1.msra.mxu0 0.0
  %3630 = vmatprep.subr.mxu0 0.0
  %3631 = vmatpush1.msra.mxu0 0.0
  %3632 = vmatprep.subr.mxu0 0.0
  %3633 = vmatpush1.msra.mxu0 0.0
  %3634 = vmatprep.subr.mxu0 0.0
  %3635 = vmatpush1.msra.mxu0 0.0
  %3636 = vmatprep.subr.mxu0 0.0
  %3637 = vmatpush1.msra.mxu0 0.0
  %3638 = vmatprep.subr.mxu0 0.0
  %3639 = vmatpush1.msra.mxu0 0.0
  %3640 = vmatprep.mubr.f32.mxu0 0.0
  %3641 = vmatmul.mubr.f32.gmra.mrb[0].mxu0 %v3572
  %v3642 = vpop.f32.mrb[0].mxu0
  %v3643 = vadd.f32 %v3570, %v3642
  %v3644 = vpop.f32.mrb[0].mxu0
  %3645 = vmatprep.mubr.f32.mxu0 0.0
  %3646 = vmatmul.mubr.f32.gmra.mrb[0].mxu0 %v3574
  %v3647 = vpop.f32.mrb[0].mxu0
  %v3648 = vadd.f32 %v3570, %v3647
  %v3649 = vpop.f32.mrb[0].mxu0
  %3650 = vdwg.mxu0
  %s3652 = sor.u32 256, 40
  %3653 = vbcast.lane.b32.xlu0 %v244, %s3652
  %v3654 = vpop.permute.xlu0 %3653
  %s3656 = sor.u32 256, 40
  %3657 = vbcast.lane.b32.xlu0 %v251, %s3656
  %v3658 = vpop.permute.xlu0 %3657
  %s3660 = sor.u32 256, 40
  %3661 = vbcast.lane.b32.xlu0 %v258, %s3660
  %v3662 = vpop.permute.xlu0 %3661
  %s3664 = sor.u32 256, 40
  %3665 = vbcast.lane.b32.xlu0 %v265, %s3664
  %v3666 = vpop.permute.xlu0 %3665
  %s3668 = sor.u32 256, 40
  %3669 = vbcast.lane.b32.xlu0 %v272, %s3668
  %v3670 = vpop.permute.xlu0 %3669
  %s3672 = sor.u32 256, 40
  %3673 = vbcast.lane.b32.xlu0 %v279, %s3672
  %v3674 = vpop.permute.xlu0 %3673
  %s3676 = sor.u32 256, 40
  %3677 = vbcast.lane.b32.xlu0 %v286, %s3676
  %v3678 = vpop.permute.xlu0 %3677
  %s3680 = sor.u32 256, 40
  %3681 = vbcast.lane.b32.xlu0 %v293, %s3680
  %v3682 = vpop.permute.xlu0 %3681
  %s3684 = sor.u32 256, 40
  %3685 = vbcast.lane.b32.xlu0 %v300, %s3684
  %v3686 = vpop.permute.xlu0 %3685
  %s3688 = sor.u32 256, 40
  %3689 = vbcast.lane.b32.xlu0 %v307, %s3688
  %v3690 = vpop.permute.xlu0 %3689
  %s3692 = sor.u32 256, 40
  %3693 = vbcast.lane.b32.xlu0 %v314, %s3692
  %v3694 = vpop.permute.xlu0 %3693
  %s3696 = sor.u32 256, 40
  %3697 = vbcast.lane.b32.xlu0 %v321, %s3696
  %v3698 = vpop.permute.xlu0 %3697
  %s3700 = sor.u32 256, 40
  %3701 = vbcast.lane.b32.xlu0 %v328, %s3700
  %v3702 = vpop.permute.xlu0 %3701
  %s3704 = sor.u32 256, 40
  %3705 = vbcast.lane.b32.xlu0 %v335, %s3704
  %v3706 = vpop.permute.xlu0 %3705
  %s3708 = sor.u32 256, 40
  %3709 = vbcast.lane.b32.xlu0 %v342, %s3708
  %v3710 = vpop.permute.xlu0 %3709
  %s3712 = sor.u32 256, 40
  %3713 = vbcast.lane.b32.xlu0 %v349, %s3712
  %v3714 = vpop.permute.xlu0 %3713
  %v3715 = vadd.f32 %v3654, %v230
  %v3716 = vadd.f32 %v3658, %v230
  %v3717 = vadd.f32 %v3662, %v230
  %v3718 = vadd.f32 %v3666, %v230
  %v3719 = vadd.f32 %v3670, %v230
  %v3720 = vadd.f32 %v3674, %v230
  %v3721 = vadd.f32 %v3678, %v230
  %v3722 = vadd.f32 %v3682, %v230
  %v3723 = vadd.f32 %v3686, %v230
  %v3724 = vadd.f32 %v3690, %v230
  %v3725 = vadd.f32 %v3694, %v230
  %v3726 = vadd.f32 %v3698, %v230
  %v3727 = vadd.f32 %v3702, %v230
  %v3728 = vadd.f32 %v3706, %v230
  %v3729 = vadd.f32 %v3710, %v230
  %v3730 = vadd.f32 %v3714, %v230
  %vm3731 = vcmp.ge.f32.partialorder %v3715, 0.0
  %vm3732 = vcmp.ge.f32.partialorder %v3716, 0.0
  %vm3733 = vcmp.ge.f32.partialorder %v3717, 0.0
  %vm3734 = vcmp.ge.f32.partialorder %v3718, 0.0
  %vm3735 = vcmp.ge.f32.partialorder %v3719, 0.0
  %vm3736 = vcmp.ge.f32.partialorder %v3720, 0.0
  %vm3737 = vcmp.ge.f32.partialorder %v3721, 0.0
  %vm3738 = vcmp.ge.f32.partialorder %v3722, 0.0
  %vm3739 = vcmp.ge.f32.partialorder %v3723, 0.0
  %vm3740 = vcmp.ge.f32.partialorder %v3724, 0.0
  %vm3741 = vcmp.ge.f32.partialorder %v3725, 0.0
  %vm3742 = vcmp.ge.f32.partialorder %v3726, 0.0
  %vm3743 = vcmp.ge.f32.partialorder %v3727, 0.0
  %vm3744 = vcmp.ge.f32.partialorder %v3728, 0.0
  %vm3745 = vcmp.ge.f32.partialorder %v3729, 0.0
  %vm3746 = vcmp.ge.f32.partialorder %v3730, 0.0
  %v3747 = vmul.f32 %v3715, 0.2
  %v3748 = vmul.f32 %v3716, 0.2
  %v3749 = vmul.f32 %v3717, 0.2
  %v3750 = vmul.f32 %v3718, 0.2
  %v3751 = vmul.f32 %v3719, 0.2
  %v3752 = vmul.f32 %v3720, 0.2
  %v3753 = vmul.f32 %v3721, 0.2
  %v3754 = vmul.f32 %v3722, 0.2
  %v3755 = vmul.f32 %v3723, 0.2
  %v3756 = vmul.f32 %v3724, 0.2
  %v3757 = vmul.f32 %v3725, 0.2
  %v3758 = vmul.f32 %v3726, 0.2
  %v3759 = vmul.f32 %v3727, 0.2
  %v3760 = vmul.f32 %v3728, 0.2
  %v3761 = vmul.f32 %v3729, 0.2
  %v3762 = vmul.f32 %v3730, 0.2
  %v3763 = vsel %vm3731, %v3715, %v3747
  %v3764 = vsel %vm3732, %v3716, %v3748
  %v3765 = vsel %vm3733, %v3717, %v3749
  %v3766 = vsel %vm3734, %v3718, %v3750
  %v3767 = vsel %vm3735, %v3719, %v3751
  %v3768 = vsel %vm3736, %v3720, %v3752
  %v3769 = vsel %vm3737, %v3721, %v3753
  %v3770 = vsel %vm3738, %v3722, %v3754
  %v3771 = vsel %vm3739, %v3723, %v3755
  %v3772 = vsel %vm3740, %v3724, %v3756
  %v3773 = vsel %vm3741, %v3725, %v3757
  %v3774 = vsel %vm3742, %v3726, %v3758
  %v3775 = vsel %vm3743, %v3727, %v3759
  %v3776 = vsel %vm3744, %v3728, %v3760
  %v3777 = vsel %vm3745, %v3729, %v3761
  %v3778 = vsel %vm3746, %v3730, %v3762
  %s3780 = sor.u32 256, 40
  %3781 = vbcast.lane.b32.xlu0 %v420, %s3780
  %v3782 = vpop.permute.xlu0 %3781
  %v3783 = vmul.f32 %v3763, %v3782
  %v3784 = vmul.f32 %v3764, %v3782
  %v3785 = vmul.f32 %v3765, %v3782
  %v3786 = vmul.f32 %v3766, %v3782
  %v3787 = vmul.f32 %v3767, %v3782
  %v3788 = vmul.f32 %v3768, %v3782
  %v3789 = vmul.f32 %v3769, %v3782
  %v3790 = vmul.f32 %v3770, %v3782
  %v3791 = vmul.f32 %v3771, %v3782
  %v3792 = vmul.f32 %v3772, %v3782
  %v3793 = vmul.f32 %v3773, %v3782
  %v3794 = vmul.f32 %v3774, %v3782
  %v3795 = vmul.f32 %v3775, %v3782
  %v3796 = vmul.f32 %v3776, %v3782
  %v3797 = vmul.f32 %v3777, %v3782
  %v3798 = vmul.f32 %v3778, %v3782
  %v3799 = vsel %vm48, %v3783, 0.0
  %v3800 = vrot.slane %v3799, 4
  %v3801 = vadd.f32 %v3799, %v3800
  %v3802 = vrot.slane %v3801, 2
  %v3803 = vadd.f32 %v3801, %v3802
  %v3804 = vrot.slane %v3803, 1
  %v3805 = vadd.f32 %v3803, %v3804
  %v3806 = vsel %vm48, %v3784, 0.0
  %v3807 = vrot.slane %v3806, 4
  %v3808 = vadd.f32 %v3806, %v3807
  %v3809 = vrot.slane %v3808, 2
  %v3810 = vadd.f32 %v3808, %v3809
  %v3811 = vrot.slane %v3810, 1
  %v3812 = vadd.f32 %v3810, %v3811
  %v3813 = vsel %vm48, %v3785, 0.0
  %v3814 = vrot.slane %v3813, 4
  %v3815 = vadd.f32 %v3813, %v3814
  %v3816 = vrot.slane %v3815, 2
  %v3817 = vadd.f32 %v3815, %v3816
  %v3818 = vrot.slane %v3817, 1
  %v3819 = vadd.f32 %v3817, %v3818
  %v3820 = vsel %vm48, %v3786, 0.0
  %v3821 = vrot.slane %v3820, 4
  %v3822 = vadd.f32 %v3820, %v3821
  %v3823 = vrot.slane %v3822, 2
  %v3824 = vadd.f32 %v3822, %v3823
  %v3825 = vrot.slane %v3824, 1
  %v3826 = vadd.f32 %v3824, %v3825
  %v3827 = vsel %vm48, %v3787, 0.0
  %v3828 = vrot.slane %v3827, 4
  %v3829 = vadd.f32 %v3827, %v3828
  %v3830 = vrot.slane %v3829, 2
  %v3831 = vadd.f32 %v3829, %v3830
  %v3832 = vrot.slane %v3831, 1
  %v3833 = vadd.f32 %v3831, %v3832
  %v3834 = vsel %vm48, %v3788, 0.0
  %v3835 = vrot.slane %v3834, 4
  %v3836 = vadd.f32 %v3834, %v3835
  %v3837 = vrot.slane %v3836, 2
  %v3838 = vadd.f32 %v3836, %v3837
  %v3839 = vrot.slane %v3838, 1
  %v3840 = vadd.f32 %v3838, %v3839
  %v3841 = vsel %vm48, %v3789, 0.0
  %v3842 = vrot.slane %v3841, 4
  %v3843 = vadd.f32 %v3841, %v3842
  %v3844 = vrot.slane %v3843, 2
  %v3845 = vadd.f32 %v3843, %v3844
  %v3846 = vrot.slane %v3845, 1
  %v3847 = vadd.f32 %v3845, %v3846
  %v3848 = vsel %vm48, %v3790, 0.0
  %v3849 = vrot.slane %v3848, 4
  %v3850 = vadd.f32 %v3848, %v3849
  %v3851 = vrot.slane %v3850, 2
  %v3852 = vadd.f32 %v3850, %v3851
  %v3853 = vrot.slane %v3852, 1
  %v3854 = vadd.f32 %v3852, %v3853
  %v3855 = vsel %vm48, %v3791, 0.0
  %v3856 = vrot.slane %v3855, 4
  %v3857 = vadd.f32 %v3855, %v3856
  %v3858 = vrot.slane %v3857, 2
  %v3859 = vadd.f32 %v3857, %v3858
  %v3860 = vrot.slane %v3859, 1
  %v3861 = vadd.f32 %v3859, %v3860
  %v3862 = vsel %vm48, %v3792, 0.0
  %v3863 = vrot.slane %v3862, 4
  %v3864 = vadd.f32 %v3862, %v3863
  %v3865 = vrot.slane %v3864, 2
  %v3866 = vadd.f32 %v3864, %v3865
  %v3867 = vrot.slane %v3866, 1
  %v3868 = vadd.f32 %v3866, %v3867
  %v3869 = vsel %vm48, %v3793, 0.0
  %v3870 = vrot.slane %v3869, 4
  %v3871 = vadd.f32 %v3869, %v3870
  %v3872 = vrot.slane %v3871, 2
  %v3873 = vadd.f32 %v3871, %v3872
  %v3874 = vrot.slane %v3873, 1
  %v3875 = vadd.f32 %v3873, %v3874
  %v3876 = vsel %vm48, %v3794, 0.0
  %v3877 = vrot.slane %v3876, 4
  %v3878 = vadd.f32 %v3876, %v3877
  %v3879 = vrot.slane %v3878, 2
  %v3880 = vadd.f32 %v3878, %v3879
  %v3881 = vrot.slane %v3880, 1
  %v3882 = vadd.f32 %v3880, %v3881
  %v3883 = vsel %vm48, %v3795, 0.0
  %v3884 = vrot.slane %v3883, 4
  %v3885 = vadd.f32 %v3883, %v3884
  %v3886 = vrot.slane %v3885, 2
  %v3887 = vadd.f32 %v3885, %v3886
  %v3888 = vrot.slane %v3887, 1
  %v3889 = vadd.f32 %v3887, %v3888
  %v3890 = vsel %vm48, %v3796, 0.0
  %v3891 = vrot.slane %v3890, 4
  %v3892 = vadd.f32 %v3890, %v3891
  %v3893 = vrot.slane %v3892, 2
  %v3894 = vadd.f32 %v3892, %v3893
  %v3895 = vrot.slane %v3894, 1
  %v3896 = vadd.f32 %v3894, %v3895
  %v3897 = vsel %vm48, %v3797, 0.0
  %v3898 = vrot.slane %v3897, 4
  %v3899 = vadd.f32 %v3897, %v3898
  %v3900 = vrot.slane %v3899, 2
  %v3901 = vadd.f32 %v3899, %v3900
  %v3902 = vrot.slane %v3901, 1
  %v3903 = vadd.f32 %v3901, %v3902
  %v3904 = vsel %vm48, %v3798, 0.0
  %v3905 = vrot.slane %v3904, 4
  %v3906 = vadd.f32 %v3904, %v3905
  %v3907 = vrot.slane %v3906, 2
  %v3908 = vadd.f32 %v3906, %v3907
  %v3909 = vrot.slane %v3908, 1
  %v3910 = vadd.f32 %v3908, %v3909
  %v3911 = vadd.f32 %v3805, %v37
  %v3912 = vadd.f32 %v3812, %v554
  %v3913 = vadd.f32 %v3819, %v555
  %v3914 = vadd.f32 %v3826, %v556
  %v3915 = vadd.f32 %v3833, %v557
  %v3916 = vadd.f32 %v3840, %v558
  %v3917 = vadd.f32 %v3847, %v559
  %v3918 = vadd.f32 %v3854, %v560
  %v3919 = vadd.f32 %v3861, %v38
  %v3920 = vadd.f32 %v3868, %v561
  %v3921 = vadd.f32 %v3875, %v562
  %v3922 = vadd.f32 %v3882, %v563
  %v3923 = vadd.f32 %v3889, %v564
  %v3924 = vadd.f32 %v3896, %v565
  %v3925 = vadd.f32 %v3903, %v566
  %v3926 = vadd.f32 %v3910, %v567
  %v3943 = vrot.slane %v3912, 7
  %v3944 = vsel %vm617, %v3943, %v3911
  %v3945 = vrot.slane %v3913, 6
  %v3946 = vsel %vm620, %v3945, %v3944
  %v3947 = vrot.slane %v3914, 5
  %v3948 = vsel %vm623, %v3947, %v3946
  %v3949 = vrot.slane %v3915, 4
  %v3950 = vsel %vm626, %v3949, %v3948
  %v3951 = vrot.slane %v3916, 3
  %v3952 = vsel %vm629, %v3951, %v3950
  %v3953 = vrot.slane %v3917, 2
  %v3954 = vsel %vm632, %v3953, %v3952
  %v3955 = vrot.slane %v3918, 1
  %v3956 = vsel %vm635, %v3955, %v3954
  %v3957 = vrot.slane %v3920, 7
  %v3958 = vsel %vm617, %v3957, %v3919
  %v3959 = vrot.slane %v3921, 6
  %v3960 = vsel %vm620, %v3959, %v3958
  %v3961 = vrot.slane %v3922, 5
  %v3962 = vsel %vm623, %v3961, %v3960
  %v3963 = vrot.slane %v3923, 4
  %v3964 = vsel %vm626, %v3963, %v3962
  %v3965 = vrot.slane %v3924, 3
  %v3966 = vsel %vm629, %v3965, %v3964
  %v3967 = vrot.slane %v3925, 2
  %v3968 = vsel %vm632, %v3967, %v3966
  %v3969 = vrot.slane %v3926, 1
  %v3970 = vsel %vm635, %v3969, %v3968
  %v3973 = vsel %vm48, %v3956, -inf
  %3974 = vmax.xlane.f32.xlu0 %v3973
  %v3975 = vpop.xlane.xlu0 %3974
  %v3976 = vsel %vm48, %v3970, -inf
  %3977 = vmax.xlane.f32.xlu0 %v3976
  %v3978 = vpop.xlane.xlu0 %3977
  %v3981 = vrot.slane %v3975, 1
  %v3982 = vrot.slane %v3975, 2
  %v3983 = vrot.slane %v3975, 3
  %v3984 = vrot.slane %v3975, 4
  %v3985 = vrot.slane %v3975, 5
  %v3986 = vrot.slane %v3975, 6
  %v3987 = vrot.slane %v3975, 7
  %v3988 = vrot.slane %v3978, 1
  %v3989 = vrot.slane %v3978, 2
  %v3990 = vrot.slane %v3978, 3
  %v3991 = vrot.slane %v3978, 4
  %v3992 = vrot.slane %v3978, 5
  %v3993 = vrot.slane %v3978, 6
  %v3994 = vrot.slane %v3978, 7
  %v4011 = vsub.f32 %v3911, %v3975
  %v4012 = vsub.f32 %v3912, %v3981
  %v4013 = vsub.f32 %v3913, %v3982
  %v4014 = vsub.f32 %v3914, %v3983
  %v4015 = vsub.f32 %v3915, %v3984
  %v4016 = vsub.f32 %v3916, %v3985
  %v4017 = vsub.f32 %v3917, %v3986
  %v4018 = vsub.f32 %v3918, %v3987
  %v4019 = vsub.f32 %v3919, %v3978
  %v4020 = vsub.f32 %v3920, %v3988
  %v4021 = vsub.f32 %v3921, %v3989
  %v4022 = vsub.f32 %v3922, %v3990
  %v4023 = vsub.f32 %v3923, %v3991
  %v4024 = vsub.f32 %v3924, %v3992
  %v4025 = vsub.f32 %v3925, %v3993
  %v4026 = vsub.f32 %v3926, %v3994
  %v4027 = vmul.f32 %v4011, 1.442695
  %v4028 = vpow.pop %v4027
  %v4029 = vmul.f32 %v4012, 1.442695
  %v4030 = vpow.pop %v4029
  %v4031 = vmul.f32 %v4013, 1.442695
  %v4032 = vpow.pop %v4031
  %v4033 = vmul.f32 %v4014, 1.442695
  %v4034 = vpow.pop %v4033
  %v4035 = vmul.f32 %v4015, 1.442695
  %v4036 = vpow.pop %v4035
  %v4037 = vmul.f32 %v4016, 1.442695
  %v4038 = vpow.pop %v4037
  %v4039 = vmul.f32 %v4017, 1.442695
  %v4040 = vpow.pop %v4039
  %v4041 = vmul.f32 %v4018, 1.442695
  %v4042 = vpow.pop %v4041
  %v4043 = vmul.f32 %v4019, 1.442695
  %v4044 = vpow.pop %v4043
  %v4045 = vmul.f32 %v4020, 1.442695
  %v4046 = vpow.pop %v4045
  %v4047 = vmul.f32 %v4021, 1.442695
  %v4048 = vpow.pop %v4047
  %v4049 = vmul.f32 %v4022, 1.442695
  %v4050 = vpow.pop %v4049
  %v4051 = vmul.f32 %v4023, 1.442695
  %v4052 = vpow.pop %v4051
  %v4053 = vmul.f32 %v4024, 1.442695
  %v4054 = vpow.pop %v4053
  %v4055 = vmul.f32 %v4025, 1.442695
  %v4056 = vpow.pop %v4055
  %v4057 = vmul.f32 %v4026, 1.442695
  %v4058 = vpow.pop %v4057
  %v4059 = vmul.f32 %v4028, %v33
  %v4060 = vmul.f32 %v4030, %v741
  %v4061 = vmul.f32 %v4032, %v742
  %v4062 = vmul.f32 %v4034, %v743
  %v4063 = vmul.f32 %v4036, %v744
  %v4064 = vmul.f32 %v4038, %v745
  %v4065 = vmul.f32 %v4040, %v746
  %v4066 = vmul.f32 %v4042, %v747
  %v4067 = vmul.f32 %v4044, %v34
  %v4068 = vmul.f32 %v4046, %v748
  %v4069 = vmul.f32 %v4048, %v749
  %v4070 = vmul.f32 %v4050, %v750
  %v4071 = vmul.f32 %v4052, %v751
  %v4072 = vmul.f32 %v4054, %v752
  %v4073 = vmul.f32 %v4056, %v753
  %v4074 = vmul.f32 %v4058, %v754
  %v4091 = vrot.slane %v4060, 7
  %v4092 = vsel %vm617, %v4091, %v4059
  %v4093 = vrot.slane %v4061, 6
  %v4094 = vsel %vm620, %v4093, %v4092
  %v4095 = vrot.slane %v4062, 5
  %v4096 = vsel %vm623, %v4095, %v4094
  %v4097 = vrot.slane %v4063, 4
  %v4098 = vsel %vm626, %v4097, %v4096
  %v4099 = vrot.slane %v4064, 3
  %v4100 = vsel %vm629, %v4099, %v4098
  %v4101 = vrot.slane %v4065, 2
  %v4102 = vsel %vm632, %v4101, %v4100
  %v4103 = vrot.slane %v4066, 1
  %v4104 = vsel %vm635, %v4103, %v4102
  %v4105 = vrot.slane %v4068, 7
  %v4106 = vsel %vm617, %v4105, %v4067
  %v4107 = vrot.slane %v4069, 6
  %v4108 = vsel %vm620, %v4107, %v4106
  %v4109 = vrot.slane %v4070, 5
  %v4110 = vsel %vm623, %v4109, %v4108
  %v4111 = vrot.slane %v4071, 4
  %v4112 = vsel %vm626, %v4111, %v4110
  %v4113 = vrot.slane %v4072, 3
  %v4114 = vsel %vm629, %v4113, %v4112
  %v4115 = vrot.slane %v4073, 2
  %v4116 = vsel %vm632, %v4115, %v4114
  %v4117 = vrot.slane %v4074, 1
  %v4118 = vsel %vm635, %v4117, %v4116
  %v4121 = vsel %vm48, %v4104, 0.0
  %4122 = vadd.xlane.f32.xlu0 %v4121
  %v4123 = vpop.xlane.xlu0 %4122
  %v4124 = vsel %vm48, %v4118, 0.0
  %4125 = vadd.xlane.f32.xlu0 %v4124
  %v4126 = vpop.xlane.xlu0 %4125
  %v4127 = vrcp.pop %v4123
  %v4128 = vrcp.pop %v4126
  %v4131 = vrot.slane %v4127, 1
  %v4132 = vrot.slane %v4127, 2
  %v4133 = vrot.slane %v4127, 3
  %v4134 = vrot.slane %v4127, 4
  %v4135 = vrot.slane %v4127, 5
  %v4136 = vrot.slane %v4127, 6
  %v4137 = vrot.slane %v4127, 7
  %v4138 = vrot.slane %v4128, 1
  %v4139 = vrot.slane %v4128, 2
  %v4140 = vrot.slane %v4128, 3
  %v4141 = vrot.slane %v4128, 4
  %v4142 = vrot.slane %v4128, 5
  %v4143 = vrot.slane %v4128, 6
  %v4144 = vrot.slane %v4128, 7
  %v4161 = vmul.f32 %v4059, %v4127
  %v4162 = vmul.f32 %v4060, %v4131
  %v4163 = vmul.f32 %v4061, %v4132
  %v4164 = vmul.f32 %v4062, %v4133
  %v4165 = vmul.f32 %v4063, %v4134
  %v4166 = vmul.f32 %v4064, %v4135
  %v4167 = vmul.f32 %v4065, %v4136
  %v4168 = vmul.f32 %v4066, %v4137
  %v4169 = vmul.f32 %v4067, %v4128
  %v4170 = vmul.f32 %v4068, %v4138
  %v4171 = vmul.f32 %v4069, %v4139
  %v4172 = vmul.f32 %v4070, %v4140
  %v4173 = vmul.f32 %v4071, %v4141
  %v4174 = vmul.f32 %v4072, %v4142
  %v4175 = vmul.f32 %v4073, %v4143
  %v4176 = vmul.f32 %v4074, %v4144
  %v4193 = vrot.slane %v4162, 7
  %v4194 = vsel %vm617, %v4193, %v4161
  %v4195 = vrot.slane %v4163, 6
  %v4196 = vsel %vm620, %v4195, %v4194
  %v4197 = vrot.slane %v4164, 5
  %v4198 = vsel %vm623, %v4197, %v4196
  %v4199 = vrot.slane %v4165, 4
  %v4200 = vsel %vm626, %v4199, %v4198
  %v4201 = vrot.slane %v4166, 3
  %v4202 = vsel %vm629, %v4201, %v4200
  %v4203 = vrot.slane %v4167, 2
  %v4204 = vsel %vm632, %v4203, %v4202
  %v4205 = vrot.slane %v4168, 1
  %v4206 = vsel %vm635, %v4205, %v4204
  %v4207 = vrot.slane %v4170, 7
  %v4208 = vsel %vm617, %v4207, %v4169
  %v4209 = vrot.slane %v4171, 6
  %v4210 = vsel %vm620, %v4209, %v4208
  %v4211 = vrot.slane %v4172, 5
  %v4212 = vsel %vm623, %v4211, %v4210
  %v4213 = vrot.slane %v4173, 4
  %v4214 = vsel %vm626, %v4213, %v4212
  %v4215 = vrot.slane %v4174, 3
  %v4216 = vsel %vm629, %v4215, %v4214
  %v4217 = vrot.slane %v4175, 2
  %v4218 = vsel %vm632, %v4217, %v4216
  %v4219 = vrot.slane %v4176, 1
  %v4220 = vsel %vm635, %v4219, %v4218
  %4221 = vrot.lane.b32.xlu0 %v122, 88
  %v4222 = vpop.permute.xlu0 %4221
  %4223 = vrot.lane.b32.xlu0 %v127, 88
  %v4224 = vpop.permute.xlu0 %4223
  %4227 = vrot.lane.b32.xlu0 %v892, 88
  %v4228 = vpop.permute.xlu0 %4227
  %v4230 = vsel %vm48, %v4206, 0
  %v4232 = vsel %vm48, %v4220, 0
  %4234 = vmatprep.subr.mxu0 0.0
  %4235 = vmatpush1.msra.mxu0 %v4222
  %4236 = vmatprep.subr.mxu0 0.0
  %4237 = vmatpush1.msra.mxu0 %v4224
  %4238 = vmatprep.subr.mxu0 0.0
  %4239 = vmatpush1.msra.mxu0 0.0
  %4240 = vmatprep.subr.mxu0 0.0
  %4241 = vmatpush1.msra.mxu0 0.0
  %4242 = vmatprep.subr.mxu0 0.0
  %4243 = vmatpush1.msra.mxu0 0.0
  %4244 = vmatprep.subr.mxu0 0.0
  %4245 = vmatpush1.msra.mxu0 0.0
  %4246 = vmatprep.subr.mxu0 0.0
  %4247 = vmatpush1.msra.mxu0 0.0
  %4248 = vmatprep.subr.mxu0 0.0
  %4249 = vmatpush1.msra.mxu0 0.0
  %4250 = vmatprep.subr.mxu0 0.0
  %4251 = vmatpush1.msra.mxu0 0.0
  %4252 = vmatprep.subr.mxu0 0.0
  %4253 = vmatpush1.msra.mxu0 0.0
  %4254 = vmatprep.subr.mxu0 0.0
  %4255 = vmatpush1.msra.mxu0 0.0
  %4256 = vmatprep.subr.mxu0 0.0
  %4257 = vmatpush1.msra.mxu0 0.0
  %4258 = vmatprep.subr.mxu0 0.0
  %4259 = vmatpush1.msra.mxu0 0.0
  %4260 = vmatprep.subr.mxu0 0.0
  %4261 = vmatpush1.msra.mxu0 0.0
  %4262 = vmatprep.subr.mxu0 0.0
  %4263 = vmatpush1.msra.mxu0 0.0
  %4264 = vmatprep.subr.mxu0 0.0
  %4265 = vmatpush1.msra.mxu0 0.0
  %4266 = vmatprep.subr.mxu0 0.0
  %4267 = vmatpush1.msra.mxu0 0.0
  %4268 = vmatprep.subr.mxu0 0.0
  %4269 = vmatpush1.msra.mxu0 0.0
  %4270 = vmatprep.subr.mxu0 0.0
  %4271 = vmatpush1.msra.mxu0 0.0
  %4272 = vmatprep.subr.mxu0 0.0
  %4273 = vmatpush1.msra.mxu0 0.0
  %4274 = vmatprep.subr.mxu0 0.0
  %4275 = vmatpush1.msra.mxu0 0.0
  %4276 = vmatprep.subr.mxu0 0.0
  %4277 = vmatpush1.msra.mxu0 0.0
  %4278 = vmatprep.subr.mxu0 0.0
  %4279 = vmatpush1.msra.mxu0 0.0
  %4280 = vmatprep.subr.mxu0 0.0
  %4281 = vmatpush1.msra.mxu0 0.0
  %4282 = vmatprep.subr.mxu0 0.0
  %4283 = vmatpush1.msra.mxu0 0.0
  %4284 = vmatprep.subr.mxu0 0.0
  %4285 = vmatpush1.msra.mxu0 0.0
  %4286 = vmatprep.subr.mxu0 0.0
  %4287 = vmatpush1.msra.mxu0 0.0
  %4288 = vmatprep.subr.mxu0 0.0
  %4289 = vmatpush1.msra.mxu0 0.0
  %4290 = vmatprep.subr.mxu0 0.0
  %4291 = vmatpush1.msra.mxu0 0.0
  %4292 = vmatprep.subr.mxu0 0.0
  %4293 = vmatpush1.msra.mxu0 0.0
  %4294 = vmatprep.subr.mxu0 0.0
  %4295 = vmatpush1.msra.mxu0 0.0
  %4296 = vmatprep.subr.mxu0 0.0
  %4297 = vmatpush1.msra.mxu0 0.0
  %4298 = vmatprep.mubr.f32.mxu0 0.0
  %4299 = vmatmul.mubr.f32.gmra.mrb[0].mxu0 %v4230
  %v4300 = vpop.f32.mrb[0].mxu0
  %v4301 = vadd.f32 %v4228, %v4300
  %v4302 = vpop.f32.mrb[0].mxu0
  %4303 = vmatprep.mubr.f32.mxu0 0.0
  %4304 = vmatmul.mubr.f32.gmra.mrb[0].mxu0 %v4232
  %v4305 = vpop.f32.mrb[0].mxu0
  %v4306 = vadd.f32 %v4228, %v4305
  %v4307 = vpop.f32.mrb[0].mxu0
  %4308 = vdwg.mxu0
  %s4310 = sor.u32 256, 48
  %4311 = vbcast.lane.b32.xlu0 %v244, %s4310
  %v4312 = vpop.permute.xlu0 %4311
  %s4314 = sor.u32 256, 48
  %4315 = vbcast.lane.b32.xlu0 %v251, %s4314
  %v4316 = vpop.permute.xlu0 %4315
  %s4318 = sor.u32 256, 48
  %4319 = vbcast.lane.b32.xlu0 %v258, %s4318
  %v4320 = vpop.permute.xlu0 %4319
  %s4322 = sor.u32 256, 48
  %4323 = vbcast.lane.b32.xlu0 %v265, %s4322
  %v4324 = vpop.permute.xlu0 %4323
  %s4326 = sor.u32 256, 48
  %4327 = vbcast.lane.b32.xlu0 %v272, %s4326
  %v4328 = vpop.permute.xlu0 %4327
  %s4330 = sor.u32 256, 48
  %4331 = vbcast.lane.b32.xlu0 %v279, %s4330
  %v4332 = vpop.permute.xlu0 %4331
  %s4334 = sor.u32 256, 48
  %4335 = vbcast.lane.b32.xlu0 %v286, %s4334
  %v4336 = vpop.permute.xlu0 %4335
  %s4338 = sor.u32 256, 48
  %4339 = vbcast.lane.b32.xlu0 %v293, %s4338
  %v4340 = vpop.permute.xlu0 %4339
  %s4342 = sor.u32 256, 48
  %4343 = vbcast.lane.b32.xlu0 %v300, %s4342
  %v4344 = vpop.permute.xlu0 %4343
  %s4346 = sor.u32 256, 48
  %4347 = vbcast.lane.b32.xlu0 %v307, %s4346
  %v4348 = vpop.permute.xlu0 %4347
  %s4350 = sor.u32 256, 48
  %4351 = vbcast.lane.b32.xlu0 %v314, %s4350
  %v4352 = vpop.permute.xlu0 %4351
  %s4354 = sor.u32 256, 48
  %4355 = vbcast.lane.b32.xlu0 %v321, %s4354
  %v4356 = vpop.permute.xlu0 %4355
  %s4358 = sor.u32 256, 48
  %4359 = vbcast.lane.b32.xlu0 %v328, %s4358
  %v4360 = vpop.permute.xlu0 %4359
  %s4362 = sor.u32 256, 48
  %4363 = vbcast.lane.b32.xlu0 %v335, %s4362
  %v4364 = vpop.permute.xlu0 %4363
  %s4366 = sor.u32 256, 48
  %4367 = vbcast.lane.b32.xlu0 %v342, %s4366
  %v4368 = vpop.permute.xlu0 %4367
  %s4370 = sor.u32 256, 48
  %4371 = vbcast.lane.b32.xlu0 %v349, %s4370
  %v4372 = vpop.permute.xlu0 %4371
  %v4373 = vadd.f32 %v4312, %v231
  %v4374 = vadd.f32 %v4316, %v231
  %v4375 = vadd.f32 %v4320, %v231
  %v4376 = vadd.f32 %v4324, %v231
  %v4377 = vadd.f32 %v4328, %v231
  %v4378 = vadd.f32 %v4332, %v231
  %v4379 = vadd.f32 %v4336, %v231
  %v4380 = vadd.f32 %v4340, %v231
  %v4381 = vadd.f32 %v4344, %v231
  %v4382 = vadd.f32 %v4348, %v231
  %v4383 = vadd.f32 %v4352, %v231
  %v4384 = vadd.f32 %v4356, %v231
  %v4385 = vadd.f32 %v4360, %v231
  %v4386 = vadd.f32 %v4364, %v231
  %v4387 = vadd.f32 %v4368, %v231
  %v4388 = vadd.f32 %v4372, %v231
  %vm4389 = vcmp.ge.f32.partialorder %v4373, 0.0
  %vm4390 = vcmp.ge.f32.partialorder %v4374, 0.0
  %vm4391 = vcmp.ge.f32.partialorder %v4375, 0.0
  %vm4392 = vcmp.ge.f32.partialorder %v4376, 0.0
  %vm4393 = vcmp.ge.f32.partialorder %v4377, 0.0
  %vm4394 = vcmp.ge.f32.partialorder %v4378, 0.0
  %vm4395 = vcmp.ge.f32.partialorder %v4379, 0.0
  %vm4396 = vcmp.ge.f32.partialorder %v4380, 0.0
  %vm4397 = vcmp.ge.f32.partialorder %v4381, 0.0
  %vm4398 = vcmp.ge.f32.partialorder %v4382, 0.0
  %vm4399 = vcmp.ge.f32.partialorder %v4383, 0.0
  %vm4400 = vcmp.ge.f32.partialorder %v4384, 0.0
  %vm4401 = vcmp.ge.f32.partialorder %v4385, 0.0
  %vm4402 = vcmp.ge.f32.partialorder %v4386, 0.0
  %vm4403 = vcmp.ge.f32.partialorder %v4387, 0.0
  %vm4404 = vcmp.ge.f32.partialorder %v4388, 0.0
  %v4405 = vmul.f32 %v4373, 0.2
  %v4406 = vmul.f32 %v4374, 0.2
  %v4407 = vmul.f32 %v4375, 0.2
  %v4408 = vmul.f32 %v4376, 0.2
  %v4409 = vmul.f32 %v4377, 0.2
  %v4410 = vmul.f32 %v4378, 0.2
  %v4411 = vmul.f32 %v4379, 0.2
  %v4412 = vmul.f32 %v4380, 0.2
  %v4413 = vmul.f32 %v4381, 0.2
  %v4414 = vmul.f32 %v4382, 0.2
  %v4415 = vmul.f32 %v4383, 0.2
  %v4416 = vmul.f32 %v4384, 0.2
  %v4417 = vmul.f32 %v4385, 0.2
  %v4418 = vmul.f32 %v4386, 0.2
  %v4419 = vmul.f32 %v4387, 0.2
  %v4420 = vmul.f32 %v4388, 0.2
  %v4421 = vsel %vm4389, %v4373, %v4405
  %v4422 = vsel %vm4390, %v4374, %v4406
  %v4423 = vsel %vm4391, %v4375, %v4407
  %v4424 = vsel %vm4392, %v4376, %v4408
  %v4425 = vsel %vm4393, %v4377, %v4409
  %v4426 = vsel %vm4394, %v4378, %v4410
  %v4427 = vsel %vm4395, %v4379, %v4411
  %v4428 = vsel %vm4396, %v4380, %v4412
  %v4429 = vsel %vm4397, %v4381, %v4413
  %v4430 = vsel %vm4398, %v4382, %v4414
  %v4431 = vsel %vm4399, %v4383, %v4415
  %v4432 = vsel %vm4400, %v4384, %v4416
  %v4433 = vsel %vm4401, %v4385, %v4417
  %v4434 = vsel %vm4402, %v4386, %v4418
  %v4435 = vsel %vm4403, %v4387, %v4419
  %v4436 = vsel %vm4404, %v4388, %v4420
  %s4438 = sor.u32 256, 48
  %4439 = vbcast.lane.b32.xlu0 %v420, %s4438
  %v4440 = vpop.permute.xlu0 %4439
  %v4441 = vmul.f32 %v4421, %v4440
  %v4442 = vmul.f32 %v4422, %v4440
  %v4443 = vmul.f32 %v4423, %v4440
  %v4444 = vmul.f32 %v4424, %v4440
  %v4445 = vmul.f32 %v4425, %v4440
  %v4446 = vmul.f32 %v4426, %v4440
  %v4447 = vmul.f32 %v4427, %v4440
  %v4448 = vmul.f32 %v4428, %v4440
  %v4449 = vmul.f32 %v4429, %v4440
  %v4450 = vmul.f32 %v4430, %v4440
  %v4451 = vmul.f32 %v4431, %v4440
  %v4452 = vmul.f32 %v4432, %v4440
  %v4453 = vmul.f32 %v4433, %v4440
  %v4454 = vmul.f32 %v4434, %v4440
  %v4455 = vmul.f32 %v4435, %v4440
  %v4456 = vmul.f32 %v4436, %v4440
  %v4457 = vsel %vm48, %v4441, 0.0
  %v4458 = vrot.slane %v4457, 4
  %v4459 = vadd.f32 %v4457, %v4458
  %v4460 = vrot.slane %v4459, 2
  %v4461 = vadd.f32 %v4459, %v4460
  %v4462 = vrot.slane %v4461, 1
  %v4463 = vadd.f32 %v4461, %v4462
  %v4464 = vsel %vm48, %v4442, 0.0
  %v4465 = vrot.slane %v4464, 4
  %v4466 = vadd.f32 %v4464, %v4465
  %v4467 = vrot.slane %v4466, 2
  %v4468 = vadd.f32 %v4466, %v4467
  %v4469 = vrot.slane %v4468, 1
  %v4470 = vadd.f32 %v4468, %v4469
  %v4471 = vsel %vm48, %v4443, 0.0
  %v4472 = vrot.slane %v4471, 4
  %v4473 = vadd.f32 %v4471, %v4472
  %v4474 = vrot.slane %v4473, 2
  %v4475 = vadd.f32 %v4473, %v4474
  %v4476 = vrot.slane %v4475, 1
  %v4477 = vadd.f32 %v4475, %v4476
  %v4478 = vsel %vm48, %v4444, 0.0
  %v4479 = vrot.slane %v4478, 4
  %v4480 = vadd.f32 %v4478, %v4479
  %v4481 = vrot.slane %v4480, 2
  %v4482 = vadd.f32 %v4480, %v4481
  %v4483 = vrot.slane %v4482, 1
  %v4484 = vadd.f32 %v4482, %v4483
  %v4485 = vsel %vm48, %v4445, 0.0
  %v4486 = vrot.slane %v4485, 4
  %v4487 = vadd.f32 %v4485, %v4486
  %v4488 = vrot.slane %v4487, 2
  %v4489 = vadd.f32 %v4487, %v4488
  %v4490 = vrot.slane %v4489, 1
  %v4491 = vadd.f32 %v4489, %v4490
  %v4492 = vsel %vm48, %v4446, 0.0
  %v4493 = vrot.slane %v4492, 4
  %v4494 = vadd.f32 %v4492, %v4493
  %v4495 = vrot.slane %v4494, 2
  %v4496 = vadd.f32 %v4494, %v4495
  %v4497 = vrot.slane %v4496, 1
  %v4498 = vadd.f32 %v4496, %v4497
  %v4499 = vsel %vm48, %v4447, 0.0
  %v4500 = vrot.slane %v4499, 4
  %v4501 = vadd.f32 %v4499, %v4500
  %v4502 = vrot.slane %v4501, 2
  %v4503 = vadd.f32 %v4501, %v4502
  %v4504 = vrot.slane %v4503, 1
  %v4505 = vadd.f32 %v4503, %v4504
  %v4506 = vsel %vm48, %v4448, 0.0
  %v4507 = vrot.slane %v4506, 4
  %v4508 = vadd.f32 %v4506, %v4507
  %v4509 = vrot.slane %v4508, 2
  %v4510 = vadd.f32 %v4508, %v4509
  %v4511 = vrot.slane %v4510, 1
  %v4512 = vadd.f32 %v4510, %v4511
  %v4513 = vsel %vm48, %v4449, 0.0
  %v4514 = vrot.slane %v4513, 4
  %v4515 = vadd.f32 %v4513, %v4514
  %v4516 = vrot.slane %v4515, 2
  %v4517 = vadd.f32 %v4515, %v4516
  %v4518 = vrot.slane %v4517, 1
  %v4519 = vadd.f32 %v4517, %v4518
  %v4520 = vsel %vm48, %v4450, 0.0
  %v4521 = vrot.slane %v4520, 4
  %v4522 = vadd.f32 %v4520, %v4521
  %v4523 = vrot.slane %v4522, 2
  %v4524 = vadd.f32 %v4522, %v4523
  %v4525 = vrot.slane %v4524, 1
  %v4526 = vadd.f32 %v4524, %v4525
  %v4527 = vsel %vm48, %v4451, 0.0
  %v4528 = vrot.slane %v4527, 4
  %v4529 = vadd.f32 %v4527, %v4528
  %v4530 = vrot.slane %v4529, 2
  %v4531 = vadd.f32 %v4529, %v4530
  %v4532 = vrot.slane %v4531, 1
  %v4533 = vadd.f32 %v4531, %v4532
  %v4534 = vsel %vm48, %v4452, 0.0
  %v4535 = vrot.slane %v4534, 4
  %v4536 = vadd.f32 %v4534, %v4535
  %v4537 = vrot.slane %v4536, 2
  %v4538 = vadd.f32 %v4536, %v4537
  %v4539 = vrot.slane %v4538, 1
  %v4540 = vadd.f32 %v4538, %v4539
  %v4541 = vsel %vm48, %v4453, 0.0
  %v4542 = vrot.slane %v4541, 4
  %v4543 = vadd.f32 %v4541, %v4542
  %v4544 = vrot.slane %v4543, 2
  %v4545 = vadd.f32 %v4543, %v4544
  %v4546 = vrot.slane %v4545, 1
  %v4547 = vadd.f32 %v4545, %v4546
  %v4548 = vsel %vm48, %v4454, 0.0
  %v4549 = vrot.slane %v4548, 4
  %v4550 = vadd.f32 %v4548, %v4549
  %v4551 = vrot.slane %v4550, 2
  %v4552 = vadd.f32 %v4550, %v4551
  %v4553 = vrot.slane %v4552, 1
  %v4554 = vadd.f32 %v4552, %v4553
  %v4555 = vsel %vm48, %v4455, 0.0
  %v4556 = vrot.slane %v4555, 4
  %v4557 = vadd.f32 %v4555, %v4556
  %v4558 = vrot.slane %v4557, 2
  %v4559 = vadd.f32 %v4557, %v4558
  %v4560 = vrot.slane %v4559, 1
  %v4561 = vadd.f32 %v4559, %v4560
  %v4562 = vsel %vm48, %v4456, 0.0
  %v4563 = vrot.slane %v4562, 4
  %v4564 = vadd.f32 %v4562, %v4563
  %v4565 = vrot.slane %v4564, 2
  %v4566 = vadd.f32 %v4564, %v4565
  %v4567 = vrot.slane %v4566, 1
  %v4568 = vadd.f32 %v4566, %v4567
  %v4569 = vadd.f32 %v4463, %v37
  %v4570 = vadd.f32 %v4470, %v554
  %v4571 = vadd.f32 %v4477, %v555
  %v4572 = vadd.f32 %v4484, %v556
  %v4573 = vadd.f32 %v4491, %v557
  %v4574 = vadd.f32 %v4498, %v558
  %v4575 = vadd.f32 %v4505, %v559
  %v4576 = vadd.f32 %v4512, %v560
  %v4577 = vadd.f32 %v4519, %v38
  %v4578 = vadd.f32 %v4526, %v561
  %v4579 = vadd.f32 %v4533, %v562
  %v4580 = vadd.f32 %v4540, %v563
  %v4581 = vadd.f32 %v4547, %v564
  %v4582 = vadd.f32 %v4554, %v565
  %v4583 = vadd.f32 %v4561, %v566
  %v4584 = vadd.f32 %v4568, %v567
  %v4601 = vrot.slane %v4570, 7
  %v4602 = vsel %vm617, %v4601, %v4569
  %v4603 = vrot.slane %v4571, 6
  %v4604 = vsel %vm620, %v4603, %v4602
  %v4605 = vrot.slane %v4572, 5
  %v4606 = vsel %vm623, %v4605, %v4604
  %v4607 = vrot.slane %v4573, 4
  %v4608 = vsel %vm626, %v4607, %v4606
  %v4609 = vrot.slane %v4574, 3
  %v4610 = vsel %vm629, %v4609, %v4608
  %v4611 = vrot.slane %v4575, 2
  %v4612 = vsel %vm632, %v4611, %v4610
  %v4613 = vrot.slane %v4576, 1
  %v4614 = vsel %vm635, %v4613, %v4612
  %v4615 = vrot.slane %v4578, 7
  %v4616 = vsel %vm617, %v4615, %v4577
  %v4617 = vrot.slane %v4579, 6
  %v4618 = vsel %vm620, %v4617, %v4616
  %v4619 = vrot.slane %v4580, 5
  %v4620 = vsel %vm623, %v4619, %v4618
  %v4621 = vrot.slane %v4581, 4
  %v4622 = vsel %vm626, %v4621, %v4620
  %v4623 = vrot.slane %v4582, 3
  %v4624 = vsel %vm629, %v4623, %v4622
  %v4625 = vrot.slane %v4583, 2
  %v4626 = vsel %vm632, %v4625, %v4624
  %v4627 = vrot.slane %v4584, 1
  %v4628 = vsel %vm635, %v4627, %v4626
  %v4631 = vsel %vm48, %v4614, -inf
  %4632 = vmax.xlane.f32.xlu0 %v4631
  %v4633 = vpop.xlane.xlu0 %4632
  %v4634 = vsel %vm48, %v4628, -inf
  %4635 = vmax.xlane.f32.xlu0 %v4634
  %v4636 = vpop.xlane.xlu0 %4635
  %v4639 = vrot.slane %v4633, 1
  %v4640 = vrot.slane %v4633, 2
  %v4641 = vrot.slane %v4633, 3
  %v4642 = vrot.slane %v4633, 4
  %v4643 = vrot.slane %v4633, 5
  %v4644 = vrot.slane %v4633, 6
  %v4645 = vrot.slane %v4633, 7
  %v4646 = vrot.slane %v4636, 1
  %v4647 = vrot.slane %v4636, 2
  %v4648 = vrot.slane %v4636, 3
  %v4649 = vrot.slane %v4636, 4
  %v4650 = vrot.slane %v4636, 5
  %v4651 = vrot.slane %v4636, 6
  %v4652 = vrot.slane %v4636, 7
  %v4669 = vsub.f32 %v4569, %v4633
  %v4670 = vsub.f32 %v4570, %v4639
  %v4671 = vsub.f32 %v4571, %v4640
  %v4672 = vsub.f32 %v4572, %v4641
  %v4673 = vsub.f32 %v4573, %v4642
  %v4674 = vsub.f32 %v4574, %v4643
  %v4675 = vsub.f32 %v4575, %v4644
  %v4676 = vsub.f32 %v4576, %v4645
  %v4677 = vsub.f32 %v4577, %v4636
  %v4678 = vsub.f32 %v4578, %v4646
  %v4679 = vsub.f32 %v4579, %v4647
  %v4680 = vsub.f32 %v4580, %v4648
  %v4681 = vsub.f32 %v4581, %v4649
  %v4682 = vsub.f32 %v4582, %v4650
  %v4683 = vsub.f32 %v4583, %v4651
  %v4684 = vsub.f32 %v4584, %v4652
  %v4685 = vmul.f32 %v4669, 1.442695
  %v4686 = vpow.pop %v4685
  %v4687 = vmul.f32 %v4670, 1.442695
  %v4688 = vpow.pop %v4687
  %v4689 = vmul.f32 %v4671, 1.442695
  %v4690 = vpow.pop %v4689
  %v4691 = vmul.f32 %v4672, 1.442695
  %v4692 = vpow.pop %v4691
  %v4693 = vmul.f32 %v4673, 1.442695
  %v4694 = vpow.pop %v4693
  %v4695 = vmul.f32 %v4674, 1.442695
  %v4696 = vpow.pop %v4695
  %v4697 = vmul.f32 %v4675, 1.442695
  %v4698 = vpow.pop %v4697
  %v4699 = vmul.f32 %v4676, 1.442695
  %v4700 = vpow.pop %v4699
  %v4701 = vmul.f32 %v4677, 1.442695
  %v4702 = vpow.pop %v4701
  %v4703 = vmul.f32 %v4678, 1.442695
  %v4704 = vpow.pop %v4703
  %v4705 = vmul.f32 %v4679, 1.442695
  %v4706 = vpow.pop %v4705
  %v4707 = vmul.f32 %v4680, 1.442695
  %v4708 = vpow.pop %v4707
  %v4709 = vmul.f32 %v4681, 1.442695
  %v4710 = vpow.pop %v4709
  %v4711 = vmul.f32 %v4682, 1.442695
  %v4712 = vpow.pop %v4711
  %v4713 = vmul.f32 %v4683, 1.442695
  %v4714 = vpow.pop %v4713
  %v4715 = vmul.f32 %v4684, 1.442695
  %v4716 = vpow.pop %v4715
  %v4717 = vmul.f32 %v4686, %v33
  %v4718 = vmul.f32 %v4688, %v741
  %v4719 = vmul.f32 %v4690, %v742
  %v4720 = vmul.f32 %v4692, %v743
  %v4721 = vmul.f32 %v4694, %v744
  %v4722 = vmul.f32 %v4696, %v745
  %v4723 = vmul.f32 %v4698, %v746
  %v4724 = vmul.f32 %v4700, %v747
  %v4725 = vmul.f32 %v4702, %v34
  %v4726 = vmul.f32 %v4704, %v748
  %v4727 = vmul.f32 %v4706, %v749
  %v4728 = vmul.f32 %v4708, %v750
  %v4729 = vmul.f32 %v4710, %v751
  %v4730 = vmul.f32 %v4712, %v752
  %v4731 = vmul.f32 %v4714, %v753
  %v4732 = vmul.f32 %v4716, %v754
  %v4749 = vrot.slane %v4718, 7
  %v4750 = vsel %vm617, %v4749, %v4717
  %v4751 = vrot.slane %v4719, 6
  %v4752 = vsel %vm620, %v4751, %v4750
  %v4753 = vrot.slane %v4720, 5
  %v4754 = vsel %vm623, %v4753, %v4752
  %v4755 = vrot.slane %v4721, 4
  %v4756 = vsel %vm626, %v4755, %v4754
  %v4757 = vrot.slane %v4722, 3
  %v4758 = vsel %vm629, %v4757, %v4756
  %v4759 = vrot.slane %v4723, 2
  %v4760 = vsel %vm632, %v4759, %v4758
  %v4761 = vrot.slane %v4724, 1
  %v4762 = vsel %vm635, %v4761, %v4760
  %v4763 = vrot.slane %v4726, 7
  %v4764 = vsel %vm617, %v4763, %v4725
  %v4765 = vrot.slane %v4727, 6
  %v4766 = vsel %vm620, %v4765, %v4764
  %v4767 = vrot.slane %v4728, 5
  %v4768 = vsel %vm623, %v4767, %v4766
  %v4769 = vrot.slane %v4729, 4
  %v4770 = vsel %vm626, %v4769, %v4768
  %v4771 = vrot.slane %v4730, 3
  %v4772 = vsel %vm629, %v4771, %v4770
  %v4773 = vrot.slane %v4731, 2
  %v4774 = vsel %vm632, %v4773, %v4772
  %v4775 = vrot.slane %v4732, 1
  %v4776 = vsel %vm635, %v4775, %v4774
  %v4779 = vsel %vm48, %v4762, 0.0
  %4780 = vadd.xlane.f32.xlu0 %v4779
  %v4781 = vpop.xlane.xlu0 %4780
  %v4782 = vsel %vm48, %v4776, 0.0
  %4783 = vadd.xlane.f32.xlu0 %v4782
  %v4784 = vpop.xlane.xlu0 %4783
  %v4785 = vrcp.pop %v4781
  %v4786 = vrcp.pop %v4784
  %v4789 = vrot.slane %v4785, 1
  %v4790 = vrot.slane %v4785, 2
  %v4791 = vrot.slane %v4785, 3
  %v4792 = vrot.slane %v4785, 4
  %v4793 = vrot.slane %v4785, 5
  %v4794 = vrot.slane %v4785, 6
  %v4795 = vrot.slane %v4785, 7
  %v4796 = vrot.slane %v4786, 1
  %v4797 = vrot.slane %v4786, 2
  %v4798 = vrot.slane %v4786, 3
  %v4799 = vrot.slane %v4786, 4
  %v4800 = vrot.slane %v4786, 5
  %v4801 = vrot.slane %v4786, 6
  %v4802 = vrot.slane %v4786, 7
  %v4819 = vmul.f32 %v4717, %v4785
  %v4820 = vmul.f32 %v4718, %v4789
  %v4821 = vmul.f32 %v4719, %v4790
  %v4822 = vmul.f32 %v4720, %v4791
  %v4823 = vmul.f32 %v4721, %v4792
  %v4824 = vmul.f32 %v4722, %v4793
  %v4825 = vmul.f32 %v4723, %v4794
  %v4826 = vmul.f32 %v4724, %v4795
  %v4827 = vmul.f32 %v4725, %v4786
  %v4828 = vmul.f32 %v4726, %v4796
  %v4829 = vmul.f32 %v4727, %v4797
  %v4830 = vmul.f32 %v4728, %v4798
  %v4831 = vmul.f32 %v4729, %v4799
  %v4832 = vmul.f32 %v4730, %v4800
  %v4833 = vmul.f32 %v4731, %v4801
  %v4834 = vmul.f32 %v4732, %v4802
  %v4851 = vrot.slane %v4820, 7
  %v4852 = vsel %vm617, %v4851, %v4819
  %v4853 = vrot.slane %v4821, 6
  %v4854 = vsel %vm620, %v4853, %v4852
  %v4855 = vrot.slane %v4822, 5
  %v4856 = vsel %vm623, %v4855, %v4854
  %v4857 = vrot.slane %v4823, 4
  %v4858 = vsel %vm626, %v4857, %v4856
  %v4859 = vrot.slane %v4824, 3
  %v4860 = vsel %vm629, %v4859, %v4858
  %v4861 = vrot.slane %v4825, 2
  %v4862 = vsel %vm632, %v4861, %v4860
  %v4863 = vrot.slane %v4826, 1
  %v4864 = vsel %vm635, %v4863, %v4862
  %v4865 = vrot.slane %v4828, 7
  %v4866 = vsel %vm617, %v4865, %v4827
  %v4867 = vrot.slane %v4829, 6
  %v4868 = vsel %vm620, %v4867, %v4866
  %v4869 = vrot.slane %v4830, 5
  %v4870 = vsel %vm623, %v4869, %v4868
  %v4871 = vrot.slane %v4831, 4
  %v4872 = vsel %vm626, %v4871, %v4870
  %v4873 = vrot.slane %v4832, 3
  %v4874 = vsel %vm629, %v4873, %v4872
  %v4875 = vrot.slane %v4833, 2
  %v4876 = vsel %vm632, %v4875, %v4874
  %v4877 = vrot.slane %v4834, 1
  %v4878 = vsel %vm635, %v4877, %v4876
  %4879 = vrot.lane.b32.xlu0 %v122, 80
  %v4880 = vpop.permute.xlu0 %4879
  %4881 = vrot.lane.b32.xlu0 %v127, 80
  %v4882 = vpop.permute.xlu0 %4881
  %4885 = vrot.lane.b32.xlu0 %v892, 80
  %v4886 = vpop.permute.xlu0 %4885
  %v4888 = vsel %vm48, %v4864, 0
  %v4890 = vsel %vm48, %v4878, 0
  %4892 = vmatprep.subr.mxu0 0.0
  %4893 = vmatpush1.msra.mxu0 %v4880
  %4894 = vmatprep.subr.mxu0 0.0
  %4895 = vmatpush1.msra.mxu0 %v4882
  %4896 = vmatprep.subr.mxu0 0.0
  %4897 = vmatpush1.msra.mxu0 0.0
  %4898 = vmatprep.subr.mxu0 0.0
  %4899 = vmatpush1.msra.mxu0 0.0
  %4900 = vmatprep.subr.mxu0 0.0
  %4901 = vmatpush1.msra.mxu0 0.0
  %4902 = vmatprep.subr.mxu0 0.0
  %4903 = vmatpush1.msra.mxu0 0.0
  %4904 = vmatprep.subr.mxu0 0.0
  %4905 = vmatpush1.msra.mxu0 0.0
  %4906 = vmatprep.subr.mxu0 0.0
  %4907 = vmatpush1.msra.mxu0 0.0
  %4908 = vmatprep.subr.mxu0 0.0
  %4909 = vmatpush1.msra.mxu0 0.0
  %4910 = vmatprep.subr.mxu0 0.0
  %4911 = vmatpush1.msra.mxu0 0.0
  %4912 = vmatprep.subr.mxu0 0.0
  %4913 = vmatpush1.msra.mxu0 0.0
  %4914 = vmatprep.subr.mxu0 0.0
  %4915 = vmatpush1.msra.mxu0 0.0
  %4916 = vmatprep.subr.mxu0 0.0
  %4917 = vmatpush1.msra.mxu0 0.0
  %4918 = vmatprep.subr.mxu0 0.0
  %4919 = vmatpush1.msra.mxu0 0.0
  %4920 = vmatprep.subr.mxu0 0.0
  %4921 = vmatpush1.msra.mxu0 0.0
  %4922 = vmatprep.subr.mxu0 0.0
  %4923 = vmatpush1.msra.mxu0 0.0
  %4924 = vmatprep.subr.mxu0 0.0
  %4925 = vmatpush1.msra.mxu0 0.0
  %4926 = vmatprep.subr.mxu0 0.0
  %4927 = vmatpush1.msra.mxu0 0.0
  %4928 = vmatprep.subr.mxu0 0.0
  %4929 = vmatpush1.msra.mxu0 0.0
  %4930 = vmatprep.subr.mxu0 0.0
  %4931 = vmatpush1.msra.mxu0 0.0
  %4932 = vmatprep.subr.mxu0 0.0
  %4933 = vmatpush1.msra.mxu0 0.0
  %4934 = vmatprep.subr.mxu0 0.0
  %4935 = vmatpush1.msra.mxu0 0.0
  %4936 = vmatprep.subr.mxu0 0.0
  %4937 = vmatpush1.msra.mxu0 0.0
  %4938 = vmatprep.subr.mxu0 0.0
  %4939 = vmatpush1.msra.mxu0 0.0
  %4940 = vmatprep.subr.mxu0 0.0
  %4941 = vmatpush1.msra.mxu0 0.0
  %4942 = vmatprep.subr.mxu0 0.0
  %4943 = vmatpush1.msra.mxu0 0.0
  %4944 = vmatprep.subr.mxu0 0.0
  %4945 = vmatpush1.msra.mxu0 0.0
  %4946 = vmatprep.subr.mxu0 0.0
  %4947 = vmatpush1.msra.mxu0 0.0
  %4948 = vmatprep.subr.mxu0 0.0
  %4949 = vmatpush1.msra.mxu0 0.0
  %4950 = vmatprep.subr.mxu0 0.0
  %4951 = vmatpush1.msra.mxu0 0.0
  %4952 = vmatprep.subr.mxu0 0.0
  %4953 = vmatpush1.msra.mxu0 0.0
  %4954 = vmatprep.subr.mxu0 0.0
  %4955 = vmatpush1.msra.mxu0 0.0
  %4956 = vmatprep.mubr.f32.mxu0 0.0
  %4957 = vmatmul.mubr.f32.gmra.mrb[0].mxu0 %v4888
  %v4958 = vpop.f32.mrb[0].mxu0
  %v4959 = vadd.f32 %v4886, %v4958
  %v4960 = vpop.f32.mrb[0].mxu0
  %4961 = vmatprep.mubr.f32.mxu0 0.0
  %4962 = vmatmul.mubr.f32.gmra.mrb[0].mxu0 %v4890
  %v4963 = vpop.f32.mrb[0].mxu0
  %v4964 = vadd.f32 %v4886, %v4963
  %v4965 = vpop.f32.mrb[0].mxu0
  %4966 = vdwg.mxu0
  %s4968 = sor.u32 256, 56
  %4969 = vbcast.lane.b32.xlu0 %v244, %s4968
  %v4970 = vpop.permute.xlu0 %4969
  %s4972 = sor.u32 256, 56
  %4973 = vbcast.lane.b32.xlu0 %v251, %s4972
  %v4974 = vpop.permute.xlu0 %4973
  %s4976 = sor.u32 256, 56
  %4977 = vbcast.lane.b32.xlu0 %v258, %s4976
  %v4978 = vpop.permute.xlu0 %4977
  %s4980 = sor.u32 256, 56
  %4981 = vbcast.lane.b32.xlu0 %v265, %s4980
  %v4982 = vpop.permute.xlu0 %4981
  %s4984 = sor.u32 256, 56
  %4985 = vbcast.lane.b32.xlu0 %v272, %s4984
  %v4986 = vpop.permute.xlu0 %4985
  %s4988 = sor.u32 256, 56
  %4989 = vbcast.lane.b32.xlu0 %v279, %s4988
  %v4990 = vpop.permute.xlu0 %4989
  %s4992 = sor.u32 256, 56
  %4993 = vbcast.lane.b32.xlu0 %v286, %s4992
  %v4994 = vpop.permute.xlu0 %4993
  %s4996 = sor.u32 256, 56
  %4997 = vbcast.lane.b32.xlu0 %v293, %s4996
  %v4998 = vpop.permute.xlu0 %4997
  %s5000 = sor.u32 256, 56
  %5001 = vbcast.lane.b32.xlu0 %v300, %s5000
  %v5002 = vpop.permute.xlu0 %5001
  %s5004 = sor.u32 256, 56
  %5005 = vbcast.lane.b32.xlu0 %v307, %s5004
  %v5006 = vpop.permute.xlu0 %5005
  %s5008 = sor.u32 256, 56
  %5009 = vbcast.lane.b32.xlu0 %v314, %s5008
  %v5010 = vpop.permute.xlu0 %5009
  %s5012 = sor.u32 256, 56
  %5013 = vbcast.lane.b32.xlu0 %v321, %s5012
  %v5014 = vpop.permute.xlu0 %5013
  %s5016 = sor.u32 256, 56
  %5017 = vbcast.lane.b32.xlu0 %v328, %s5016
  %v5018 = vpop.permute.xlu0 %5017
  %s5020 = sor.u32 256, 56
  %5021 = vbcast.lane.b32.xlu0 %v335, %s5020
  %v5022 = vpop.permute.xlu0 %5021
  %s5024 = sor.u32 256, 56
  %5025 = vbcast.lane.b32.xlu0 %v342, %s5024
  %v5026 = vpop.permute.xlu0 %5025
  %s5028 = sor.u32 256, 56
  %5029 = vbcast.lane.b32.xlu0 %v349, %s5028
  %v5030 = vpop.permute.xlu0 %5029
  %v5031 = vadd.f32 %v4970, %v232
  %v5032 = vadd.f32 %v4974, %v232
  %v5033 = vadd.f32 %v4978, %v232
  %v5034 = vadd.f32 %v4982, %v232
  %v5035 = vadd.f32 %v4986, %v232
  %v5036 = vadd.f32 %v4990, %v232
  %v5037 = vadd.f32 %v4994, %v232
  %v5038 = vadd.f32 %v4998, %v232
  %v5039 = vadd.f32 %v5002, %v232
  %v5040 = vadd.f32 %v5006, %v232
  %v5041 = vadd.f32 %v5010, %v232
  %v5042 = vadd.f32 %v5014, %v232
  %v5043 = vadd.f32 %v5018, %v232
  %v5044 = vadd.f32 %v5022, %v232
  %v5045 = vadd.f32 %v5026, %v232
  %v5046 = vadd.f32 %v5030, %v232
  %vm5047 = vcmp.ge.f32.partialorder %v5031, 0.0
  %vm5048 = vcmp.ge.f32.partialorder %v5032, 0.0
  %vm5049 = vcmp.ge.f32.partialorder %v5033, 0.0
  %vm5050 = vcmp.ge.f32.partialorder %v5034, 0.0
  %vm5051 = vcmp.ge.f32.partialorder %v5035, 0.0
  %vm5052 = vcmp.ge.f32.partialorder %v5036, 0.0
  %vm5053 = vcmp.ge.f32.partialorder %v5037, 0.0
  %vm5054 = vcmp.ge.f32.partialorder %v5038, 0.0
  %vm5055 = vcmp.ge.f32.partialorder %v5039, 0.0
  %vm5056 = vcmp.ge.f32.partialorder %v5040, 0.0
  %vm5057 = vcmp.ge.f32.partialorder %v5041, 0.0
  %vm5058 = vcmp.ge.f32.partialorder %v5042, 0.0
  %vm5059 = vcmp.ge.f32.partialorder %v5043, 0.0
  %vm5060 = vcmp.ge.f32.partialorder %v5044, 0.0
  %vm5061 = vcmp.ge.f32.partialorder %v5045, 0.0
  %vm5062 = vcmp.ge.f32.partialorder %v5046, 0.0
  %v5063 = vmul.f32 %v5031, 0.2
  %v5064 = vmul.f32 %v5032, 0.2
  %v5065 = vmul.f32 %v5033, 0.2
  %v5066 = vmul.f32 %v5034, 0.2
  %v5067 = vmul.f32 %v5035, 0.2
  %v5068 = vmul.f32 %v5036, 0.2
  %v5069 = vmul.f32 %v5037, 0.2
  %v5070 = vmul.f32 %v5038, 0.2
  %v5071 = vmul.f32 %v5039, 0.2
  %v5072 = vmul.f32 %v5040, 0.2
  %v5073 = vmul.f32 %v5041, 0.2
  %v5074 = vmul.f32 %v5042, 0.2
  %v5075 = vmul.f32 %v5043, 0.2
  %v5076 = vmul.f32 %v5044, 0.2
  %v5077 = vmul.f32 %v5045, 0.2
  %v5078 = vmul.f32 %v5046, 0.2
  %v5079 = vsel %vm5047, %v5031, %v5063
  %v5080 = vsel %vm5048, %v5032, %v5064
  %v5081 = vsel %vm5049, %v5033, %v5065
  %v5082 = vsel %vm5050, %v5034, %v5066
  %v5083 = vsel %vm5051, %v5035, %v5067
  %v5084 = vsel %vm5052, %v5036, %v5068
  %v5085 = vsel %vm5053, %v5037, %v5069
  %v5086 = vsel %vm5054, %v5038, %v5070
  %v5087 = vsel %vm5055, %v5039, %v5071
  %v5088 = vsel %vm5056, %v5040, %v5072
  %v5089 = vsel %vm5057, %v5041, %v5073
  %v5090 = vsel %vm5058, %v5042, %v5074
  %v5091 = vsel %vm5059, %v5043, %v5075
  %v5092 = vsel %vm5060, %v5044, %v5076
  %v5093 = vsel %vm5061, %v5045, %v5077
  %v5094 = vsel %vm5062, %v5046, %v5078
  %s5096 = sor.u32 256, 56
  %5097 = vbcast.lane.b32.xlu0 %v420, %s5096
  %v5098 = vpop.permute.xlu0 %5097
  %v5099 = vmul.f32 %v5079, %v5098
  %v5100 = vmul.f32 %v5080, %v5098
  %v5101 = vmul.f32 %v5081, %v5098
  %v5102 = vmul.f32 %v5082, %v5098
  %v5103 = vmul.f32 %v5083, %v5098
  %v5104 = vmul.f32 %v5084, %v5098
  %v5105 = vmul.f32 %v5085, %v5098
  %v5106 = vmul.f32 %v5086, %v5098
  %v5107 = vmul.f32 %v5087, %v5098
  %v5108 = vmul.f32 %v5088, %v5098
  %v5109 = vmul.f32 %v5089, %v5098
  %v5110 = vmul.f32 %v5090, %v5098
  %v5111 = vmul.f32 %v5091, %v5098
  %v5112 = vmul.f32 %v5092, %v5098
  %v5113 = vmul.f32 %v5093, %v5098
  %v5114 = vmul.f32 %v5094, %v5098
  %v5115 = vsel %vm48, %v5099, 0.0
  %v5116 = vrot.slane %v5115, 4
  %v5117 = vadd.f32 %v5115, %v5116
  %v5118 = vrot.slane %v5117, 2
  %v5119 = vadd.f32 %v5117, %v5118
  %v5120 = vrot.slane %v5119, 1
  %v5121 = vadd.f32 %v5119, %v5120
  %v5122 = vsel %vm48, %v5100, 0.0
  %v5123 = vrot.slane %v5122, 4
  %v5124 = vadd.f32 %v5122, %v5123
  %v5125 = vrot.slane %v5124, 2
  %v5126 = vadd.f32 %v5124, %v5125
  %v5127 = vrot.slane %v5126, 1
  %v5128 = vadd.f32 %v5126, %v5127
  %v5129 = vsel %vm48, %v5101, 0.0
  %v5130 = vrot.slane %v5129, 4
  %v5131 = vadd.f32 %v5129, %v5130
  %v5132 = vrot.slane %v5131, 2
  %v5133 = vadd.f32 %v5131, %v5132
  %v5134 = vrot.slane %v5133, 1
  %v5135 = vadd.f32 %v5133, %v5134
  %v5136 = vsel %vm48, %v5102, 0.0
  %v5137 = vrot.slane %v5136, 4
  %v5138 = vadd.f32 %v5136, %v5137
  %v5139 = vrot.slane %v5138, 2
  %v5140 = vadd.f32 %v5138, %v5139
  %v5141 = vrot.slane %v5140, 1
  %v5142 = vadd.f32 %v5140, %v5141
  %v5143 = vsel %vm48, %v5103, 0.0
  %v5144 = vrot.slane %v5143, 4
  %v5145 = vadd.f32 %v5143, %v5144
  %v5146 = vrot.slane %v5145, 2
  %v5147 = vadd.f32 %v5145, %v5146
  %v5148 = vrot.slane %v5147, 1
  %v5149 = vadd.f32 %v5147, %v5148
  %v5150 = vsel %vm48, %v5104, 0.0
  %v5151 = vrot.slane %v5150, 4
  %v5152 = vadd.f32 %v5150, %v5151
  %v5153 = vrot.slane %v5152, 2
  %v5154 = vadd.f32 %v5152, %v5153
  %v5155 = vrot.slane %v5154, 1
  %v5156 = vadd.f32 %v5154, %v5155
  %v5157 = vsel %vm48, %v5105, 0.0
  %v5158 = vrot.slane %v5157, 4
  %v5159 = vadd.f32 %v5157, %v5158
  %v5160 = vrot.slane %v5159, 2
  %v5161 = vadd.f32 %v5159, %v5160
  %v5162 = vrot.slane %v5161, 1
  %v5163 = vadd.f32 %v5161, %v5162
  %v5164 = vsel %vm48, %v5106, 0.0
  %v5165 = vrot.slane %v5164, 4
  %v5166 = vadd.f32 %v5164, %v5165
  %v5167 = vrot.slane %v5166, 2
  %v5168 = vadd.f32 %v5166, %v5167
  %v5169 = vrot.slane %v5168, 1
  %v5170 = vadd.f32 %v5168, %v5169
  %v5171 = vsel %vm48, %v5107, 0.0
  %v5172 = vrot.slane %v5171, 4
  %v5173 = vadd.f32 %v5171, %v5172
  %v5174 = vrot.slane %v5173, 2
  %v5175 = vadd.f32 %v5173, %v5174
  %v5176 = vrot.slane %v5175, 1
  %v5177 = vadd.f32 %v5175, %v5176
  %v5178 = vsel %vm48, %v5108, 0.0
  %v5179 = vrot.slane %v5178, 4
  %v5180 = vadd.f32 %v5178, %v5179
  %v5181 = vrot.slane %v5180, 2
  %v5182 = vadd.f32 %v5180, %v5181
  %v5183 = vrot.slane %v5182, 1
  %v5184 = vadd.f32 %v5182, %v5183
  %v5185 = vsel %vm48, %v5109, 0.0
  %v5186 = vrot.slane %v5185, 4
  %v5187 = vadd.f32 %v5185, %v5186
  %v5188 = vrot.slane %v5187, 2
  %v5189 = vadd.f32 %v5187, %v5188
  %v5190 = vrot.slane %v5189, 1
  %v5191 = vadd.f32 %v5189, %v5190
  %v5192 = vsel %vm48, %v5110, 0.0
  %v5193 = vrot.slane %v5192, 4
  %v5194 = vadd.f32 %v5192, %v5193
  %v5195 = vrot.slane %v5194, 2
  %v5196 = vadd.f32 %v5194, %v5195
  %v5197 = vrot.slane %v5196, 1
  %v5198 = vadd.f32 %v5196, %v5197
  %v5199 = vsel %vm48, %v5111, 0.0
  %v5200 = vrot.slane %v5199, 4
  %v5201 = vadd.f32 %v5199, %v5200
  %v5202 = vrot.slane %v5201, 2
  %v5203 = vadd.f32 %v5201, %v5202
  %v5204 = vrot.slane %v5203, 1
  %v5205 = vadd.f32 %v5203, %v5204
  %v5206 = vsel %vm48, %v5112, 0.0
  %v5207 = vrot.slane %v5206, 4
  %v5208 = vadd.f32 %v5206, %v5207
  %v5209 = vrot.slane %v5208, 2
  %v5210 = vadd.f32 %v5208, %v5209
  %v5211 = vrot.slane %v5210, 1
  %v5212 = vadd.f32 %v5210, %v5211
  %v5213 = vsel %vm48, %v5113, 0.0
  %v5214 = vrot.slane %v5213, 4
  %v5215 = vadd.f32 %v5213, %v5214
  %v5216 = vrot.slane %v5215, 2
  %v5217 = vadd.f32 %v5215, %v5216
  %v5218 = vrot.slane %v5217, 1
  %v5219 = vadd.f32 %v5217, %v5218
  %v5220 = vsel %vm48, %v5114, 0.0
  %v5221 = vrot.slane %v5220, 4
  %v5222 = vadd.f32 %v5220, %v5221
  %v5223 = vrot.slane %v5222, 2
  %v5224 = vadd.f32 %v5222, %v5223
  %v5225 = vrot.slane %v5224, 1
  %v5226 = vadd.f32 %v5224, %v5225
  %v5227 = vadd.f32 %v5121, %v37
  %v5228 = vadd.f32 %v5128, %v554
  %v5229 = vadd.f32 %v5135, %v555
  %v5230 = vadd.f32 %v5142, %v556
  %v5231 = vadd.f32 %v5149, %v557
  %v5232 = vadd.f32 %v5156, %v558
  %v5233 = vadd.f32 %v5163, %v559
  %v5234 = vadd.f32 %v5170, %v560
  %v5235 = vadd.f32 %v5177, %v38
  %v5236 = vadd.f32 %v5184, %v561
  %v5237 = vadd.f32 %v5191, %v562
  %v5238 = vadd.f32 %v5198, %v563
  %v5239 = vadd.f32 %v5205, %v564
  %v5240 = vadd.f32 %v5212, %v565
  %v5241 = vadd.f32 %v5219, %v566
  %v5242 = vadd.f32 %v5226, %v567
  %v5259 = vrot.slane %v5228, 7
  %v5260 = vsel %vm617, %v5259, %v5227
  %v5261 = vrot.slane %v5229, 6
  %v5262 = vsel %vm620, %v5261, %v5260
  %v5263 = vrot.slane %v5230, 5
  %v5264 = vsel %vm623, %v5263, %v5262
  %v5265 = vrot.slane %v5231, 4
  %v5266 = vsel %vm626, %v5265, %v5264
  %v5267 = vrot.slane %v5232, 3
  %v5268 = vsel %vm629, %v5267, %v5266
  %v5269 = vrot.slane %v5233, 2
  %v5270 = vsel %vm632, %v5269, %v5268
  %v5271 = vrot.slane %v5234, 1
  %v5272 = vsel %vm635, %v5271, %v5270
  %v5273 = vrot.slane %v5236, 7
  %v5274 = vsel %vm617, %v5273, %v5235
  %v5275 = vrot.slane %v5237, 6
  %v5276 = vsel %vm620, %v5275, %v5274
  %v5277 = vrot.slane %v5238, 5
  %v5278 = vsel %vm623, %v5277, %v5276
  %v5279 = vrot.slane %v5239, 4
  %v5280 = vsel %vm626, %v5279, %v5278
  %v5281 = vrot.slane %v5240, 3
  %v5282 = vsel %vm629, %v5281, %v5280
  %v5283 = vrot.slane %v5241, 2
  %v5284 = vsel %vm632, %v5283, %v5282
  %v5285 = vrot.slane %v5242, 1
  %v5286 = vsel %vm635, %v5285, %v5284
  %v5289 = vsel %vm48, %v5272, -inf
  %5290 = vmax.xlane.f32.xlu0 %v5289
  %v5291 = vpop.xlane.xlu0 %5290
  %v5292 = vsel %vm48, %v5286, -inf
  %5293 = vmax.xlane.f32.xlu0 %v5292
  %v5294 = vpop.xlane.xlu0 %5293
  %v5297 = vrot.slane %v5291, 1
  %v5298 = vrot.slane %v5291, 2
  %v5299 = vrot.slane %v5291, 3
  %v5300 = vrot.slane %v5291, 4
  %v5301 = vrot.slane %v5291, 5
  %v5302 = vrot.slane %v5291, 6
  %v5303 = vrot.slane %v5291, 7
  %v5304 = vrot.slane %v5294, 1
  %v5305 = vrot.slane %v5294, 2
  %v5306 = vrot.slane %v5294, 3
  %v5307 = vrot.slane %v5294, 4
  %v5308 = vrot.slane %v5294, 5
  %v5309 = vrot.slane %v5294, 6
  %v5310 = vrot.slane %v5294, 7
  %v5327 = vsub.f32 %v5227, %v5291
  %v5328 = vsub.f32 %v5228, %v5297
  %v5329 = vsub.f32 %v5229, %v5298
  %v5330 = vsub.f32 %v5230, %v5299
  %v5331 = vsub.f32 %v5231, %v5300
  %v5332 = vsub.f32 %v5232, %v5301
  %v5333 = vsub.f32 %v5233, %v5302
  %v5334 = vsub.f32 %v5234, %v5303
  %v5335 = vsub.f32 %v5235, %v5294
  %v5336 = vsub.f32 %v5236, %v5304
  %v5337 = vsub.f32 %v5237, %v5305
  %v5338 = vsub.f32 %v5238, %v5306
  %v5339 = vsub.f32 %v5239, %v5307
  %v5340 = vsub.f32 %v5240, %v5308
  %v5341 = vsub.f32 %v5241, %v5309
  %v5342 = vsub.f32 %v5242, %v5310
  %v5343 = vmul.f32 %v5327, 1.442695
  %v5344 = vpow.pop %v5343
  %v5345 = vmul.f32 %v5328, 1.442695
  %v5346 = vpow.pop %v5345
  %v5347 = vmul.f32 %v5329, 1.442695
  %v5348 = vpow.pop %v5347
  %v5349 = vmul.f32 %v5330, 1.442695
  %v5350 = vpow.pop %v5349
  %v5351 = vmul.f32 %v5331, 1.442695
  %v5352 = vpow.pop %v5351
  %v5353 = vmul.f32 %v5332, 1.442695
  %v5354 = vpow.pop %v5353
  %v5355 = vmul.f32 %v5333, 1.442695
  %v5356 = vpow.pop %v5355
  %v5357 = vmul.f32 %v5334, 1.442695
  %v5358 = vpow.pop %v5357
  %v5359 = vmul.f32 %v5335, 1.442695
  %v5360 = vpow.pop %v5359
  %v5361 = vmul.f32 %v5336, 1.442695
  %v5362 = vpow.pop %v5361
  %v5363 = vmul.f32 %v5337, 1.442695
  %v5364 = vpow.pop %v5363
  %v5365 = vmul.f32 %v5338, 1.442695
  %v5366 = vpow.pop %v5365
  %v5367 = vmul.f32 %v5339, 1.442695
  %v5368 = vpow.pop %v5367
  %v5369 = vmul.f32 %v5340, 1.442695
  %v5370 = vpow.pop %v5369
  %v5371 = vmul.f32 %v5341, 1.442695
  %v5372 = vpow.pop %v5371
  %v5373 = vmul.f32 %v5342, 1.442695
  %v5374 = vpow.pop %v5373
  %v5375 = vmul.f32 %v5344, %v33
  %v5376 = vmul.f32 %v5346, %v741
  %v5377 = vmul.f32 %v5348, %v742
  %v5378 = vmul.f32 %v5350, %v743
  %v5379 = vmul.f32 %v5352, %v744
  %v5380 = vmul.f32 %v5354, %v745
  %v5381 = vmul.f32 %v5356, %v746
  %v5382 = vmul.f32 %v5358, %v747
  %v5383 = vmul.f32 %v5360, %v34
  %v5384 = vmul.f32 %v5362, %v748
  %v5385 = vmul.f32 %v5364, %v749
  %v5386 = vmul.f32 %v5366, %v750
  %v5387 = vmul.f32 %v5368, %v751
  %v5388 = vmul.f32 %v5370, %v752
  %v5389 = vmul.f32 %v5372, %v753
  %v5390 = vmul.f32 %v5374, %v754
  %v5407 = vrot.slane %v5376, 7
  %v5408 = vsel %vm617, %v5407, %v5375
  %v5409 = vrot.slane %v5377, 6
  %v5410 = vsel %vm620, %v5409, %v5408
  %v5411 = vrot.slane %v5378, 5
  %v5412 = vsel %vm623, %v5411, %v5410
  %v5413 = vrot.slane %v5379, 4
  %v5414 = vsel %vm626, %v5413, %v5412
  %v5415 = vrot.slane %v5380, 3
  %v5416 = vsel %vm629, %v5415, %v5414
  %v5417 = vrot.slane %v5381, 2
  %v5418 = vsel %vm632, %v5417, %v5416
  %v5419 = vrot.slane %v5382, 1
  %v5420 = vsel %vm635, %v5419, %v5418
  %v5421 = vrot.slane %v5384, 7
  %v5422 = vsel %vm617, %v5421, %v5383
  %v5423 = vrot.slane %v5385, 6
  %v5424 = vsel %vm620, %v5423, %v5422
  %v5425 = vrot.slane %v5386, 5
  %v5426 = vsel %vm623, %v5425, %v5424
  %v5427 = vrot.slane %v5387, 4
  %v5428 = vsel %vm626, %v5427, %v5426
  %v5429 = vrot.slane %v5388, 3
  %v5430 = vsel %vm629, %v5429, %v5428
  %v5431 = vrot.slane %v5389, 2
  %v5432 = vsel %vm632, %v5431, %v5430
  %v5433 = vrot.slane %v5390, 1
  %v5434 = vsel %vm635, %v5433, %v5432
  %v5437 = vsel %vm48, %v5420, 0.0
  %5438 = vadd.xlane.f32.xlu0 %v5437
  %v5439 = vpop.xlane.xlu0 %5438
  %v5440 = vsel %vm48, %v5434, 0.0
  %5441 = vadd.xlane.f32.xlu0 %v5440
  %v5442 = vpop.xlane.xlu0 %5441
  %v5443 = vrcp.pop %v5439
  %v5444 = vrcp.pop %v5442
  %v5447 = vrot.slane %v5443, 1
  %v5448 = vrot.slane %v5443, 2
  %v5449 = vrot.slane %v5443, 3
  %v5450 = vrot.slane %v5443, 4
  %v5451 = vrot.slane %v5443, 5
  %v5452 = vrot.slane %v5443, 6
  %v5453 = vrot.slane %v5443, 7
  %v5454 = vrot.slane %v5444, 1
  %v5455 = vrot.slane %v5444, 2
  %v5456 = vrot.slane %v5444, 3
  %v5457 = vrot.slane %v5444, 4
  %v5458 = vrot.slane %v5444, 5
  %v5459 = vrot.slane %v5444, 6
  %v5460 = vrot.slane %v5444, 7
  %v5477 = vmul.f32 %v5375, %v5443
  %v5478 = vmul.f32 %v5376, %v5447
  %v5479 = vmul.f32 %v5377, %v5448
  %v5480 = vmul.f32 %v5378, %v5449
  %v5481 = vmul.f32 %v5379, %v5450
  %v5482 = vmul.f32 %v5380, %v5451
  %v5483 = vmul.f32 %v5381, %v5452
  %v5484 = vmul.f32 %v5382, %v5453
  %v5485 = vmul.f32 %v5383, %v5444
  %v5486 = vmul.f32 %v5384, %v5454
  %v5487 = vmul.f32 %v5385, %v5455
  %v5488 = vmul.f32 %v5386, %v5456
  %v5489 = vmul.f32 %v5387, %v5457
  %v5490 = vmul.f32 %v5388, %v5458
  %v5491 = vmul.f32 %v5389, %v5459
  %v5492 = vmul.f32 %v5390, %v5460
  %v5509 = vrot.slane %v5478, 7
  %v5510 = vsel %vm617, %v5509, %v5477
  %v5511 = vrot.slane %v5479, 6
  %v5512 = vsel %vm620, %v5511, %v5510
  %v5513 = vrot.slane %v5480, 5
  %v5514 = vsel %vm623, %v5513, %v5512
  %v5515 = vrot.slane %v5481, 4
  %v5516 = vsel %vm626, %v5515, %v5514
  %v5517 = vrot.slane %v5482, 3
  %v5518 = vsel %vm629, %v5517, %v5516
  %v5519 = vrot.slane %v5483, 2
  %v5520 = vsel %vm632, %v5519, %v5518
  %v5521 = vrot.slane %v5484, 1
  %v5522 = vsel %vm635, %v5521, %v5520
  %v5523 = vrot.slane %v5486, 7
  %v5524 = vsel %vm617, %v5523, %v5485
  %v5525 = vrot.slane %v5487, 6
  %v5526 = vsel %vm620, %v5525, %v5524
  %v5527 = vrot.slane %v5488, 5
  %v5528 = vsel %vm623, %v5527, %v5526
  %v5529 = vrot.slane %v5489, 4
  %v5530 = vsel %vm626, %v5529, %v5528
  %v5531 = vrot.slane %v5490, 3
  %v5532 = vsel %vm629, %v5531, %v5530
  %v5533 = vrot.slane %v5491, 2
  %v5534 = vsel %vm632, %v5533, %v5532
  %v5535 = vrot.slane %v5492, 1
  %v5536 = vsel %vm635, %v5535, %v5534
  %5537 = vrot.lane.b32.xlu0 %v122, 72
  %v5538 = vpop.permute.xlu0 %5537
  %5539 = vrot.lane.b32.xlu0 %v127, 72
  %v5540 = vpop.permute.xlu0 %5539
  %5543 = vrot.lane.b32.xlu0 %v892, 72
  %v5544 = vpop.permute.xlu0 %5543
  %v5546 = vsel %vm48, %v5522, 0
  %v5548 = vsel %vm48, %v5536, 0
  %5550 = vmatprep.subr.mxu0 0.0
  %5551 = vmatpush1.msra.mxu0 %v5538
  %5552 = vmatprep.subr.mxu0 0.0
  %5553 = vmatpush1.msra.mxu0 %v5540
  %5554 = vmatprep.subr.mxu0 0.0
  %5555 = vmatpush1.msra.mxu0 0.0
  %5556 = vmatprep.subr.mxu0 0.0
  %5557 = vmatpush1.msra.mxu0 0.0
  %5558 = vmatprep.subr.mxu0 0.0
  %5559 = vmatpush1.msra.mxu0 0.0
  %5560 = vmatprep.subr.mxu0 0.0
  %5561 = vmatpush1.msra.mxu0 0.0
  %5562 = vmatprep.subr.mxu0 0.0
  %5563 = vmatpush1.msra.mxu0 0.0
  %5564 = vmatprep.subr.mxu0 0.0
  %5565 = vmatpush1.msra.mxu0 0.0
  %5566 = vmatprep.subr.mxu0 0.0
  %5567 = vmatpush1.msra.mxu0 0.0
  %5568 = vmatprep.subr.mxu0 0.0
  %5569 = vmatpush1.msra.mxu0 0.0
  %5570 = vmatprep.subr.mxu0 0.0
  %5571 = vmatpush1.msra.mxu0 0.0
  %5572 = vmatprep.subr.mxu0 0.0
  %5573 = vmatpush1.msra.mxu0 0.0
  %5574 = vmatprep.subr.mxu0 0.0
  %5575 = vmatpush1.msra.mxu0 0.0
  %5576 = vmatprep.subr.mxu0 0.0
  %5577 = vmatpush1.msra.mxu0 0.0
  %5578 = vmatprep.subr.mxu0 0.0
  %5579 = vmatpush1.msra.mxu0 0.0
  %5580 = vmatprep.subr.mxu0 0.0
  %5581 = vmatpush1.msra.mxu0 0.0
  %5582 = vmatprep.subr.mxu0 0.0
  %5583 = vmatpush1.msra.mxu0 0.0
  %5584 = vmatprep.subr.mxu0 0.0
  %5585 = vmatpush1.msra.mxu0 0.0
  %5586 = vmatprep.subr.mxu0 0.0
  %5587 = vmatpush1.msra.mxu0 0.0
  %5588 = vmatprep.subr.mxu0 0.0
  %5589 = vmatpush1.msra.mxu0 0.0
  %5590 = vmatprep.subr.mxu0 0.0
  %5591 = vmatpush1.msra.mxu0 0.0
  %5592 = vmatprep.subr.mxu0 0.0
  %5593 = vmatpush1.msra.mxu0 0.0
  %5594 = vmatprep.subr.mxu0 0.0
  %5595 = vmatpush1.msra.mxu0 0.0
  %5596 = vmatprep.subr.mxu0 0.0
  %5597 = vmatpush1.msra.mxu0 0.0
  %5598 = vmatprep.subr.mxu0 0.0
  %5599 = vmatpush1.msra.mxu0 0.0
  %5600 = vmatprep.subr.mxu0 0.0
  %5601 = vmatpush1.msra.mxu0 0.0
  %5602 = vmatprep.subr.mxu0 0.0
  %5603 = vmatpush1.msra.mxu0 0.0
  %5604 = vmatprep.subr.mxu0 0.0
  %5605 = vmatpush1.msra.mxu0 0.0
  %5606 = vmatprep.subr.mxu0 0.0
  %5607 = vmatpush1.msra.mxu0 0.0
  %5608 = vmatprep.subr.mxu0 0.0
  %5609 = vmatpush1.msra.mxu0 0.0
  %5610 = vmatprep.subr.mxu0 0.0
  %5611 = vmatpush1.msra.mxu0 0.0
  %5612 = vmatprep.subr.mxu0 0.0
  %5613 = vmatpush1.msra.mxu0 0.0
  %5614 = vmatprep.mubr.f32.mxu0 0.0
  %5615 = vmatmul.mubr.f32.gmra.mrb[0].mxu0 %v5546
  %v5616 = vpop.f32.mrb[0].mxu0
  %v5617 = vadd.f32 %v5544, %v5616
  %v5618 = vpop.f32.mrb[0].mxu0
  %5619 = vmatprep.mubr.f32.mxu0 0.0
  %5620 = vmatmul.mubr.f32.gmra.mrb[0].mxu0 %v5548
  %v5621 = vpop.f32.mrb[0].mxu0
  %v5622 = vadd.f32 %v5544, %v5621
  %v5623 = vpop.f32.mrb[0].mxu0
  %5624 = vdwg.mxu0
  %5627 = vrot.lane.b32.xlu0 %v1669, 8
  %v5628 = vpop.permute.xlu0 %5627
  %5629 = vrot.lane.b32.xlu0 %v1674, 8
  %v5630 = vpop.permute.xlu0 %5629
  %5635 = vrot.lane.b32.xlu0 %v2327, 16
  %v5636 = vpop.permute.xlu0 %5635
  %5637 = vrot.lane.b32.xlu0 %v2332, 16
  %v5638 = vpop.permute.xlu0 %5637
  %5643 = vrot.lane.b32.xlu0 %v2985, 24
  %v5644 = vpop.permute.xlu0 %5643
  %5645 = vrot.lane.b32.xlu0 %v2990, 24
  %v5646 = vpop.permute.xlu0 %5645
  %5651 = vrot.lane.b32.xlu0 %v3643, 32
  %v5652 = vpop.permute.xlu0 %5651
  %5653 = vrot.lane.b32.xlu0 %v3648, 32
  %v5654 = vpop.permute.xlu0 %5653
  %5659 = vrot.lane.b32.xlu0 %v4301, 40
  %v5660 = vpop.permute.xlu0 %5659
  %5661 = vrot.lane.b32.xlu0 %v4306, 40
  %v5662 = vpop.permute.xlu0 %5661
  %5667 = vrot.lane.b32.xlu0 %v4959, 48
  %v5668 = vpop.permute.xlu0 %5667
  %5669 = vrot.lane.b32.xlu0 %v4964, 48
  %v5670 = vpop.permute.xlu0 %5669
  %5675 = vrot.lane.b32.xlu0 %v5617, 56
  %v5676 = vpop.permute.xlu0 %5675
  %5677 = vrot.lane.b32.xlu0 %v5622, 56
  %v5678 = vpop.permute.xlu0 %5677
  %vm5681 = vcmask 64512
  %v5682 = vsel %vm5681, %v1008, %v5628
  %v5683 = vsel %vm5681, %v1013, %v5630
  %v5684 = vsel %vm48, %v5682, %v5636
  %v5685 = vsel %vm48, %v5683, %v5638
  %vm5686 = vcmask 195584
  %v5687 = vsel %vm5686, %v5684, %v5644
  %v5688 = vsel %vm5686, %v5685, %v5646
  %vm5689 = vcmask 261120
  %v5690 = vsel %vm5689, %v5687, %v5652
  %v5691 = vsel %vm5689, %v5688, %v5654
  %vm5692 = vcmask 326656
  %v5693 = vsel %vm5692, %v5690, %v5660
  %v5694 = vsel %vm5692, %v5691, %v5662
  %vm5695 = vcmask 392192
  %v5696 = vsel %vm5695, %v5693, %v5668
  %v5697 = vsel %vm5695, %v5694, %v5670
  %vm5698 = vcmask 457728
  %v5699 = vsel %vm5698, %v5696, %v5676
  %v5700 = vsel %vm5698, %v5697, %v5678
  %vm5701 = vcmp.gt.f32.partialorder %v5699, 0.0
  %vm5702 = vcmp.gt.f32.partialorder %v5700, 0.0
  %v5703 = vmul.f32 %v5699, 1.442695
  %v5704 = vpow.pop %v5703
  %v5705 = vmul.f32 %v5700, 1.442695
  %v5706 = vpow.pop %v5705
  %v5707 = vsub.f32 %v5704, 1.0
  %v5708 = vsub.f32 %v5706, 1.0
  %v5709 = vsel %vm5701, %v5699, %v5707
  %v5710 = vsel %vm5702, %v5700, %v5708
  %v5711 = vld [vmem:[%s5] sm:$0xff]
  %v5712 = vld [vmem:[%s5 + $0x8] sm:$0xff]
  %v5713 = vld [vmem:[%s5 + $0x10] sm:$0xff]
  %v5714 = vld [vmem:[%s5 + $0x18] sm:$0xff]
  %v5715 = vld [vmem:[%s5 + $0x20] sm:$0xff]
  %v5716 = vld [vmem:[%s5 + $0x28] sm:$0xff]
  %v5717 = vld [vmem:[%s5 + $0x30] sm:$0xff]
  %v5718 = vld [vmem:[%s5 + $0x38] sm:$0xff]
  %v5719 = vld [vmem:[%s6] sm:$0xff]
  %v5720 = vld [vmem:[%s6 + $0x8] sm:$0xff]
  %v5721 = vld [vmem:[%s6 + $0x10] sm:$0xff]
  %v5722 = vld [vmem:[%s6 + $0x18] sm:$0xff]
  %v5723 = vld [vmem:[%s6 + $0x20] sm:$0xff]
  %v5724 = vld [vmem:[%s6 + $0x28] sm:$0xff]
  %v5725 = vld [vmem:[%s6 + $0x30] sm:$0xff]
  %v5726 = vld [vmem:[%s6 + $0x38] sm:$0xff]
  %v5727 = vld [vmem:[%s7] sm:$0xf]
  %v5728 = vlaneseq
  %v5729 = vshrl.u32 %v5728, 7
  %v5730 = vsub.s32 0, %v5729
  %v5731 = vrot.slane %v5727, %v5730
  %vm5732 = vcmask 523264
  %v5734 = vsel %vm5732, %v5709, 0
  %v5737 = vsel %vm5732, %v5710, 0
  %5739 = vmatprep.subr.mxu0 0.0
  %5740 = vmatpush1.msra.mxu0 %v5711
  %5741 = vmatprep.subr.mxu0 0.0
  %5742 = vmatpush1.msra.mxu0 %v5712
  %5743 = vmatprep.subr.mxu0 0.0
  %5744 = vmatpush1.msra.mxu0 %v5713
  %5745 = vmatprep.subr.mxu0 0.0
  %5746 = vmatpush1.msra.mxu0 %v5714
  %5747 = vmatprep.subr.mxu0 0.0
  %5748 = vmatpush1.msra.mxu0 %v5715
  %5749 = vmatprep.subr.mxu0 0.0
  %5750 = vmatpush1.msra.mxu0 %v5716
  %5751 = vmatprep.subr.mxu0 0.0
  %5752 = vmatpush1.msra.mxu0 %v5717
  %5753 = vmatprep.subr.mxu0 0.0
  %5754 = vmatpush1.msra.mxu0 %v5718
  %5755 = vmatprep.subr.mxu0 0.0
  %5756 = vmatpush1.msra.mxu0 0.0
  %5757 = vmatprep.subr.mxu0 0.0
  %5758 = vmatpush1.msra.mxu0 0.0
  %5759 = vmatprep.subr.mxu0 0.0
  %5760 = vmatpush1.msra.mxu0 0.0
  %5761 = vmatprep.subr.mxu0 0.0
  %5762 = vmatpush1.msra.mxu0 0.0
  %5763 = vmatprep.subr.mxu0 0.0
  %5764 = vmatpush1.msra.mxu0 0.0
  %5765 = vmatprep.subr.mxu0 0.0
  %5766 = vmatpush1.msra.mxu0 0.0
  %5767 = vmatprep.subr.mxu0 0.0
  %5768 = vmatpush1.msra.mxu0 0.0
  %5769 = vmatprep.subr.mxu0 0.0
  %5770 = vmatpush1.msra.mxu0 0.0
  %5771 = vmatprep.subr.mxu0 0.0
  %5772 = vmatpush1.msra.mxu0 0.0
  %5773 = vmatprep.subr.mxu0 0.0
  %5774 = vmatpush1.msra.mxu0 0.0
  %5775 = vmatprep.subr.mxu0 0.0
  %5776 = vmatpush1.msra.mxu0 0.0
  %5777 = vmatprep.subr.mxu0 0.0
  %5778 = vmatpush1.msra.mxu0 0.0
  %5779 = vmatprep.subr.mxu0 0.0
  %5780 = vmatpush1.msra.mxu0 0.0
  %5781 = vmatprep.subr.mxu0 0.0
  %5782 = vmatpush1.msra.mxu0 0.0
  %5783 = vmatprep.subr.mxu0 0.0
  %5784 = vmatpush1.msra.mxu0 0.0
  %5785 = vmatprep.subr.mxu0 0.0
  %5786 = vmatpush1.msra.mxu0 0.0
  %5787 = vmatprep.subr.mxu0 0.0
  %5788 = vmatpush1.msra.mxu0 0.0
  %5789 = vmatprep.subr.mxu0 0.0
  %5790 = vmatpush1.msra.mxu0 0.0
  %5791 = vmatprep.subr.mxu0 0.0
  %5792 = vmatpush1.msra.mxu0 0.0
  %5793 = vmatprep.subr.mxu0 0.0
  %5794 = vmatpush1.msra.mxu0 0.0
  %5795 = vmatprep.subr.mxu0 0.0
  %5796 = vmatpush1.msra.mxu0 0.0
  %5797 = vmatprep.subr.mxu0 0.0
  %5798 = vmatpush1.msra.mxu0 0.0
  %5799 = vmatprep.subr.mxu0 0.0
  %5800 = vmatpush1.msra.mxu0 0.0
  %5801 = vmatprep.subr.mxu0 0.0
  %5802 = vmatpush1.msra.mxu0 0.0
  %5803 = vmatprep.mubr.f32.mxu0 0.0
  %5804 = vmatmul.mubr.f32.gmra.mrb[0].mxu0 %v5734
  %v5805 = vpop.f32.mrb[0].mxu0
  %v5806 = vadd.f32 %v5731, %v5805
  %v5807 = vpop.f32.mrb[0].mxu0
  %5808 = vmatprep.mubr.f32.mxu0 0.0
  %5809 = vmatmul.mubr.f32.gmra.mrb[0].mxu0 %v5737
  %v5810 = vpop.f32.mrb[0].mxu0
  %v5811 = vadd.f32 %v5731, %v5810
  %v5812 = vpop.f32.mrb[0].mxu0
  %5813 = vdwg.mxu0
  %v5814 = vlaneseq
  %v5815 = vshrl.u32 %v5814, 7
  %v5816 = vsub.s32 1, %v5815
  %v5817 = vrot.slane %v5727, %v5816
  %5818 = vmatprep.subr.mxu0 0.0
  %5819 = vmatpush1.msra.mxu0 %v5719
  %5820 = vmatprep.subr.mxu0 0.0
  %5821 = vmatpush1.msra.mxu0 %v5720
  %5822 = vmatprep.subr.mxu0 0.0
  %5823 = vmatpush1.msra.mxu0 %v5721
  %5824 = vmatprep.subr.mxu0 0.0
  %5825 = vmatpush1.msra.mxu0 %v5722
  %5826 = vmatprep.subr.mxu0 0.0
  %5827 = vmatpush1.msra.mxu0 %v5723
  %5828 = vmatprep.subr.mxu0 0.0
  %5829 = vmatpush1.msra.mxu0 %v5724
  %5830 = vmatprep.subr.mxu0 0.0
  %5831 = vmatpush1.msra.mxu0 %v5725
  %5832 = vmatprep.subr.mxu0 0.0
  %5833 = vmatpush1.msra.mxu0 %v5726
  %5834 = vmatprep.subr.mxu0 0.0
  %5835 = vmatpush1.msra.mxu0 0.0
  %5836 = vmatprep.subr.mxu0 0.0
  %5837 = vmatpush1.msra.mxu0 0.0
  %5838 = vmatprep.subr.mxu0 0.0
  %5839 = vmatpush1.msra.mxu0 0.0
  %5840 = vmatprep.subr.mxu0 0.0
  %5841 = vmatpush1.msra.mxu0 0.0
  %5842 = vmatprep.subr.mxu0 0.0
  %5843 = vmatpush1.msra.mxu0 0.0
  %5844 = vmatprep.subr.mxu0 0.0
  %5845 = vmatpush1.msra.mxu0 0.0
  %5846 = vmatprep.subr.mxu0 0.0
  %5847 = vmatpush1.msra.mxu0 0.0
  %5848 = vmatprep.subr.mxu0 0.0
  %5849 = vmatpush1.msra.mxu0 0.0
  %5850 = vmatprep.subr.mxu0 0.0
  %5851 = vmatpush1.msra.mxu0 0.0
  %5852 = vmatprep.subr.mxu0 0.0
  %5853 = vmatpush1.msra.mxu0 0.0
  %5854 = vmatprep.subr.mxu0 0.0
  %5855 = vmatpush1.msra.mxu0 0.0
  %5856 = vmatprep.subr.mxu0 0.0
  %5857 = vmatpush1.msra.mxu0 0.0
  %5858 = vmatprep.subr.mxu0 0.0
  %5859 = vmatpush1.msra.mxu0 0.0
  %5860 = vmatprep.subr.mxu0 0.0
  %5861 = vmatpush1.msra.mxu0 0.0
  %5862 = vmatprep.subr.mxu0 0.0
  %5863 = vmatpush1.msra.mxu0 0.0
  %5864 = vmatprep.subr.mxu0 0.0
  %5865 = vmatpush1.msra.mxu0 0.0
  %5866 = vmatprep.subr.mxu0 0.0
  %5867 = vmatpush1.msra.mxu0 0.0
  %5868 = vmatprep.subr.mxu0 0.0
  %5869 = vmatpush1.msra.mxu0 0.0
  %5870 = vmatprep.subr.mxu0 0.0
  %5871 = vmatpush1.msra.mxu0 0.0
  %5872 = vmatprep.subr.mxu0 0.0
  %5873 = vmatpush1.msra.mxu0 0.0
  %5874 = vmatprep.subr.mxu0 0.0
  %5875 = vmatpush1.msra.mxu0 0.0
  %5876 = vmatprep.subr.mxu0 0.0
  %5877 = vmatpush1.msra.mxu0 0.0
  %5878 = vmatprep.subr.mxu0 0.0
  %5879 = vmatpush1.msra.mxu0 0.0
  %5880 = vmatprep.subr.mxu0 0.0
  %5881 = vmatpush1.msra.mxu0 0.0
  %5882 = vmatprep.mubr.f32.mxu0 0.0
  %5883 = vmatmul.mubr.f32.gmra.mrb[0].mxu0 %v5734
  %v5884 = vpop.f32.mrb[0].mxu0
  %v5885 = vadd.f32 %v5817, %v5884
  %v5886 = vpop.f32.mrb[0].mxu0
  %5887 = vmatprep.mubr.f32.mxu0 0.0
  %5888 = vmatmul.mubr.f32.gmra.mrb[0].mxu0 %v5737
  %v5889 = vpop.f32.mrb[0].mxu0
  %v5890 = vadd.f32 %v5817, %v5889
  %v5891 = vpop.f32.mrb[0].mxu0
  %5892 = vdwg.mxu0
  %5893 = vxpose.xlu0.b32.start [1/16] %v5806, 128
  %5894 = vxpose.xlu0.b32.cont [2/16] %v5811, 128
  %5895 = vxpose.xlu0.b32.cont [3/16] 0.0, 128
  %5896 = vxpose.xlu0.b32.cont [4/16] 0.0, 128
  %5897 = vxpose.xlu0.b32.cont [5/16] 0.0, 128
  %5898 = vxpose.xlu0.b32.cont [6/16] 0.0, 128
  %5899 = vxpose.xlu0.b32.cont [7/16] 0.0, 128
  %5900 = vxpose.xlu0.b32.cont [8/16] 0.0, 128
  %5901 = vxpose.xlu0.b32.cont [9/16] 0.0, 128
  %5902 = vxpose.xlu0.b32.cont [10/16] 0.0, 128
  %5903 = vxpose.xlu0.b32.cont [11/16] 0.0, 128
  %5904 = vxpose.xlu0.b32.cont [12/16] 0.0, 128
  %5905 = vxpose.xlu0.b32.cont [13/16] 0.0, 128
  %5906 = vxpose.xlu0.b32.cont [14/16] 0.0, 128
  %5907 = vxpose.xlu0.b32.cont [15/16] 0.0, 128
  %5908 = vxpose.xlu0.b32.end [16/16] 0.0, 128
  %v5909 = vpop.trf.xlu0
  %v5910 = vpop.trf.xlu0
  %v5911 = vpop.trf.xlu0
  %v5912 = vpop.trf.xlu0
  %v5913 = vpop.trf.xlu0
  %v5914 = vpop.trf.xlu0
  %v5915 = vpop.trf.xlu0
  %v5916 = vpop.trf.xlu0
  %v5917 = vpop.trf.xlu0
  %v5918 = vpop.trf.xlu0
  %v5919 = vpop.trf.xlu0
  %v5920 = vpop.trf.xlu0
  %v5921 = vpop.trf.xlu0
  %v5922 = vpop.trf.xlu0
  %v5923 = vpop.trf.xlu0
  %v5924 = vpop.trf.xlu0
  %v5925 = vlaneseq
  %v5926 = vshrl.u32 %v5925, 7
  %v5927 = vsub.s32 0, %v5926
  %v5928 = vrot.slane %v5885, %v5927
  %5930 = vbcast.lane.b32.xlu0 %v5928, 256
  %v5931 = vpop.permute.xlu0 %5930
  %v5932 = vlaneseq
  %v5933 = vshrl.u32 %v5932, 7
  %v5934 = vsub.s32 1, %v5933
  %v5935 = vrot.slane %v5885, %v5934
  %5937 = vbcast.lane.b32.xlu0 %v5935, 256
  %v5938 = vpop.permute.xlu0 %5937
  %v5939 = vlaneseq
  %v5940 = vshrl.u32 %v5939, 7
  %v5941 = vsub.s32 2, %v5940
  %v5942 = vrot.slane %v5885, %v5941
  %5944 = vbcast.lane.b32.xlu0 %v5942, 256
  %v5945 = vpop.permute.xlu0 %5944
  %v5946 = vlaneseq
  %v5947 = vshrl.u32 %v5946, 7
  %v5948 = vsub.s32 3, %v5947
  %v5949 = vrot.slane %v5885, %v5948
  %5951 = vbcast.lane.b32.xlu0 %v5949, 256
  %v5952 = vpop.permute.xlu0 %5951
  %v5953 = vlaneseq
  %v5954 = vshrl.u32 %v5953, 7
  %v5955 = vsub.s32 4, %v5954
  %v5956 = vrot.slane %v5885, %v5955
  %5958 = vbcast.lane.b32.xlu0 %v5956, 256
  %v5959 = vpop.permute.xlu0 %5958
  %v5960 = vlaneseq
  %v5961 = vshrl.u32 %v5960, 7
  %v5962 = vsub.s32 5, %v5961
  %v5963 = vrot.slane %v5885, %v5962
  %5965 = vbcast.lane.b32.xlu0 %v5963, 256
  %v5966 = vpop.permute.xlu0 %5965
  %v5967 = vlaneseq
  %v5968 = vshrl.u32 %v5967, 7
  %v5969 = vsub.s32 6, %v5968
  %v5970 = vrot.slane %v5885, %v5969
  %5972 = vbcast.lane.b32.xlu0 %v5970, 256
  %v5973 = vpop.permute.xlu0 %5972
  %v5974 = vlaneseq
  %v5975 = vshrl.u32 %v5974, 7
  %v5976 = vsub.s32 7, %v5975
  %v5977 = vrot.slane %v5885, %v5976
  %5979 = vbcast.lane.b32.xlu0 %v5977, 256
  %v5980 = vpop.permute.xlu0 %5979
  %v5981 = vlaneseq
  %v5982 = vshrl.u32 %v5981, 7
  %v5983 = vsub.s32 0, %v5982
  %v5984 = vrot.slane %v5890, %v5983
  %5986 = vbcast.lane.b32.xlu0 %v5984, 256
  %v5987 = vpop.permute.xlu0 %5986
  %v5988 = vlaneseq
  %v5989 = vshrl.u32 %v5988, 7
  %v5990 = vsub.s32 1, %v5989
  %v5991 = vrot.slane %v5890, %v5990
  %5993 = vbcast.lane.b32.xlu0 %v5991, 256
  %v5994 = vpop.permute.xlu0 %5993
  %v5995 = vlaneseq
  %v5996 = vshrl.u32 %v5995, 7
  %v5997 = vsub.s32 2, %v5996
  %v5998 = vrot.slane %v5890, %v5997
  %6000 = vbcast.lane.b32.xlu0 %v5998, 256
  %v6001 = vpop.permute.xlu0 %6000
  %v6002 = vlaneseq
  %v6003 = vshrl.u32 %v6002, 7
  %v6004 = vsub.s32 3, %v6003
  %v6005 = vrot.slane %v5890, %v6004
  %6007 = vbcast.lane.b32.xlu0 %v6005, 256
  %v6008 = vpop.permute.xlu0 %6007
  %v6009 = vlaneseq
  %v6010 = vshrl.u32 %v6009, 7
  %v6011 = vsub.s32 4, %v6010
  %v6012 = vrot.slane %v5890, %v6011
  %6014 = vbcast.lane.b32.xlu0 %v6012, 256
  %v6015 = vpop.permute.xlu0 %6014
  %v6016 = vlaneseq
  %v6017 = vshrl.u32 %v6016, 7
  %v6018 = vsub.s32 5, %v6017
  %v6019 = vrot.slane %v5890, %v6018
  %6021 = vbcast.lane.b32.xlu0 %v6019, 256
  %v6022 = vpop.permute.xlu0 %6021
  %v6023 = vlaneseq
  %v6024 = vshrl.u32 %v6023, 7
  %v6025 = vsub.s32 6, %v6024
  %v6026 = vrot.slane %v5890, %v6025
  %6028 = vbcast.lane.b32.xlu0 %v6026, 256
  %v6029 = vpop.permute.xlu0 %6028
  %v6030 = vlaneseq
  %v6031 = vshrl.u32 %v6030, 7
  %v6032 = vsub.s32 7, %v6031
  %v6033 = vrot.slane %v5890, %v6032
  %6035 = vbcast.lane.b32.xlu0 %v6033, 256
  %v6036 = vpop.permute.xlu0 %6035
  %v6037 = vadd.f32 %v5931, %v5909
  %v6038 = vadd.f32 %v5938, %v5909
  %v6039 = vadd.f32 %v5945, %v5909
  %v6040 = vadd.f32 %v5952, %v5909
  %v6041 = vadd.f32 %v5959, %v5909
  %v6042 = vadd.f32 %v5966, %v5909
  %v6043 = vadd.f32 %v5973, %v5909
  %v6044 = vadd.f32 %v5980, %v5909
  %v6045 = vadd.f32 %v5987, %v5909
  %v6046 = vadd.f32 %v5994, %v5909
  %v6047 = vadd.f32 %v6001, %v5909
  %v6048 = vadd.f32 %v6008, %v5909
  %v6049 = vadd.f32 %v6015, %v5909
  %v6050 = vadd.f32 %v6022, %v5909
  %v6051 = vadd.f32 %v6029, %v5909
  %v6052 = vadd.f32 %v6036, %v5909
  %vm6053 = vcmp.ge.f32.partialorder %v6037, 0.0
  %vm6054 = vcmp.ge.f32.partialorder %v6038, 0.0
  %vm6055 = vcmp.ge.f32.partialorder %v6039, 0.0
  %vm6056 = vcmp.ge.f32.partialorder %v6040, 0.0
  %vm6057 = vcmp.ge.f32.partialorder %v6041, 0.0
  %vm6058 = vcmp.ge.f32.partialorder %v6042, 0.0
  %vm6059 = vcmp.ge.f32.partialorder %v6043, 0.0
  %vm6060 = vcmp.ge.f32.partialorder %v6044, 0.0
  %vm6061 = vcmp.ge.f32.partialorder %v6045, 0.0
  %vm6062 = vcmp.ge.f32.partialorder %v6046, 0.0
  %vm6063 = vcmp.ge.f32.partialorder %v6047, 0.0
  %vm6064 = vcmp.ge.f32.partialorder %v6048, 0.0
  %vm6065 = vcmp.ge.f32.partialorder %v6049, 0.0
  %vm6066 = vcmp.ge.f32.partialorder %v6050, 0.0
  %vm6067 = vcmp.ge.f32.partialorder %v6051, 0.0
  %vm6068 = vcmp.ge.f32.partialorder %v6052, 0.0
  %v6069 = vmul.f32 %v6037, 0.2
  %v6070 = vmul.f32 %v6038, 0.2
  %v6071 = vmul.f32 %v6039, 0.2
  %v6072 = vmul.f32 %v6040, 0.2
  %v6073 = vmul.f32 %v6041, 0.2
  %v6074 = vmul.f32 %v6042, 0.2
  %v6075 = vmul.f32 %v6043, 0.2
  %v6076 = vmul.f32 %v6044, 0.2
  %v6077 = vmul.f32 %v6045, 0.2
  %v6078 = vmul.f32 %v6046, 0.2
  %v6079 = vmul.f32 %v6047, 0.2
  %v6080 = vmul.f32 %v6048, 0.2
  %v6081 = vmul.f32 %v6049, 0.2
  %v6082 = vmul.f32 %v6050, 0.2
  %v6083 = vmul.f32 %v6051, 0.2
  %v6084 = vmul.f32 %v6052, 0.2
  %v6085 = vsel %vm6053, %v6037, %v6069
  %v6086 = vsel %vm6054, %v6038, %v6070
  %v6087 = vsel %vm6055, %v6039, %v6071
  %v6088 = vsel %vm6056, %v6040, %v6072
  %v6089 = vsel %vm6057, %v6041, %v6073
  %v6090 = vsel %vm6058, %v6042, %v6074
  %v6091 = vsel %vm6059, %v6043, %v6075
  %v6092 = vsel %vm6060, %v6044, %v6076
  %v6093 = vsel %vm6061, %v6045, %v6077
  %v6094 = vsel %vm6062, %v6046, %v6078
  %v6095 = vsel %vm6063, %v6047, %v6079
  %v6096 = vsel %vm6064, %v6048, %v6080
  %v6097 = vsel %vm6065, %v6049, %v6081
  %v6098 = vsel %vm6066, %v6050, %v6082
  %v6099 = vsel %vm6067, %v6051, %v6083
  %v6100 = vsel %vm6068, %v6052, %v6084
  %v6101 = vlaneseq
  %v6102 = vshrl.u32 %v6101, 7
  %v6103 = vsub.s32 2, %v6102
  %v6104 = vrot.slane %v5727, %v6103
  %6106 = vbcast.lane.b32.xlu0 %v6104, 256
  %v6107 = vpop.permute.xlu0 %6106
  %v6108 = vmul.f32 %v6085, %v6107
  %v6109 = vmul.f32 %v6086, %v6107
  %v6110 = vmul.f32 %v6087, %v6107
  %v6111 = vmul.f32 %v6088, %v6107
  %v6112 = vmul.f32 %v6089, %v6107
  %v6113 = vmul.f32 %v6090, %v6107
  %v6114 = vmul.f32 %v6091, %v6107
  %v6115 = vmul.f32 %v6092, %v6107
  %v6116 = vmul.f32 %v6093, %v6107
  %v6117 = vmul.f32 %v6094, %v6107
  %v6118 = vmul.f32 %v6095, %v6107
  %v6119 = vmul.f32 %v6096, %v6107
  %v6120 = vmul.f32 %v6097, %v6107
  %v6121 = vmul.f32 %v6098, %v6107
  %v6122 = vmul.f32 %v6099, %v6107
  %v6123 = vmul.f32 %v6100, %v6107
  %vm6124 = vcmask 125952
  %v6125 = vsel %vm6124, %v6108, 0.0
  %v6126 = vrot.slane %v6125, 4
  %v6127 = vadd.f32 %v6125, %v6126
  %v6128 = vrot.slane %v6127, 2
  %v6129 = vadd.f32 %v6127, %v6128
  %v6130 = vrot.slane %v6129, 1
  %v6131 = vadd.f32 %v6129, %v6130
  %v6132 = vsel %vm6124, %v6109, 0.0
  %v6133 = vrot.slane %v6132, 4
  %v6134 = vadd.f32 %v6132, %v6133
  %v6135 = vrot.slane %v6134, 2
  %v6136 = vadd.f32 %v6134, %v6135
  %v6137 = vrot.slane %v6136, 1
  %v6138 = vadd.f32 %v6136, %v6137
  %v6139 = vsel %vm6124, %v6110, 0.0
  %v6140 = vrot.slane %v6139, 4
  %v6141 = vadd.f32 %v6139, %v6140
  %v6142 = vrot.slane %v6141, 2
  %v6143 = vadd.f32 %v6141, %v6142
  %v6144 = vrot.slane %v6143, 1
  %v6145 = vadd.f32 %v6143, %v6144
  %v6146 = vsel %vm6124, %v6111, 0.0
  %v6147 = vrot.slane %v6146, 4
  %v6148 = vadd.f32 %v6146, %v6147
  %v6149 = vrot.slane %v6148, 2
  %v6150 = vadd.f32 %v6148, %v6149
  %v6151 = vrot.slane %v6150, 1
  %v6152 = vadd.f32 %v6150, %v6151
  %v6153 = vsel %vm6124, %v6112, 0.0
  %v6154 = vrot.slane %v6153, 4
  %v6155 = vadd.f32 %v6153, %v6154
  %v6156 = vrot.slane %v6155, 2
  %v6157 = vadd.f32 %v6155, %v6156
  %v6158 = vrot.slane %v6157, 1
  %v6159 = vadd.f32 %v6157, %v6158
  %v6160 = vsel %vm6124, %v6113, 0.0
  %v6161 = vrot.slane %v6160, 4
  %v6162 = vadd.f32 %v6160, %v6161
  %v6163 = vrot.slane %v6162, 2
  %v6164 = vadd.f32 %v6162, %v6163
  %v6165 = vrot.slane %v6164, 1
  %v6166 = vadd.f32 %v6164, %v6165
  %v6167 = vsel %vm6124, %v6114, 0.0
  %v6168 = vrot.slane %v6167, 4
  %v6169 = vadd.f32 %v6167, %v6168
  %v6170 = vrot.slane %v6169, 2
  %v6171 = vadd.f32 %v6169, %v6170
  %v6172 = vrot.slane %v6171, 1
  %v6173 = vadd.f32 %v6171, %v6172
  %v6174 = vsel %vm6124, %v6115, 0.0
  %v6175 = vrot.slane %v6174, 4
  %v6176 = vadd.f32 %v6174, %v6175
  %v6177 = vrot.slane %v6176, 2
  %v6178 = vadd.f32 %v6176, %v6177
  %v6179 = vrot.slane %v6178, 1
  %v6180 = vadd.f32 %v6178, %v6179
  %v6181 = vsel %vm6124, %v6116, 0.0
  %v6182 = vrot.slane %v6181, 4
  %v6183 = vadd.f32 %v6181, %v6182
  %v6184 = vrot.slane %v6183, 2
  %v6185 = vadd.f32 %v6183, %v6184
  %v6186 = vrot.slane %v6185, 1
  %v6187 = vadd.f32 %v6185, %v6186
  %v6188 = vsel %vm6124, %v6117, 0.0
  %v6189 = vrot.slane %v6188, 4
  %v6190 = vadd.f32 %v6188, %v6189
  %v6191 = vrot.slane %v6190, 2
  %v6192 = vadd.f32 %v6190, %v6191
  %v6193 = vrot.slane %v6192, 1
  %v6194 = vadd.f32 %v6192, %v6193
  %v6195 = vsel %vm6124, %v6118, 0.0
  %v6196 = vrot.slane %v6195, 4
  %v6197 = vadd.f32 %v6195, %v6196
  %v6198 = vrot.slane %v6197, 2
  %v6199 = vadd.f32 %v6197, %v6198
  %v6200 = vrot.slane %v6199, 1
  %v6201 = vadd.f32 %v6199, %v6200
  %v6202 = vsel %vm6124, %v6119, 0.0
  %v6203 = vrot.slane %v6202, 4
  %v6204 = vadd.f32 %v6202, %v6203
  %v6205 = vrot.slane %v6204, 2
  %v6206 = vadd.f32 %v6204, %v6205
  %v6207 = vrot.slane %v6206, 1
  %v6208 = vadd.f32 %v6206, %v6207
  %v6209 = vsel %vm6124, %v6120, 0.0
  %v6210 = vrot.slane %v6209, 4
  %v6211 = vadd.f32 %v6209, %v6210
  %v6212 = vrot.slane %v6211, 2
  %v6213 = vadd.f32 %v6211, %v6212
  %v6214 = vrot.slane %v6213, 1
  %v6215 = vadd.f32 %v6213, %v6214
  %v6216 = vsel %vm6124, %v6121, 0.0
  %v6217 = vrot.slane %v6216, 4
  %v6218 = vadd.f32 %v6216, %v6217
  %v6219 = vrot.slane %v6218, 2
  %v6220 = vadd.f32 %v6218, %v6219
  %v6221 = vrot.slane %v6220, 1
  %v6222 = vadd.f32 %v6220, %v6221
  %v6223 = vsel %vm6124, %v6122, 0.0
  %v6224 = vrot.slane %v6223, 4
  %v6225 = vadd.f32 %v6223, %v6224
  %v6226 = vrot.slane %v6225, 2
  %v6227 = vadd.f32 %v6225, %v6226
  %v6228 = vrot.slane %v6227, 1
  %v6229 = vadd.f32 %v6227, %v6228
  %v6230 = vsel %vm6124, %v6123, 0.0
  %v6231 = vrot.slane %v6230, 4
  %v6232 = vadd.f32 %v6230, %v6231
  %v6233 = vrot.slane %v6232, 2
  %v6234 = vadd.f32 %v6232, %v6233
  %v6235 = vrot.slane %v6234, 1
  %v6236 = vadd.f32 %v6234, %v6235
  %v6237 = vadd.f32 %v6131, %v37
  %v6238 = vadd.f32 %v6138, %v554
  %v6239 = vadd.f32 %v6145, %v555
  %v6240 = vadd.f32 %v6152, %v556
  %v6241 = vadd.f32 %v6159, %v557
  %v6242 = vadd.f32 %v6166, %v558
  %v6243 = vadd.f32 %v6173, %v559
  %v6244 = vadd.f32 %v6180, %v560
  %v6245 = vadd.f32 %v6187, %v38
  %v6246 = vadd.f32 %v6194, %v561
  %v6247 = vadd.f32 %v6201, %v562
  %v6248 = vadd.f32 %v6208, %v563
  %v6249 = vadd.f32 %v6215, %v564
  %v6250 = vadd.f32 %v6222, %v565
  %v6251 = vadd.f32 %v6229, %v566
  %v6252 = vadd.f32 %v6236, %v567
  %v6269 = vrot.slane %v6238, 7
  %v6270 = vsel %vm617, %v6269, %v6237
  %v6271 = vrot.slane %v6239, 6
  %v6272 = vsel %vm620, %v6271, %v6270
  %v6273 = vrot.slane %v6240, 5
  %v6274 = vsel %vm623, %v6273, %v6272
  %v6275 = vrot.slane %v6241, 4
  %v6276 = vsel %vm626, %v6275, %v6274
  %v6277 = vrot.slane %v6242, 3
  %v6278 = vsel %vm629, %v6277, %v6276
  %v6279 = vrot.slane %v6243, 2
  %v6280 = vsel %vm632, %v6279, %v6278
  %v6281 = vrot.slane %v6244, 1
  %v6282 = vsel %vm635, %v6281, %v6280
  %v6283 = vrot.slane %v6246, 7
  %v6284 = vsel %vm617, %v6283, %v6245
  %v6285 = vrot.slane %v6247, 6
  %v6286 = vsel %vm620, %v6285, %v6284
  %v6287 = vrot.slane %v6248, 5
  %v6288 = vsel %vm623, %v6287, %v6286
  %v6289 = vrot.slane %v6249, 4
  %v6290 = vsel %vm626, %v6289, %v6288
  %v6291 = vrot.slane %v6250, 3
  %v6292 = vsel %vm629, %v6291, %v6290
  %v6293 = vrot.slane %v6251, 2
  %v6294 = vsel %vm632, %v6293, %v6292
  %v6295 = vrot.slane %v6252, 1
  %v6296 = vsel %vm635, %v6295, %v6294
  %v6299 = vsel %vm48, %v6282, -inf
  %6300 = vmax.xlane.f32.xlu0 %v6299
  %v6301 = vpop.xlane.xlu0 %6300
  %v6302 = vsel %vm48, %v6296, -inf
  %6303 = vmax.xlane.f32.xlu0 %v6302
  %v6304 = vpop.xlane.xlu0 %6303
  %v6307 = vrot.slane %v6301, 1
  %v6308 = vrot.slane %v6301, 2
  %v6309 = vrot.slane %v6301, 3
  %v6310 = vrot.slane %v6301, 4
  %v6311 = vrot.slane %v6301, 5
  %v6312 = vrot.slane %v6301, 6
  %v6313 = vrot.slane %v6301, 7
  %v6314 = vrot.slane %v6304, 1
  %v6315 = vrot.slane %v6304, 2
  %v6316 = vrot.slane %v6304, 3
  %v6317 = vrot.slane %v6304, 4
  %v6318 = vrot.slane %v6304, 5
  %v6319 = vrot.slane %v6304, 6
  %v6320 = vrot.slane %v6304, 7
  %v6337 = vsub.f32 %v6237, %v6301
  %v6338 = vsub.f32 %v6238, %v6307
  %v6339 = vsub.f32 %v6239, %v6308
  %v6340 = vsub.f32 %v6240, %v6309
  %v6341 = vsub.f32 %v6241, %v6310
  %v6342 = vsub.f32 %v6242, %v6311
  %v6343 = vsub.f32 %v6243, %v6312
  %v6344 = vsub.f32 %v6244, %v6313
  %v6345 = vsub.f32 %v6245, %v6304
  %v6346 = vsub.f32 %v6246, %v6314
  %v6347 = vsub.f32 %v6247, %v6315
  %v6348 = vsub.f32 %v6248, %v6316
  %v6349 = vsub.f32 %v6249, %v6317
  %v6350 = vsub.f32 %v6250, %v6318
  %v6351 = vsub.f32 %v6251, %v6319
  %v6352 = vsub.f32 %v6252, %v6320
  %v6353 = vmul.f32 %v6337, 1.442695
  %v6354 = vpow.pop %v6353
  %v6355 = vmul.f32 %v6338, 1.442695
  %v6356 = vpow.pop %v6355
  %v6357 = vmul.f32 %v6339, 1.442695
  %v6358 = vpow.pop %v6357
  %v6359 = vmul.f32 %v6340, 1.442695
  %v6360 = vpow.pop %v6359
  %v6361 = vmul.f32 %v6341, 1.442695
  %v6362 = vpow.pop %v6361
  %v6363 = vmul.f32 %v6342, 1.442695
  %v6364 = vpow.pop %v6363
  %v6365 = vmul.f32 %v6343, 1.442695
  %v6366 = vpow.pop %v6365
  %v6367 = vmul.f32 %v6344, 1.442695
  %v6368 = vpow.pop %v6367
  %v6369 = vmul.f32 %v6345, 1.442695
  %v6370 = vpow.pop %v6369
  %v6371 = vmul.f32 %v6346, 1.442695
  %v6372 = vpow.pop %v6371
  %v6373 = vmul.f32 %v6347, 1.442695
  %v6374 = vpow.pop %v6373
  %v6375 = vmul.f32 %v6348, 1.442695
  %v6376 = vpow.pop %v6375
  %v6377 = vmul.f32 %v6349, 1.442695
  %v6378 = vpow.pop %v6377
  %v6379 = vmul.f32 %v6350, 1.442695
  %v6380 = vpow.pop %v6379
  %v6381 = vmul.f32 %v6351, 1.442695
  %v6382 = vpow.pop %v6381
  %v6383 = vmul.f32 %v6352, 1.442695
  %v6384 = vpow.pop %v6383
  %v6385 = vmul.f32 %v6354, %v33
  %v6386 = vmul.f32 %v6356, %v741
  %v6387 = vmul.f32 %v6358, %v742
  %v6388 = vmul.f32 %v6360, %v743
  %v6389 = vmul.f32 %v6362, %v744
  %v6390 = vmul.f32 %v6364, %v745
  %v6391 = vmul.f32 %v6366, %v746
  %v6392 = vmul.f32 %v6368, %v747
  %v6393 = vmul.f32 %v6370, %v34
  %v6394 = vmul.f32 %v6372, %v748
  %v6395 = vmul.f32 %v6374, %v749
  %v6396 = vmul.f32 %v6376, %v750
  %v6397 = vmul.f32 %v6378, %v751
  %v6398 = vmul.f32 %v6380, %v752
  %v6399 = vmul.f32 %v6382, %v753
  %v6400 = vmul.f32 %v6384, %v754
  %v6417 = vrot.slane %v6386, 7
  %v6418 = vsel %vm617, %v6417, %v6385
  %v6419 = vrot.slane %v6387, 6
  %v6420 = vsel %vm620, %v6419, %v6418
  %v6421 = vrot.slane %v6388, 5
  %v6422 = vsel %vm623, %v6421, %v6420
  %v6423 = vrot.slane %v6389, 4
  %v6424 = vsel %vm626, %v6423, %v6422
  %v6425 = vrot.slane %v6390, 3
  %v6426 = vsel %vm629, %v6425, %v6424
  %v6427 = vrot.slane %v6391, 2
  %v6428 = vsel %vm632, %v6427, %v6426
  %v6429 = vrot.slane %v6392, 1
  %v6430 = vsel %vm635, %v6429, %v6428
  %v6431 = vrot.slane %v6394, 7
  %v6432 = vsel %vm617, %v6431, %v6393
  %v6433 = vrot.slane %v6395, 6
  %v6434 = vsel %vm620, %v6433, %v6432
  %v6435 = vrot.slane %v6396, 5
  %v6436 = vsel %vm623, %v6435, %v6434
  %v6437 = vrot.slane %v6397, 4
  %v6438 = vsel %vm626, %v6437, %v6436
  %v6439 = vrot.slane %v6398, 3
  %v6440 = vsel %vm629, %v6439, %v6438
  %v6441 = vrot.slane %v6399, 2
  %v6442 = vsel %vm632, %v6441, %v6440
  %v6443 = vrot.slane %v6400, 1
  %v6444 = vsel %vm635, %v6443, %v6442
  %v6447 = vsel %vm48, %v6430, 0.0
  %6448 = vadd.xlane.f32.xlu0 %v6447
  %v6449 = vpop.xlane.xlu0 %6448
  %v6450 = vsel %vm48, %v6444, 0.0
  %6451 = vadd.xlane.f32.xlu0 %v6450
  %v6452 = vpop.xlane.xlu0 %6451
  %v6453 = vrcp.pop %v6449
  %v6454 = vrcp.pop %v6452
  %v6457 = vrot.slane %v6453, 1
  %v6458 = vrot.slane %v6453, 2
  %v6459 = vrot.slane %v6453, 3
  %v6460 = vrot.slane %v6453, 4
  %v6461 = vrot.slane %v6453, 5
  %v6462 = vrot.slane %v6453, 6
  %v6463 = vrot.slane %v6453, 7
  %v6464 = vrot.slane %v6454, 1
  %v6465 = vrot.slane %v6454, 2
  %v6466 = vrot.slane %v6454, 3
  %v6467 = vrot.slane %v6454, 4
  %v6468 = vrot.slane %v6454, 5
  %v6469 = vrot.slane %v6454, 6
  %v6470 = vrot.slane %v6454, 7
  %v6487 = vmul.f32 %v6385, %v6453
  %v6488 = vmul.f32 %v6386, %v6457
  %v6489 = vmul.f32 %v6387, %v6458
  %v6490 = vmul.f32 %v6388, %v6459
  %v6491 = vmul.f32 %v6389, %v6460
  %v6492 = vmul.f32 %v6390, %v6461
  %v6493 = vmul.f32 %v6391, %v6462
  %v6494 = vmul.f32 %v6392, %v6463
  %v6495 = vmul.f32 %v6393, %v6454
  %v6496 = vmul.f32 %v6394, %v6464
  %v6497 = vmul.f32 %v6395, %v6465
  %v6498 = vmul.f32 %v6396, %v6466
  %v6499 = vmul.f32 %v6397, %v6467
  %v6500 = vmul.f32 %v6398, %v6468
  %v6501 = vmul.f32 %v6399, %v6469
  %v6502 = vmul.f32 %v6400, %v6470
  %v6503 = vlaneseq
  %v6504 = vshrl.u32 %v6503, 7
  %v6505 = vsub.s32 3, %v6504
  %v6506 = vrot.slane %v5727, %v6505
  %v6523 = vrot.slane %v6488, 7
  %v6524 = vsel %vm617, %v6523, %v6487
  %v6525 = vrot.slane %v6489, 6
  %v6526 = vsel %vm620, %v6525, %v6524
  %v6527 = vrot.slane %v6490, 5
  %v6528 = vsel %vm623, %v6527, %v6526
  %v6529 = vrot.slane %v6491, 4
  %v6530 = vsel %vm626, %v6529, %v6528
  %v6531 = vrot.slane %v6492, 3
  %v6532 = vsel %vm629, %v6531, %v6530
  %v6533 = vrot.slane %v6493, 2
  %v6534 = vsel %vm632, %v6533, %v6532
  %v6535 = vrot.slane %v6494, 1
  %v6536 = vsel %vm635, %v6535, %v6534
  %v6537 = vrot.slane %v6496, 7
  %v6538 = vsel %vm617, %v6537, %v6495
  %v6539 = vrot.slane %v6497, 6
  %v6540 = vsel %vm620, %v6539, %v6538
  %v6541 = vrot.slane %v6498, 5
  %v6542 = vsel %vm623, %v6541, %v6540
  %v6543 = vrot.slane %v6499, 4
  %v6544 = vsel %vm626, %v6543, %v6542
  %v6545 = vrot.slane %v6500, 3
  %v6546 = vsel %vm629, %v6545, %v6544
  %v6547 = vrot.slane %v6501, 2
  %v6548 = vsel %vm632, %v6547, %v6546
  %v6549 = vrot.slane %v6502, 1
  %v6550 = vsel %vm635, %v6549, %v6548
  %v6551 = vsel %vm48, %v6536, 0
  %v6553 = vsel %vm48, %v6550, 0
  %6555 = vmatprep.subr.mxu0 0.0
  %6556 = vmatpush1.msra.mxu0 %v5806
  %6557 = vmatprep.subr.mxu0 0.0
  %6558 = vmatpush1.msra.mxu0 %v5811
  %6559 = vmatprep.subr.mxu0 0.0
  %6560 = vmatpush1.msra.mxu0 0.0
  %6561 = vmatprep.subr.mxu0 0.0
  %6562 = vmatpush1.msra.mxu0 0.0
  %6563 = vmatprep.subr.mxu0 0.0
  %6564 = vmatpush1.msra.mxu0 0.0
  %6565 = vmatprep.subr.mxu0 0.0
  %6566 = vmatpush1.msra.mxu0 0.0
  %6567 = vmatprep.subr.mxu0 0.0
  %6568 = vmatpush1.msra.mxu0 0.0
  %6569 = vmatprep.subr.mxu0 0.0
  %6570 = vmatpush1.msra.mxu0 0.0
  %6571 = vmatprep.subr.mxu0 0.0
  %6572 = vmatpush1.msra.mxu0 0.0
  %6573 = vmatprep.subr.mxu0 0.0
  %6574 = vmatpush1.msra.mxu0 0.0
  %6575 = vmatprep.subr.mxu0 0.0
  %6576 = vmatpush1.msra.mxu0 0.0
  %6577 = vmatprep.subr.mxu0 0.0
  %6578 = vmatpush1.msra.mxu0 0.0
  %6579 = vmatprep.subr.mxu0 0.0
  %6580 = vmatpush1.msra.mxu0 0.0
  %6581 = vmatprep.subr.mxu0 0.0
  %6582 = vmatpush1.msra.mxu0 0.0
  %6583 = vmatprep.subr.mxu0 0.0
  %6584 = vmatpush1.msra.mxu0 0.0
  %6585 = vmatprep.subr.mxu0 0.0
  %6586 = vmatpush1.msra.mxu0 0.0
  %6587 = vmatprep.subr.mxu0 0.0
  %6588 = vmatpush1.msra.mxu0 0.0
  %6589 = vmatprep.subr.mxu0 0.0
  %6590 = vmatpush1.msra.mxu0 0.0
  %6591 = vmatprep.subr.mxu0 0.0
  %6592 = vmatpush1.msra.mxu0 0.0
  %6593 = vmatprep.subr.mxu0 0.0
  %6594 = vmatpush1.msra.mxu0 0.0
  %6595 = vmatprep.subr.mxu0 0.0
  %6596 = vmatpush1.msra.mxu0 0.0
  %6597 = vmatprep.subr.mxu0 0.0
  %6598 = vmatpush1.msra.mxu0 0.0
  %6599 = vmatprep.subr.mxu0 0.0
  %6600 = vmatpush1.msra.mxu0 0.0
  %6601 = vmatprep.subr.mxu0 0.0
  %6602 = vmatpush1.msra.mxu0 0.0
  %6603 = vmatprep.subr.mxu0 0.0
  %6604 = vmatpush1.msra.mxu0 0.0
  %6605 = vmatprep.subr.mxu0 0.0
  %6606 = vmatpush1.msra.mxu0 0.0
  %6607 = vmatprep.subr.mxu0 0.0
  %6608 = vmatpush1.msra.mxu0 0.0
  %6609 = vmatprep.subr.mxu0 0.0
  %6610 = vmatpush1.msra.mxu0 0.0
  %6611 = vmatprep.subr.mxu0 0.0
  %6612 = vmatpush1.msra.mxu0 0.0
  %6613 = vmatprep.subr.mxu0 0.0
  %6614 = vmatpush1.msra.mxu0 0.0
  %6615 = vmatprep.subr.mxu0 0.0
  %6616 = vmatpush1.msra.mxu0 0.0
  %6617 = vmatprep.subr.mxu0 0.0
  %6618 = vmatpush1.msra.mxu0 0.0
  %6619 = vmatprep.mubr.f32.mxu0 0.0
  %6620 = vmatmul.mubr.f32.gmra.mrb[0].mxu0 %v6551
  %v6621 = vpop.f32.mrb[0].mxu0
  %v6622 = vadd.f32 %v6506, %v6621
  %v6623 = vpop.f32.mrb[0].mxu0
  %6624 = vmatprep.mubr.f32.mxu0 0.0
  %6625 = vmatmul.mubr.f32.gmra.mrb[0].mxu0 %v6553
  %v6626 = vpop.f32.mrb[0].mxu0
  %v6627 = vadd.f32 %v6506, %v6626
  %v6628 = vpop.f32.mrb[0].mxu0
  %6629 = vdwg.mxu0
  %vm6630 = vcmask 31744
  %6631 = vst.msk [vmem:[%s8] sm:$0xff] %vm6630, %v6622
  %6632 = vst.msk [vmem:[%s8 + $0x8] sm:$0xff] %vm6630, %v6627
  %v6633 = vsel %vm6630, %v6622, -inf
  %6634 = vmax.xlane.f32.xlu0 %v6633
  %v6635 = vpop.xlane.xlu0 %6634
  %v6636 = vsel %vm6630, %v6627, -inf
  %6637 = vmax.xlane.f32.xlu0 %v6636
  %v6638 = vpop.xlane.xlu0 %6637
  %v6639 = vsub.f32 %v6622, %v6635
  %v6640 = vsub.f32 %v6627, %v6638
  %v6641 = vmul.f32 %v6639, 1.442695
  %v6642 = vpow.pop %v6641
  %v6643 = vmul.f32 %v6640, 1.442695
  %v6644 = vpow.pop %v6643
  %v6645 = vsel %vm6630, %v6642, 0.0
  %6646 = vadd.xlane.f32.xlu0 %v6645
  %v6647 = vpop.xlane.xlu0 %6646
  %v6648 = vsel %vm6630, %v6644, 0.0
  %6649 = vadd.xlane.f32.xlu0 %v6648
  %v6650 = vpop.xlane.xlu0 %6649
  %v6651 = vlog2.pop %v6647
  %v6652 = vmul.f32 %v6651, 0.6931472
  %v6653 = vlog2.pop %v6650
  %v6654 = vmul.f32 %v6653, 0.6931472
  %v6655 = vadd.f32 %v6652, %v6635
  %v6656 = vadd.f32 %v6654, %v6638
  %v6657 = vsub.f32 %v6622, %v6655
  %v6658 = vsub.f32 %v6627, %v6656
  %6659 = vst.msk [vmem:[%s9] sm:$0xff] %vm6630, %v6657
  %6660 = vst.msk [vmem:[%s9 + $0x8] sm:$0xff] %vm6630, %v6658
  // Predicated region
  $region34: #{fwd.1} parent=0 // pred_check
    _
  $region35: #{fwd.1} parent=0 // pred_check_branch
    %6662 = sbr.rel (0) target = $region37
  $region36: #{fwd.1} parent=0 // pred_region
    _
  $region37: #{fwd.1} parent=0 // pred_fallthru
    _
  // Predicated region
  $region38: #{fwd.1} parent=0 // pred_check
    _
  $region39: #{fwd.1} parent=0 // pred_check_branch
    %6664 = sbr.rel (0) target = $region41
  $region40: #{fwd.1} parent=0 // pred_region
    _
  $region41: #{fwd.1} parent=0 // pred_fallthru
    _
  // Predicated region
  $region42: #{fwd.1} parent=0 // pred_check
    _
  $region43: #{fwd.1} parent=0 // pred_check_branch
    %6666 = sbr.rel (0) target = $region45
  $region44: #{fwd.1} parent=0 // pred_region
    _
  $region45: #{fwd.1} parent=0 // pred_fallthru
    _
  // Predicated region
  $region46: #{fwd.1} parent=0 // pred_check
    _
  $region47: #{fwd.1} parent=0 // pred_check_branch
    %6668 = sbr.rel (0) target = $region49
  $region48: #{fwd.1} parent=0 // pred_region
    _
  $region49: #{fwd.1} parent=0 // pred_fallthru
    _

</llo_original>
